<compile_context>
chip_gen: v7x
topology: tpu7x:2x2x1
jax: 0.10.0
libtpu: 0.0.40
codegen_flags: <defaults>
</compile_context>

<pallas_src>
import functools
import math

import jax
import jax.numpy as jnp
from jax import lax
from jax.experimental import pallas as pl
from jax.experimental.pallas import tpu as pltpu


def _round_up(x, m):
    return ((x + m - 1) // m) * m


# ============================== kernel bodies ==============================

def _xform_kernel(apply_relu, h_ref, w_ref, o_ref):
    """Row-tiled feature transform: o = (relu(h) if apply_relu else h) @ w."""
    h = h_ref[...]
    if apply_relu:
        h = jnp.maximum(h, 0.0).astype(h_ref.dtype)
    o_ref[...] = jnp.dot(h, w_ref[...],
                         preferred_element_type=jnp.float32).astype(o_ref.dtype)


def _gcn_xform_kernel(apply_relu, adj_ref, hw_ref, b_ref, wn_ref, o_ref, acc_ref):
    """o = act(A_hat @ HW + b) @ W_next, accumulated over the adj K axis."""
    k = pl.program_id(1)

    @pl.when(k == 0)
    def _():
        acc_ref[...] = jnp.zeros_like(acc_ref)

    acc_ref[...] += jnp.dot(adj_ref[...], hw_ref[...],
                            preferred_element_type=jnp.float32)

    @pl.when(k == pl.num_programs(1) - 1)
    def _():
        h = acc_ref[...] + b_ref[...]
        if apply_relu:
            h = jnp.maximum(h, 0.0)
        h = h.astype(wn_ref.dtype)
        o_ref[...] = jnp.dot(h, wn_ref[...],
                             preferred_element_type=jnp.float32).astype(o_ref.dtype)


def _gcn_out_kernel(apply_sigmoid, adj_ref, hw_ref, b_ref, o_ref, acc_ref):
    """o = maybe_sigmoid(A_hat @ HW + b), accumulated over the adj K axis."""
    k = pl.program_id(1)

    @pl.when(k == 0)
    def _():
        acc_ref[...] = jnp.zeros_like(acc_ref)

    acc_ref[...] += jnp.dot(adj_ref[...], hw_ref[...],
                            preferred_element_type=jnp.float32)

    @pl.when(k == pl.num_programs(1) - 1)
    def _():
        y = acc_ref[...] + b_ref[...]
        if apply_sigmoid:
            y = jax.nn.sigmoid(y)
        o_ref[...] = y.astype(o_ref.dtype)


def _dot_decoder_kernel(apply_sigmoid, hi_ref, hj_ref, o_ref):
    """(i, j) tile of hs @ hs.T: contract the hidden axis of BOTH operands
    via dot_general -> no explicit transpose, MXU consumes hs directly."""
    s = lax.dot_general(hi_ref[...], hj_ref[...],
                        dimension_numbers=(((1,), (1,)), ((), ())),
                        preferred_element_type=jnp.float32)
    if apply_sigmoid:
        s = jax.nn.sigmoid(s)
    o_ref[...] = s.astype(o_ref.dtype)


# ============================ pallas_call wrappers ==========================

def _cparams(semantics, vmem):
    return pltpu.CompilerParams(dimension_semantics=semantics,
                                vmem_limit_bytes=vmem)


def _xform(h, w, *, apply_relu, tm, col_block, col_index, out_dtype, vmem):
    n = h.shape[0]
    f_out = w.shape[1]
    return pl.pallas_call(
        functools.partial(_xform_kernel, apply_relu),
        grid=(n // tm,),
        in_specs=[
            pl.BlockSpec((tm, col_block), lambda i: (i, col_index)),
            pl.BlockSpec(w.shape, lambda i: (0, 0)),          # resident weight
        ],
        out_specs=pl.BlockSpec((tm, f_out), lambda i: (i, 0)),
        out_shape=jax.ShapeDtypeStruct((n, f_out), out_dtype),
        compiler_params=_cparams(("parallel",), vmem),
    )(h, w)


def _gcn_xform(adj, hw, b, wn, *, apply_relu, tm, tk, out_dtype, vmem):
    n = adj.shape[0]
    f_in = hw.shape[1]
    f_out = wn.shape[1]
    return pl.pallas_call(
        functools.partial(_gcn_xform_kernel, apply_relu),
        grid=(n // tm, n // tk),                               # (rows, K) — K last
        in_specs=[
            pl.BlockSpec((tm, tk), lambda i, k: (i, k)),       # adj tile
            pl.BlockSpec((tk, f_in), lambda i, k: (k, 0)),     # HW K-slice
            pl.BlockSpec((1, f_in), lambda i, k: (0, 0)),      # resident bias
            pl.BlockSpec(wn.shape, lambda i, k: (0, 0)),       # resident next-W
        ],
        out_specs=pl.BlockSpec((tm, f_out), lambda i, k: (i, 0)),
        out_shape=jax.ShapeDtypeStruct((n, f_out), out_dtype),
        scratch_shapes=[pltpu.VMEM((tm, f_in), jnp.float32)],
        compiler_params=_cparams(("parallel", "arbitrary"), vmem),
    )(adj, hw, b, wn)


def _gcn_out(adj, hw, b, *, apply_sigmoid, tm, tk, out_dtype, vmem):
    n = adj.shape[0]
    f_in = hw.shape[1]
    return pl.pallas_call(
        functools.partial(_gcn_out_kernel, apply_sigmoid),
        grid=(n // tm, n // tk),
        in_specs=[
            pl.BlockSpec((tm, tk), lambda i, k: (i, k)),
            pl.BlockSpec((tk, f_in), lambda i, k: (k, 0)),
            pl.BlockSpec((1, f_in), lambda i, k: (0, 0)),
        ],
        out_specs=pl.BlockSpec((tm, f_in), lambda i, k: (i, 0)),
        out_shape=jax.ShapeDtypeStruct((n, f_in), out_dtype),
        scratch_shapes=[pltpu.VMEM((tm, f_in), jnp.float32)],
        compiler_params=_cparams(("parallel", "arbitrary"), vmem),
    )(adj, hw, b)


def _dot_decoder(t, *, apply_sigmoid, ti, tj, feat, col_index, out_dtype, vmem):
    n = t.shape[0]
    return pl.pallas_call(
        functools.partial(_dot_decoder_kernel, apply_sigmoid),
        grid=(n // ti, n // tj),
        in_specs=[
            pl.BlockSpec((ti, feat), lambda i, j: (i, col_index)),
            pl.BlockSpec((tj, feat), lambda i, j: (j, col_index)),
        ],
        out_specs=pl.BlockSpec((ti, tj), lambda i, j: (i, j)),
        out_shape=jax.ShapeDtypeStruct((n, n), out_dtype),
        compiler_params=_cparams(("parallel", "parallel"), vmem),
    )(t, t)


# =============================== forward pass ===============================

def dominant_forward(x, adj, params, *, sigmoid_s=False, sigmoid_a=False,
                     block_rows=128, block_k=128,
                     mxu_dtype=jnp.float32,
                     vmem_limit_bytes=32 * 1024 * 1024):
    n, in_dim = x.shape
    hid = params["we1"].shape[1]

    # --- pad feature dims to lane-dense multiples of 128, rows to tile multiple
    in_p = _round_up(max(in_dim, 128), 128)
    hid_p = _round_up(max(hid, 128), 128)
    n_p = _round_up(n, math.lcm(block_rows, block_k))

    def pad2(a, r, c):
        return jnp.pad(a, ((0, r - a.shape[0]), (0, c - a.shape[1])))

    cdt = mxu_dtype                       # dtype fed to the MXU / intermediates
    adj_p = pad2(adj, n_p, n_p).astype(cdt)
    x_p = pad2(x, n_p, in_p).astype(cdt)

    we1 = pad2(params["we1"], in_p, hid_p).astype(cdt)
    we2 = pad2(params["we2"], hid_p, hid_p).astype(cdt)
    wa1 = pad2(params["wa1"], hid_p, hid_p).astype(cdt)
    wa2 = pad2(params["wa2"], hid_p, in_p).astype(cdt)
    ws = pad2(params["ws"], hid_p, hid_p).astype(cdt)
    wc = jnp.concatenate([wa1, ws], axis=1)                 # fused [Wa1 | Ws]

    be1 = pad2(params["be1"], 1, hid_p).astype(jnp.float32)
    be2 = pad2(params["be2"], 1, hid_p).astype(jnp.float32)
    ba1 = pad2(params["ba1"], 1, hid_p).astype(jnp.float32)
    ba2 = pad2(params["ba2"], 1, in_p).astype(jnp.float32)
    bs = pad2(params["bs"], 1, hid_p).astype(jnp.float32)
    bc = jnp.concatenate([ba1, bs], axis=1)                 # fused [ba1 | bs]

    tm, tk, vm = block_rows, block_k, vmem_limit_bytes

    # Stage 0:  HW1 = x @ We1
    hw1 = _xform(x_p, we1, apply_relu=False, tm=tm, col_block=in_p,
                 col_index=0, out_dtype=cdt, vmem=vm)
    # Stage 1:  h1 = relu(A@HW1 + be1);   HW2 = h1 @ We2
    hw2 = _gcn_xform(adj_p, hw1, be1, we2, apply_relu=True,
                     tm=tm, tk=tk, out_dtype=cdt, vmem=vm)
    # Stage 2:  emb = A@HW2 + be2;        HW3 = emb @ [Wa1 | Ws]
    hw3 = _gcn_xform(adj_p, hw2, be2, wc, apply_relu=False,
                     tm=tm, tk=tk, out_dtype=cdt, vmem=vm)
    # Stage 3a: t = A@HW3 + [ba1 | bs]   (left half = h2 pre-act, right = hs)
    t = _gcn_out(adj_p, hw3, bc, apply_sigmoid=False,
                 tm=tm, tk=tk, out_dtype=cdt, vmem=vm)
    # Stage 3b: HW4 = relu(t[:, :hid_p]) @ Wa2   (slice done via BlockSpec)
    hw4 = _xform(t, wa2, apply_relu=True, tm=tm, col_block=hid_p,
                 col_index=0, out_dtype=cdt, vmem=vm)
    # Stage 4:  x_rec = A@HW4 + ba2  (+ optional sigmoid_a)
    x_rec = _gcn_out(adj_p, hw4, ba2, apply_sigmoid=sigmoid_a,
                     tm=tm, tk=tk, out_dtype=jnp.float32, vmem=vm)
    # Stage 5:  s_rec = hs @ hs.T  with hs = t[:, hid_p:]  (no transpose)
    # TODO(synk): for huge graphs, emit s_rec in bf16 or fuse the structure
    # reconstruction-error reduction here instead of materializing N x N.
    s_rec = _dot_decoder(t, apply_sigmoid=sigmoid_s, ti=tm, tj=tm,
                         feat=hid_p, col_index=1, out_dtype=jnp.float32, vmem=vm)

    return x_rec[:n, :in_dim], s_rec[:n, :n]


# ============================== plain-JAX glue ==============================

def gcn_norm_adj(edge_index, num_nodes):
    # Dense A_hat = D^{-1/2} (A + I) D^{-1/2}  (GCNConv normalization).
    src, dst = edge_index[0], edge_index[1]
    a = jnp.zeros((num_nodes, num_nodes), jnp.float32)
    a = a.at[dst, src].set(1.0)
    idx = jnp.arange(num_nodes)
    a = a.at[idx, idx].set(1.0)
    deg = a.sum(axis=1)
    dinv = jnp.where(deg > 0, 1.0 / jnp.sqrt(deg), 0.0)
    return dinv[:, None] * a * dinv[None, :]


def init_params(key, in_dim, hid_dim):
    ks = jax.random.split(key, 5)

    def glorot(k, fan_in, fan_out):
        lim = math.sqrt(6.0 / (fan_in + fan_out))
        return jax.random.uniform(k, (fan_in, fan_out), jnp.float32, -lim, lim)

    z = lambda d: jnp.zeros((1, d), jnp.float32)
    return dict(
        we1=glorot(ks[0], in_dim, hid_dim), be1=z(hid_dim),
        we2=glorot(ks[1], hid_dim, hid_dim), be2=z(hid_dim),
        wa1=glorot(ks[2], hid_dim, hid_dim), ba1=z(hid_dim),
        wa2=glorot(ks[3], hid_dim, in_dim), ba2=z(in_dim),
        ws=glorot(ks[4], hid_dim, hid_dim), bs=z(hid_dim),
    )


def _reference(x, adj, p):
    gcn = lambda h, w, b: adj @ (h @ w) + b
    h1 = jnp.maximum(gcn(x, p["we1"], p["be1"]), 0.0)
    emb = gcn(h1, p["we2"], p["be2"])
    h2 = jnp.maximum(gcn(emb, p["wa1"], p["ba1"]), 0.0)
    x_rec = gcn(h2, p["wa2"], p["ba2"])
    hs = gcn(emb, p["ws"], p["bs"])
    return x_rec, hs @ hs.T


if __name__ == "__main__":
    N, IN_DIM, HID_DIM = 256, 16, 32

    key = jax.random.PRNGKey(0)
    kx, ke, kp = jax.random.split(key, 3)

    x = jax.random.normal(kx, (N, IN_DIM), jnp.float32)

    E = 1024
    src = jax.random.randint(ke, (E,), 0, N)
    dst = jax.random.randint(jax.random.fold_in(ke, 1), (E,), 0, N)
    edge_index = jnp.stack([jnp.concatenate([src, dst]),
                            jnp.concatenate([dst, src])], axis=0)

    adj = gcn_norm_adj(edge_index, N)
    params = init_params(kp, IN_DIM, HID_DIM)

    fwd_f32 = jax.jit(lambda x, adj, p: dominant_forward(x, adj, p))
    fwd_bf16 = jax.jit(lambda x, adj, p: dominant_forward(
        x, adj, p, mxu_dtype=jnp.bfloat16))

    x_rec, s_rec = fwd_f32(x, adj, params)
    jax.block_until_ready((x_rec, s_rec))

    x_ref, s_ref = _reference(x, adj, params)
    assert jnp.allclose(x_rec, x_ref, atol=1e-4, rtol=1e-4)
    assert jnp.allclose(s_rec, s_ref, atol=1e-4, rtol=1e-4)

    # Reduced-precision MXU path (bf16 adj / operands, f32 accumulate): run it
    # on hardware and sanity-check it stays close to the f32 reference.
    x_rec_bf, s_rec_bf = fwd_bf16(x, adj, params)
    jax.block_until_ready((x_rec_bf, s_rec_bf))
    assert float(jnp.max(jnp.abs(x_rec_bf - x_ref))) < 0.1
    assert float(jnp.max(jnp.abs(s_rec_bf - s_ref))) < 0.1

    print("KERNEL_OK")
</pallas_src>

<mosaic_0001>
module attributes {stable_mosaic.version = 11 : i64} {
  func.func @_xform_kernel(%arg0: i32, %arg1: memref<128x128xf32, #tpu.memory_space<vmem>>, %arg2: memref<128x128xf32, #tpu.memory_space<vmem>>, %arg3: memref<128x128xf32, #tpu.memory_space<vmem>>) attributes {dimension_semantics = [#tpu.dimension_semantics<parallel>], iteration_bounds = array<i64: 2>, scalar_prefetch = 0 : i64, scratch_operands = 0 : i64, tpu.core_type = #tpu.core_type<tc>, window_params = [{transform_indices = @transform_0, window_bounds = array<i64: 128, 128>}, {pipeline_mode = #tpu.pipeline_mode<synchronous>, transform_indices = @transform_1, window_bounds = array<i64: 128, 128>}, {transform_indices = @transform_2, window_bounds = array<i64: 128, 128>}]} {
    %c0 = arith.constant 0 : index
    %c0_0 = arith.constant 0 : index
    %0 = vector.load %arg1[%c0, %c0_0] : memref<128x128xf32, #tpu.memory_space<vmem>>, vector<128x128xf32>
    %c0_1 = arith.constant 0 : index
    %c0_2 = arith.constant 0 : index
    %1 = vector.load %arg2[%c0_1, %c0_2] : memref<128x128xf32, #tpu.memory_space<vmem>>, vector<128x128xf32>
    %cst = arith.constant dense<0.000000e+00> : vector<128x128xf32>
    %2 = tpu.matmul %0, %1, %cst {dimension_numbers = #tpu.dot_dimension_numbers<[1], [0], [0], [1], [0, 0, 1, 1], [], []>} : vector<128x128xf32>, vector<128x128xf32>, vector<128x128xf32> -> vector<128x128xf32>
    %c0_3 = arith.constant 0 : index
    %c0_4 = arith.constant 0 : index
    %3 = vector.load %arg3[%c0_3, %c0_4] : memref<128x128xf32, #tpu.memory_space<vmem>>, vector<128x128xf32>
    tpu.vector_store %arg3[%c0_3, %c0_4], %2 {strides = array<i32>} : memref<128x128xf32, #tpu.memory_space<vmem>>, vector<128x128xf32>,
    return
  }
  func.func @transform_0(%arg0: i32) -> (i32, i32) {
    %c0_i32 = arith.constant 0 : i32
    %c0_i32_0 = arith.constant 0 : i32
    return %arg0, %c0_i32 : i32, i32
  }
  func.func @transform_1(%arg0: i32) -> (i32, i32) {
    %c0_i32 = arith.constant 0 : i32
    %c0_i32_0 = arith.constant 0 : i32
    %c0_i32_1 = arith.constant 0 : i32
    return %c0_i32, %c0_i32_0 : i32, i32
  }
  func.func @transform_2(%arg0: i32) -> (i32, i32) {
    %c0_i32 = arith.constant 0 : i32
    %c0_i32_0 = arith.constant 0 : i32
    return %arg0, %c0_i32 : i32, i32
  }
}

module attributes {stable_mosaic.version = 11 : i64} {
  func.func @_gcn_xform_kernel(%arg0: i32, %arg1: i32, %arg2: memref<128x128xf32, #tpu.memory_space<vmem>>, %arg3: memref<128x128xf32, #tpu.memory_space<vmem>>, %arg4: memref<1x128xf32, #tpu.memory_space<vmem>>, %arg5: memref<128x128xf32, #tpu.memory_space<vmem>>, %arg6: memref<128x128xf32, #tpu.memory_space<vmem>>, %arg7: memref<128x128xf32, #tpu.memory_space<vmem>>) attributes {dimension_semantics = [#tpu.dimension_semantics<parallel>, #tpu.dimension_semantics<arbitrary>], iteration_bounds = array<i64: 2, 2>, scalar_prefetch = 0 : i64, scratch_operands = 1 : i64, tpu.core_type = #tpu.core_type<tc>, window_params = [{transform_indices = @transform_0, window_bounds = array<i64: 128, 128>}, {transform_indices = @transform_1, window_bounds = array<i64: 128, 128>}, {pipeline_mode = #tpu.pipeline_mode<synchronous>, transform_indices = @transform_2, window_bounds = array<i64: 1, 128>}, {pipeline_mode = #tpu.pipeline_mode<synchronous>, transform_indices = @transform_3, window_bounds = array<i64: 128, 128>}, {transform_indices = @transform_4, window_bounds = array<i64: 128, 128>}]} {
    %c0_i32 = arith.constant 0 : i32
    %0 = arith.cmpi eq, %arg1, %c0_i32 : i32
    %1 = arith.extui %0 : i1 to i32
    %c0_i32_0 = arith.constant 0 : i32
    %2 = arith.cmpi ne, %1, %c0_i32_0 : i32
    scf.if %2 {
      %cst_9 = arith.constant 0.000000e+00 : f32
      %12 = vector.broadcast %cst_9 : f32 to vector<128x128xf32>
      %c0_10 = arith.constant 0 : index
      %c0_11 = arith.constant 0 : index
      %13 = vector.load %arg7[%c0_10, %c0_11] : memref<128x128xf32, #tpu.memory_space<vmem>>, vector<128x128xf32>
      tpu.vector_store %arg7[%c0_10, %c0_11], %12 {strides = array<i32>} : memref<128x128xf32, #tpu.memory_space<vmem>>, vector<128x128xf32>,
    } else {
    }
    %c0 = arith.constant 0 : index
    %c0_1 = arith.constant 0 : index
    %3 = vector.load %arg7[%c0, %c0_1] : memref<128x128xf32, #tpu.memory_space<vmem>>, vector<128x128xf32>
    %c0_2 = arith.constant 0 : index
    %c0_3 = arith.constant 0 : index
    %4 = vector.load %arg2[%c0_2, %c0_3] : memref<128x128xf32, #tpu.memory_space<vmem>>, vector<128x128xf32>
    %c0_4 = arith.constant 0 : index
    %c0_5 = arith.constant 0 : index
    %5 = vector.load %arg3[%c0_4, %c0_5] : memref<128x128xf32, #tpu.memory_space<vmem>>, vector<128x128xf32>
    %cst = arith.constant dense<0.000000e+00> : vector<128x128xf32>
    %6 = tpu.matmul %4, %5, %cst {dimension_numbers = #tpu.dot_dimension_numbers<[1], [0], [0], [1], [0, 0, 1, 1], [], []>} : vector<128x128xf32>, vector<128x128xf32>, vector<128x128xf32> -> vector<128x128xf32>
    %7 = arith.addf %3, %6 : vector<128x128xf32>
    %c0_6 = arith.constant 0 : index
    %c0_7 = arith.constant 0 : index
    %8 = vector.load %arg7[%c0_6, %c0_7] : memref<128x128xf32, #tpu.memory_space<vmem>>, vector<128x128xf32>
    tpu.vector_store %arg7[%c0_6, %c0_7], %7 {strides = array<i32>} : memref<128x128xf32, #tpu.memory_space<vmem>>, vector<128x128xf32>,
    %c1_i32 = arith.constant 1 : i32
    %9 = arith.cmpi eq, %arg1, %c1_i32 : i32
    %10 = arith.extui %9 : i1 to i32
    %c0_i32_8 = arith.constant 0 : i32
    %11 = arith.cmpi ne, %10, %c0_i32_8 : i32
    scf.if %11 {
      %c0_9 = arith.constant 0 : index
      %c0_10 = arith.constant 0 : index
      %12 = vector.load %arg7[%c0_9, %c0_10] : memref<128x128xf32, #tpu.memory_space<vmem>>, vector<128x128xf32>
      %c0_11 = arith.constant 0 : index
      %c0_12 = arith.constant 0 : index
      %13 = vector.load %arg4[%c0_11, %c0_12] : memref<1x128xf32, #tpu.memory_space<vmem>>, vector<1x128xf32>
      %14 = vector.broadcast %13 : vector<1x128xf32> to vector<128x128xf32>
      %15 = arith.addf %12, %14 : vector<128x128xf32>
      %cst_13 = arith.constant 0.000000e+00 : f32
      %16 = vector.broadcast %cst_13 : f32 to vector<128x128xf32>
      %17 = arith.maximumf %15, %16 : vector<128x128xf32>
      %c0_14 = arith.constant 0 : index
      %c0_15 = arith.constant 0 : index
      %18 = vector.load %arg5[%c0_14, %c0_15] : memref<128x128xf32, #tpu.memory_space<vmem>>, vector<128x128xf32>
      %cst_16 = arith.constant dense<0.000000e+00> : vector<128x128xf32>
      %19 = tpu.matmul %17, %18, %cst_16 {dimension_numbers = #tpu.dot_dimension_numbers<[1], [0], [0], [1], [0, 0, 1, 1], [], []>} : vector<128x128xf32>, vector<128x128xf32>, vector<128x128xf32> -> vector<128x128xf32>
      %c0_17 = arith.constant 0 : index
      %c0_18 = arith.constant 0 : index
      %20 = vector.load %arg6[%c0_17, %c0_18] : memref<128x128xf32, #tpu.memory_space<vmem>>, vector<128x128xf32>
      tpu.vector_store %arg6[%c0_17, %c0_18], %19 {strides = array<i32>} : memref<128x128xf32, #tpu.memory_space<vmem>>, vector<128x128xf32>,
    } else {
    }
    return
  }
  func.func @transform_0(%arg0: i32, %arg1: i32) -> (i32, i32) {
    %c0_i32 = arith.constant 0 : i32
    return %arg0, %arg1 : i32, i32
  }
  func.func @transform_1(%arg0: i32, %arg1: i32) -> (i32, i32) {
    %c0_i32 = arith.constant 0 : i32
    %c0_i32_0 = arith.constant 0 : i32
    return %arg1, %c0_i32 : i32, i32
  }
  func.func @transform_2(%arg0: i32, %arg1: i32) -> (i32, i32) {
    %c0_i32 = arith.constant 0 : i32
    %c0_i32_0 = arith.constant 0 : i32
    %c0_i32_1 = arith.constant 0 : i32
    return %c0_i32, %c0_i32_0 : i32, i32
  }
  func.func @transform_3(%arg0: i32, %arg1: i32) -> (i32, i32) {
    %c0_i32 = arith.constant 0 : i32
    %c0_i32_0 = arith.constant 0 : i32
    %c0_i32_1 = arith.constant 0 : i32
    return %c0_i32, %c0_i32_0 : i32, i32
  }
  func.func @transform_4(%arg0: i32, %arg1: i32) -> (i32, i32) {
    %c0_i32 = arith.constant 0 : i32
    %c0_i32_0 = arith.constant 0 : i32
    return %arg0, %c0_i32 : i32, i32
  }
}

module attributes {stable_mosaic.version = 11 : i64} {
  func.func @_gcn_xform_kernel(%arg0: i32, %arg1: i32, %arg2: memref<128x128xf32, #tpu.memory_space<vmem>>, %arg3: memref<128x128xf32, #tpu.memory_space<vmem>>, %arg4: memref<1x128xf32, #tpu.memory_space<vmem>>, %arg5: memref<128x256xf32, #tpu.memory_space<vmem>>, %arg6: memref<128x256xf32, #tpu.memory_space<vmem>>, %arg7: memref<128x128xf32, #tpu.memory_space<vmem>>) attributes {dimension_semantics = [#tpu.dimension_semantics<parallel>, #tpu.dimension_semantics<arbitrary>], iteration_bounds = array<i64: 2, 2>, scalar_prefetch = 0 : i64, scratch_operands = 1 : i64, tpu.core_type = #tpu.core_type<tc>, window_params = [{transform_indices = @transform_0, window_bounds = array<i64: 128, 128>}, {transform_indices = @transform_1, window_bounds = array<i64: 128, 128>}, {pipeline_mode = #tpu.pipeline_mode<synchronous>, transform_indices = @transform_2, window_bounds = array<i64: 1, 128>}, {pipeline_mode = #tpu.pipeline_mode<synchronous>, transform_indices = @transform_3, window_bounds = array<i64: 128, 256>}, {transform_indices = @transform_4, window_bounds = array<i64: 128, 256>}]} {
    %c0_i32 = arith.constant 0 : i32
    %0 = arith.cmpi eq, %arg1, %c0_i32 : i32
    %1 = arith.extui %0 : i1 to i32
    %c0_i32_0 = arith.constant 0 : i32
    %2 = arith.cmpi ne, %1, %c0_i32_0 : i32
    scf.if %2 {
      %cst_9 = arith.constant 0.000000e+00 : f32
      %12 = vector.broadcast %cst_9 : f32 to vector<128x128xf32>
      %c0_10 = arith.constant 0 : index
      %c0_11 = arith.constant 0 : index
      %13 = vector.load %arg7[%c0_10, %c0_11] : memref<128x128xf32, #tpu.memory_space<vmem>>, vector<128x128xf32>
      tpu.vector_store %arg7[%c0_10, %c0_11], %12 {strides = array<i32>} : memref<128x128xf32, #tpu.memory_space<vmem>>, vector<128x128xf32>,
    } else {
    }
    %c0 = arith.constant 0 : index
    %c0_1 = arith.constant 0 : index
    %3 = vector.load %arg7[%c0, %c0_1] : memref<128x128xf32, #tpu.memory_space<vmem>>, vector<128x128xf32>
    %c0_2 = arith.constant 0 : index
    %c0_3 = arith.constant 0 : index
    %4 = vector.load %arg2[%c0_2, %c0_3] : memref<128x128xf32, #tpu.memory_space<vmem>>, vector<128x128xf32>
    %c0_4 = arith.constant 0 : index
    %c0_5 = arith.constant 0 : index
    %5 = vector.load %arg3[%c0_4, %c0_5] : memref<128x128xf32, #tpu.memory_space<vmem>>, vector<128x128xf32>
    %cst = arith.constant dense<0.000000e+00> : vector<128x128xf32>
    %6 = tpu.matmul %4, %5, %cst {dimension_numbers = #tpu.dot_dimension_numbers<[1], [0], [0], [1], [0, 0, 1, 1], [], []>} : vector<128x128xf32>, vector<128x128xf32>, vector<128x128xf32> -> vector<128x128xf32>
    %7 = arith.addf %3, %6 : vector<128x128xf32>
    %c0_6 = arith.constant 0 : index
    %c0_7 = arith.constant 0 : index
    %8 = vector.load %arg7[%c0_6, %c0_7] : memref<128x128xf32, #tpu.memory_space<vmem>>, vector<128x128xf32>
    tpu.vector_store %arg7[%c0_6, %c0_7], %7 {strides = array<i32>} : memref<128x128xf32, #tpu.memory_space<vmem>>, vector<128x128xf32>,
    %c1_i32 = arith.constant 1 : i32
    %9 = arith.cmpi eq, %arg1, %c1_i32 : i32
    %10 = arith.extui %9 : i1 to i32
    %c0_i32_8 = arith.constant 0 : i32
    %11 = arith.cmpi ne, %10, %c0_i32_8 : i32
    scf.if %11 {
      %c0_9 = arith.constant 0 : index
      %c0_10 = arith.constant 0 : index
      %12 = vector.load %arg7[%c0_9, %c0_10] : memref<128x128xf32, #tpu.memory_space<vmem>>, vector<128x128xf32>
      %c0_11 = arith.constant 0 : index
      %c0_12 = arith.constant 0 : index
      %13 = vector.load %arg4[%c0_11, %c0_12] : memref<1x128xf32, #tpu.memory_space<vmem>>, vector<1x128xf32>
      %14 = vector.broadcast %13 : vector<1x128xf32> to vector<128x128xf32>
      %15 = arith.addf %12, %14 : vector<128x128xf32>
      %c0_13 = arith.constant 0 : index
      %c0_14 = arith.constant 0 : index
      %16 = vector.load %arg5[%c0_13, %c0_14] : memref<128x256xf32, #tpu.memory_space<vmem>>, vector<128x256xf32>
      %cst_15 = arith.constant dense<0.000000e+00> : vector<128x256xf32>
      %17 = tpu.matmul %15, %16, %cst_15 {dimension_numbers = #tpu.dot_dimension_numbers<[1], [0], [0], [1], [0, 0, 1, 1], [], []>} : vector<128x128xf32>, vector<128x256xf32>, vector<128x256xf32> -> vector<128x256xf32>
      %c0_16 = arith.constant 0 : index
      %c0_17 = arith.constant 0 : index
      %18 = vector.load %arg6[%c0_16, %c0_17] : memref<128x256xf32, #tpu.memory_space<vmem>>, vector<128x256xf32>
      tpu.vector_store %arg6[%c0_16, %c0_17], %17 {strides = array<i32>} : memref<128x256xf32, #tpu.memory_space<vmem>>, vector<128x256xf32>,
    } else {
    }
    return
  }
  func.func @transform_0(%arg0: i32, %arg1: i32) -> (i32, i32) {
    %c0_i32 = arith.constant 0 : i32
    return %arg0, %arg1 : i32, i32
  }
  func.func @transform_1(%arg0: i32, %arg1: i32) -> (i32, i32) {
    %c0_i32 = arith.constant 0 : i32
    %c0_i32_0 = arith.constant 0 : i32
    return %arg1, %c0_i32 : i32, i32
  }
  func.func @transform_2(%arg0: i32, %arg1: i32) -> (i32, i32) {
    %c0_i32 = arith.constant 0 : i32
    %c0_i32_0 = arith.constant 0 : i32
    %c0_i32_1 = arith.constant 0 : i32
    return %c0_i32, %c0_i32_0 : i32, i32
  }
  func.func @transform_3(%arg0: i32, %arg1: i32) -> (i32, i32) {
    %c0_i32 = arith.constant 0 : i32
    %c0_i32_0 = arith.constant 0 : i32
    %c0_i32_1 = arith.constant 0 : i32
    return %c0_i32, %c0_i32_0 : i32, i32
  }
  func.func @transform_4(%arg0: i32, %arg1: i32) -> (i32, i32) {
    %c0_i32 = arith.constant 0 : i32
    %c0_i32_0 = arith.constant 0 : i32
    return %arg0, %c0_i32 : i32, i32
  }
}

module attributes {stable_mosaic.version = 11 : i64} {
  func.func @_gcn_out_kernel(%arg0: i32, %arg1: i32, %arg2: memref<128x128xf32, #tpu.memory_space<vmem>>, %arg3: memref<128x256xf32, #tpu.memory_space<vmem>>, %arg4: memref<1x256xf32, #tpu.memory_space<vmem>>, %arg5: memref<128x256xf32, #tpu.memory_space<vmem>>, %arg6: memref<128x256xf32, #tpu.memory_space<vmem>>) attributes {dimension_semantics = [#tpu.dimension_semantics<parallel>, #tpu.dimension_semantics<arbitrary>], iteration_bounds = array<i64: 2, 2>, scalar_prefetch = 0 : i64, scratch_operands = 1 : i64, tpu.core_type = #tpu.core_type<tc>, window_params = [{transform_indices = @transform_0, window_bounds = array<i64: 128, 128>}, {transform_indices = @transform_1, window_bounds = array<i64: 128, 256>}, {pipeline_mode = #tpu.pipeline_mode<synchronous>, transform_indices = @transform_2, window_bounds = array<i64: 1, 256>}, {transform_indices = @transform_3, window_bounds = array<i64: 128, 256>}]} {
    %c0_i32 = arith.constant 0 : i32
    %0 = arith.cmpi eq, %arg1, %c0_i32 : i32
    %1 = arith.extui %0 : i1 to i32
    %c0_i32_0 = arith.constant 0 : i32
    %2 = arith.cmpi ne, %1, %c0_i32_0 : i32
    scf.if %2 {
      %cst_9 = arith.constant 0.000000e+00 : f32
      %12 = vector.broadcast %cst_9 : f32 to vector<128x256xf32>
      %c0_10 = arith.constant 0 : index
      %c0_11 = arith.constant 0 : index
      %13 = vector.load %arg6[%c0_10, %c0_11] : memref<128x256xf32, #tpu.memory_space<vmem>>, vector<128x256xf32>
      tpu.vector_store %arg6[%c0_10, %c0_11], %12 {strides = array<i32>} : memref<128x256xf32, #tpu.memory_space<vmem>>, vector<128x256xf32>,
    } else {
    }
    %c0 = arith.constant 0 : index
    %c0_1 = arith.constant 0 : index
    %3 = vector.load %arg6[%c0, %c0_1] : memref<128x256xf32, #tpu.memory_space<vmem>>, vector<128x256xf32>
    %c0_2 = arith.constant 0 : index
    %c0_3 = arith.constant 0 : index
    %4 = vector.load %arg2[%c0_2, %c0_3] : memref<128x128xf32, #tpu.memory_space<vmem>>, vector<128x128xf32>
    %c0_4 = arith.constant 0 : index
    %c0_5 = arith.constant 0 : index
    %5 = vector.load %arg3[%c0_4, %c0_5] : memref<128x256xf32, #tpu.memory_space<vmem>>, vector<128x256xf32>
    %cst = arith.constant dense<0.000000e+00> : vector<128x256xf32>
    %6 = tpu.matmul %4, %5, %cst {dimension_numbers = #tpu.dot_dimension_numbers<[1], [0], [0], [1], [0, 0, 1, 1], [], []>} : vector<128x128xf32>, vector<128x256xf32>, vector<128x256xf32> -> vector<128x256xf32>
    %7 = arith.addf %3, %6 : vector<128x256xf32>
    %c0_6 = arith.constant 0 : index
    %c0_7 = arith.constant 0 : index
    %8 = vector.load %arg6[%c0_6, %c0_7] : memref<128x256xf32, #tpu.memory_space<vmem>>, vector<128x256xf32>
    tpu.vector_store %arg6[%c0_6, %c0_7], %7 {strides = array<i32>} : memref<128x256xf32, #tpu.memory_space<vmem>>, vector<128x256xf32>,
    %c1_i32 = arith.constant 1 : i32
    %9 = arith.cmpi eq, %arg1, %c1_i32 : i32
    %10 = arith.extui %9 : i1 to i32
    %c0_i32_8 = arith.constant 0 : i32
    %11 = arith.cmpi ne, %10, %c0_i32_8 : i32
    scf.if %11 {
      %c0_9 = arith.constant 0 : index
      %c0_10 = arith.constant 0 : index
      %12 = vector.load %arg6[%c0_9, %c0_10] : memref<128x256xf32, #tpu.memory_space<vmem>>, vector<128x256xf32>
      %c0_11 = arith.constant 0 : index
      %c0_12 = arith.constant 0 : index
      %13 = vector.load %arg4[%c0_11, %c0_12] : memref<1x256xf32, #tpu.memory_space<vmem>>, vector<1x256xf32>
      %14 = vector.broadcast %13 : vector<1x256xf32> to vector<128x256xf32>
      %15 = arith.addf %12, %14 : vector<128x256xf32>
      %c0_13 = arith.constant 0 : index
      %c0_14 = arith.constant 0 : index
      %16 = vector.load %arg5[%c0_13, %c0_14] : memref<128x256xf32, #tpu.memory_space<vmem>>, vector<128x256xf32>
      tpu.vector_store %arg5[%c0_13, %c0_14], %15 {strides = array<i32>} : memref<128x256xf32, #tpu.memory_space<vmem>>, vector<128x256xf32>,
    } else {
    }
    return
  }
  func.func @transform_0(%arg0: i32, %arg1: i32) -> (i32, i32) {
    %c0_i32 = arith.constant 0 : i32
    return %arg0, %arg1 : i32, i32
  }
  func.func @transform_1(%arg0: i32, %arg1: i32) -> (i32, i32) {
    %c0_i32 = arith.constant 0 : i32
    %c0_i32_0 = arith.constant 0 : i32
    return %arg1, %c0_i32 : i32, i32
  }
  func.func @transform_2(%arg0: i32, %arg1: i32) -> (i32, i32) {
    %c0_i32 = arith.constant 0 : i32
    %c0_i32_0 = arith.constant 0 : i32
    %c0_i32_1 = arith.constant 0 : i32
    return %c0_i32, %c0_i32_0 : i32, i32
  }
  func.func @transform_3(%arg0: i32, %arg1: i32) -> (i32, i32) {
    %c0_i32 = arith.constant 0 : i32
    %c0_i32_0 = arith.constant 0 : i32
    return %arg0, %c0_i32 : i32, i32
  }
}

module attributes {stable_mosaic.version = 11 : i64} {
  func.func @_xform_kernel(%arg0: i32, %arg1: memref<128x128xf32, #tpu.memory_space<vmem>>, %arg2: memref<128x128xf32, #tpu.memory_space<vmem>>, %arg3: memref<128x128xf32, #tpu.memory_space<vmem>>) attributes {dimension_semantics = [#tpu.dimension_semantics<parallel>], iteration_bounds = array<i64: 2>, scalar_prefetch = 0 : i64, scratch_operands = 0 : i64, tpu.core_type = #tpu.core_type<tc>, window_params = [{transform_indices = @transform_0, window_bounds = array<i64: 128, 128>}, {pipeline_mode = #tpu.pipeline_mode<synchronous>, transform_indices = @transform_1, window_bounds = array<i64: 128, 128>}, {transform_indices = @transform_2, window_bounds = array<i64: 128, 128>}]} {
    %c0 = arith.constant 0 : index
    %c0_0 = arith.constant 0 : index
    %0 = vector.load %arg1[%c0, %c0_0] : memref<128x128xf32, #tpu.memory_space<vmem>>, vector<128x128xf32>
    %cst = arith.constant 0.000000e+00 : f32
    %1 = vector.broadcast %cst : f32 to vector<128x128xf32>
    %2 = arith.maximumf %0, %1 : vector<128x128xf32>
    %c0_1 = arith.constant 0 : index
    %c0_2 = arith.constant 0 : index
    %3 = vector.load %arg2[%c0_1, %c0_2] : memref<128x128xf32, #tpu.memory_space<vmem>>, vector<128x128xf32>
    %cst_3 = arith.constant dense<0.000000e+00> : vector<128x128xf32>
    %4 = tpu.matmul %2, %3, %cst_3 {dimension_numbers = #tpu.dot_dimension_numbers<[1], [0], [0], [1], [0, 0, 1, 1], [], []>} : vector<128x128xf32>, vector<128x128xf32>, vector<128x128xf32> -> vector<128x128xf32>
    %c0_4 = arith.constant 0 : index
    %c0_5 = arith.constant 0 : index
    %5 = vector.load %arg3[%c0_4, %c0_5] : memref<128x128xf32, #tpu.memory_space<vmem>>, vector<128x128xf32>
    tpu.vector_store %arg3[%c0_4, %c0_5], %4 {strides = array<i32>} : memref<128x128xf32, #tpu.memory_space<vmem>>, vector<128x128xf32>,
    return
  }
  func.func @transform_0(%arg0: i32) -> (i32, i32) {
    %c0_i32 = arith.constant 0 : i32
    %c0_i32_0 = arith.constant 0 : i32
    return %arg0, %c0_i32 : i32, i32
  }
  func.func @transform_1(%arg0: i32) -> (i32, i32) {
    %c0_i32 = arith.constant 0 : i32
    %c0_i32_0 = arith.constant 0 : i32
    %c0_i32_1 = arith.constant 0 : i32
    return %c0_i32, %c0_i32_0 : i32, i32
  }
  func.func @transform_2(%arg0: i32) -> (i32, i32) {
    %c0_i32 = arith.constant 0 : i32
    %c0_i32_0 = arith.constant 0 : i32
    return %arg0, %c0_i32 : i32, i32
  }
}

module attributes {stable_mosaic.version = 11 : i64} {
  func.func @_gcn_out_kernel(%arg0: i32, %arg1: i32, %arg2: memref<128x128xf32, #tpu.memory_space<vmem>>, %arg3: memref<128x128xf32, #tpu.memory_space<vmem>>, %arg4: memref<1x128xf32, #tpu.memory_space<vmem>>, %arg5: memref<128x128xf32, #tpu.memory_space<vmem>>, %arg6: memref<128x128xf32, #tpu.memory_space<vmem>>) attributes {dimension_semantics = [#tpu.dimension_semantics<parallel>, #tpu.dimension_semantics<arbitrary>], iteration_bounds = array<i64: 2, 2>, scalar_prefetch = 0 : i64, scratch_operands = 1 : i64, tpu.core_type = #tpu.core_type<tc>, window_params = [{transform_indices = @transform_0, window_bounds = array<i64: 128, 128>}, {transform_indices = @transform_1, window_bounds = array<i64: 128, 128>}, {pipeline_mode = #tpu.pipeline_mode<synchronous>, transform_indices = @transform_2, window_bounds = array<i64: 1, 128>}, {transform_indices = @transform_3, window_bounds = array<i64: 128, 128>}]} {
    %c0_i32 = arith.constant 0 : i32
    %0 = arith.cmpi eq, %arg1, %c0_i32 : i32
    %1 = arith.extui %0 : i1 to i32
    %c0_i32_0 = arith.constant 0 : i32
    %2 = arith.cmpi ne, %1, %c0_i32_0 : i32
    scf.if %2 {
      %cst_9 = arith.constant 0.000000e+00 : f32
      %12 = vector.broadcast %cst_9 : f32 to vector<128x128xf32>
      %c0_10 = arith.constant 0 : index
      %c0_11 = arith.constant 0 : index
      %13 = vector.load %arg6[%c0_10, %c0_11] : memref<128x128xf32, #tpu.memory_space<vmem>>, vector<128x128xf32>
      tpu.vector_store %arg6[%c0_10, %c0_11], %12 {strides = array<i32>} : memref<128x128xf32, #tpu.memory_space<vmem>>, vector<128x128xf32>,
    } else {
    }
    %c0 = arith.constant 0 : index
    %c0_1 = arith.constant 0 : index
    %3 = vector.load %arg6[%c0, %c0_1] : memref<128x128xf32, #tpu.memory_space<vmem>>, vector<128x128xf32>
    %c0_2 = arith.constant 0 : index
    %c0_3 = arith.constant 0 : index
    %4 = vector.load %arg2[%c0_2, %c0_3] : memref<128x128xf32, #tpu.memory_space<vmem>>, vector<128x128xf32>
    %c0_4 = arith.constant 0 : index
    %c0_5 = arith.constant 0 : index
    %5 = vector.load %arg3[%c0_4, %c0_5] : memref<128x128xf32, #tpu.memory_space<vmem>>, vector<128x128xf32>
    %cst = arith.constant dense<0.000000e+00> : vector<128x128xf32>
    %6 = tpu.matmul %4, %5, %cst {dimension_numbers = #tpu.dot_dimension_numbers<[1], [0], [0], [1], [0, 0, 1, 1], [], []>} : vector<128x128xf32>, vector<128x128xf32>, vector<128x128xf32> -> vector<128x128xf32>
    %7 = arith.addf %3, %6 : vector<128x128xf32>
    %c0_6 = arith.constant 0 : index
    %c0_7 = arith.constant 0 : index
    %8 = vector.load %arg6[%c0_6, %c0_7] : memref<128x128xf32, #tpu.memory_space<vmem>>, vector<128x128xf32>
    tpu.vector_store %arg6[%c0_6, %c0_7], %7 {strides = array<i32>} : memref<128x128xf32, #tpu.memory_space<vmem>>, vector<128x128xf32>,
    %c1_i32 = arith.constant 1 : i32
    %9 = arith.cmpi eq, %arg1, %c1_i32 : i32
    %10 = arith.extui %9 : i1 to i32
    %c0_i32_8 = arith.constant 0 : i32
    %11 = arith.cmpi ne, %10, %c0_i32_8 : i32
    scf.if %11 {
      %c0_9 = arith.constant 0 : index
      %c0_10 = arith.constant 0 : index
      %12 = vector.load %arg6[%c0_9, %c0_10] : memref<128x128xf32, #tpu.memory_space<vmem>>, vector<128x128xf32>
      %c0_11 = arith.constant 0 : index
      %c0_12 = arith.constant 0 : index
      %13 = vector.load %arg4[%c0_11, %c0_12] : memref<1x128xf32, #tpu.memory_space<vmem>>, vector<1x128xf32>
      %14 = vector.broadcast %13 : vector<1x128xf32> to vector<128x128xf32>
      %15 = arith.addf %12, %14 : vector<128x128xf32>
      %c0_13 = arith.constant 0 : index
      %c0_14 = arith.constant 0 : index
      %16 = vector.load %arg5[%c0_13, %c0_14] : memref<128x128xf32, #tpu.memory_space<vmem>>, vector<128x128xf32>
      tpu.vector_store %arg5[%c0_13, %c0_14], %15 {strides = array<i32>} : memref<128x128xf32, #tpu.memory_space<vmem>>, vector<128x128xf32>,
    } else {
    }
    return
  }
  func.func @transform_0(%arg0: i32, %arg1: i32) -> (i32, i32) {
    %c0_i32 = arith.constant 0 : i32
    return %arg0, %arg1 : i32, i32
  }
  func.func @transform_1(%arg0: i32, %arg1: i32) -> (i32, i32) {
    %c0_i32 = arith.constant 0 : i32
    %c0_i32_0 = arith.constant 0 : i32
    return %arg1, %c0_i32 : i32, i32
  }
  func.func @transform_2(%arg0: i32, %arg1: i32) -> (i32, i32) {
    %c0_i32 = arith.constant 0 : i32
    %c0_i32_0 = arith.constant 0 : i32
    %c0_i32_1 = arith.constant 0 : i32
    return %c0_i32, %c0_i32_0 : i32, i32
  }
  func.func @transform_3(%arg0: i32, %arg1: i32) -> (i32, i32) {
    %c0_i32 = arith.constant 0 : i32
    %c0_i32_0 = arith.constant 0 : i32
    return %arg0, %c0_i32 : i32, i32
  }
}

module attributes {stable_mosaic.version = 11 : i64} {
  func.func @_dot_decoder_kernel(%arg0: i32, %arg1: i32, %arg2: memref<128x128xf32, #tpu.memory_space<vmem>>, %arg3: memref<128x128xf32, #tpu.memory_space<vmem>>, %arg4: memref<128x128xf32, #tpu.memory_space<vmem>>) attributes {dimension_semantics = [#tpu.dimension_semantics<parallel>, #tpu.dimension_semantics<parallel>], iteration_bounds = array<i64: 2, 2>, scalar_prefetch = 0 : i64, scratch_operands = 0 : i64, tpu.core_type = #tpu.core_type<tc>, window_params = [{transform_indices = @transform_0, window_bounds = array<i64: 128, 128>}, {transform_indices = @transform_1, window_bounds = array<i64: 128, 128>}, {transform_indices = @transform_2, window_bounds = array<i64: 128, 128>}]} {
    %c0 = arith.constant 0 : index
    %c0_0 = arith.constant 0 : index
    %0 = vector.load %arg2[%c0, %c0_0] : memref<128x128xf32, #tpu.memory_space<vmem>>, vector<128x128xf32>
    %c0_1 = arith.constant 0 : index
    %c0_2 = arith.constant 0 : index
    %1 = vector.load %arg3[%c0_1, %c0_2] : memref<128x128xf32, #tpu.memory_space<vmem>>, vector<128x128xf32>
    %cst = arith.constant dense<0.000000e+00> : vector<128x128xf32>
    %2 = tpu.matmul %0, %1, %cst {dimension_numbers = #tpu.dot_dimension_numbers<[1], [1], [0], [0], [0, 0, 1, 0], [], []>} : vector<128x128xf32>, vector<128x128xf32>, vector<128x128xf32> -> vector<128x128xf32>
    %c0_3 = arith.constant 0 : index
    %c0_4 = arith.constant 0 : index
    %3 = vector.load %arg4[%c0_3, %c0_4] : memref<128x128xf32, #tpu.memory_space<vmem>>, vector<128x128xf32>
    tpu.vector_store %arg4[%c0_3, %c0_4], %2 {strides = array<i32>} : memref<128x128xf32, #tpu.memory_space<vmem>>, vector<128x128xf32>,
    return
  }
  func.func @transform_0(%arg0: i32, %arg1: i32) -> (i32, i32) {
    %c1_i32 = arith.constant 1 : i32
    %c0_i32 = arith.constant 0 : i32
    return %arg0, %c1_i32 : i32, i32
  }
  func.func @transform_1(%arg0: i32, %arg1: i32) -> (i32, i32) {
    %c1_i32 = arith.constant 1 : i32
    %c0_i32 = arith.constant 0 : i32
    return %arg1, %c1_i32 : i32, i32
  }
  func.func @transform_2(%arg0: i32, %arg1: i32) -> (i32, i32) {
    %c0_i32 = arith.constant 0 : i32
    return %arg0, %arg1 : i32, i32
  }
}

</mosaic_0001>

<llo_original>
// kernel: _lambda_.7
$region0: #{_lambda_.7}
  #allocation0 [shape = 'u32[]', space=smem, size = 0x4, offset = 0x4, fixed_abs, tag = 'smem constant byte address 0x4 - core index']
  #allocation1 [shape = 'u32[144,128]{1,0:T(1,128)}', space=vmem, size = 0x12000, scoped, tag = 'internal scratch']
  %s0 = inlined_call_operand.vmem [shape: f32[256,128], index: 0, kind: input, shape index: {}]
  %s1 = inlined_call_operand.vmem [shape: f32[128,128], index: 1, kind: input, shape index: {}]
  %s2 = inlined_call_operand.vmem [shape: f32[256,128], index: 2, kind: output, shape index: {}]
  %s3 = sld [smem:[#allocation0]]
  $region41: #{_lambda_.7} parent=0
    _
  %s5 = ssub.s32 1, %s3
  %s6 = scalar_select 0, %s5, %s3
  loop: start=0, step=1, limit=4
  $region2: #{_lambda_.7} parent=0 // loop_pre_header
    _
  $region3: #{_lambda_.7} parent=0 // loop_header
    %s8 = sphi 0, %s12
    %p9 = scmp.ge.s32.totalorder %s8, 4
    %s18 = sphi 0, %s20
    %s21 = sphi 0, %s18
    %s22 = sphi 0, %s21
    %s38 = sphi 0, %s22
    %s42 = sphi 0, %s42
    %s44 = sphi 0, %s42
    %s45 = sphi 0, %s44
    %s59 = sphi 0, %s45
    %s65 = sphi 0, %s67
    %s68 = sphi 0, %s65
    %s69 = sphi 0, %s68
    %s85 = sphi 0, %s69
  $region4: #{_lambda_.7} parent=0 // loop_header_branch
    %11 = sbr.rel (%p9) target = $region8
  $region5: #{_lambda_.7} parent=0 // loop_body
    %s13 = ssub.s32 %s8, 1
    %s14 = ssub.s32 %s8, 2
    %s15 = sadd.s32 %s8, 1
    %s16 = ssub.s32 %s8, %s15
    %p17 = scmp.eq.s32.totalorder %s16, 0
    %s19 = sadd.s32 %s18, 1
    %s20 = scalar_select %p17, %s18, %s19
    %p23 = pneg %p17
    %p24 = scmp.eq.s32.totalorder %s8, 1
    %p25 = por %p23, %p24
    %p26 = scmp.ne.s32.totalorder %s18, %s21
    %p27 = scmp.eq.s32.totalorder %s8, 0
    %p28 = por %p26, %p27
    %p29 = scmp.ne.s32.totalorder %s18, %s21
    %p30 = scmp.eq.s32.totalorder %s13, 1
    %p31 = por %p29, %p30
    %p32 = scmp.ne.s32.totalorder %s21, %s22
    %p33 = scmp.eq.s32.totalorder %s13, 0
    %p34 = por %p32, %p33
    %p35 = scmp.ne.s32.totalorder %s21, %s22
    %p36 = scmp.eq.s32.totalorder %s14, 1
    %p37 = por %p35, %p36
    %p39 = scmp.ne.s32.totalorder %s22, %s38
    %p40 = scmp.eq.s32.totalorder %s14, 0
    %p41 = por %p39, %p40
    %s43 = sadd.s32 %s42, 1
    %p46 = scmp.eq.s32.totalorder %s8, 1
    %p47 = scmp.ne.s32.totalorder %s42, %s44
    %p48 = scmp.eq.s32.totalorder %s8, 0
    %p49 = por %p47, %p48
    %p50 = scmp.ne.s32.totalorder %s42, %s44
    %p51 = scmp.eq.s32.totalorder %s13, 1
    %p52 = por %p50, %p51
    %p53 = scmp.ne.s32.totalorder %s44, %s45
    %p54 = scmp.eq.s32.totalorder %s13, 0
    %p55 = por %p53, %p54
    %p56 = scmp.ne.s32.totalorder %s44, %s45
    %p57 = scmp.eq.s32.totalorder %s14, 1
    %p58 = por %p56, %p57
    %p60 = scmp.ne.s32.totalorder %s45, %s59
    %p61 = scmp.eq.s32.totalorder %s14, 0
    %p62 = por %p60, %p61
    %s63 = ssub.s32 %s8, %s15
    %p64 = scmp.eq.s32.totalorder %s63, 0
    %s66 = sadd.s32 %s65, 1
    %s67 = scalar_select %p64, %s65, %s66
    %p70 = pneg %p64
    %p71 = scmp.eq.s32.totalorder %s8, 1
    %p72 = por %p70, %p71
    %p73 = scmp.ne.s32.totalorder %s65, %s68
    %p74 = scmp.eq.s32.totalorder %s8, 0
    %p75 = por %p73, %p74
    %p76 = scmp.ne.s32.totalorder %s65, %s68
    %p77 = scmp.eq.s32.totalorder %s13, 1
    %p78 = por %p76, %p77
    %p79 = scmp.ne.s32.totalorder %s68, %s69
    %p80 = scmp.eq.s32.totalorder %s13, 0
    %p81 = por %p79, %p80
    %p82 = scmp.ne.s32.totalorder %s68, %s69
    %p83 = scmp.eq.s32.totalorder %s14, 1
    %p84 = por %p82, %p83
    %p86 = scmp.ne.s32.totalorder %s69, %s85
    %p87 = scmp.eq.s32.totalorder %s14, 0
    %p88 = por %p86, %p87
    %p89 = scmp.le.s32.totalorder 1, %s8
    %p90 = scmp.lt.s32.totalorder %s8, 3
    %p91 = pnand %p89, %p90
    %p92 = pneg %p91
    // Predicated region
    $region9: #{_lambda_.7} parent=5 // pred_check
      _
    $region10: #{_lambda_.7} parent=5 // pred_check_branch
      %94 = sbr.rel (%p91) target = $region12
    $region11: #{_lambda_.7} parent=5 // pred_region
      %s95 = ssub.s32 %s8, 1
      // Predicated region
      $region13: #{_lambda_.7} parent=11 // pred_check
        %p96 = pneg %p55
      $region14: #{_lambda_.7} parent=11 // pred_check_branch
        %98 = sbr.rel (%p96) target = $region16
      $region15: #{_lambda_.7} parent=11 // pred_region
        _
      $region16: #{_lambda_.7} parent=11 // pred_fallthru
        _
    $region12: #{_lambda_.7} parent=5 // pred_fallthru
      _
    %p99 = scmp.lt.s32.totalorder %s8, 2
    // Predicated region
    $region17: #{_lambda_.7} parent=5 // pred_check
      %p100 = pneg %p99
    $region18: #{_lambda_.7} parent=5 // pred_check_branch
      %102 = sbr.rel (%p100) target = $region20
    $region19: #{_lambda_.7} parent=5 // pred_region
      // Predicated region
      $region21: #{_lambda_.7} parent=19 // pred_check
        %p103 = pneg %p28
      $region22: #{_lambda_.7} parent=19 // pred_check_branch
        %105 = sbr.rel (%p103) target = $region24
      $region23: #{_lambda_.7} parent=19 // pred_region
        %s106 = smul.u32 16, %s8
        %p107 = scmp.lt.s32.totalorder %s106, 31
        %s108 = scalar_select %p107, %s106, 31
        %s109 = smul.addr %s108, 8
        %s110 = scalar_lea.vmem %s0, %s109
        %s111 = smul.u32 16, %s8
      $region24: #{_lambda_.7} parent=19 // pred_fallthru
        _
    $region20: #{_lambda_.7} parent=5 // pred_fallthru
      _
    %p112 = scmp.le.s32.totalorder 1, %s8
    %p113 = scmp.lt.s32.totalorder %s8, 3
    %p114 = pnand %p112, %p113
    %p115 = pneg %p114
    // Predicated region
    $region25: #{_lambda_.7} parent=5 // pred_check
      _
    $region26: #{_lambda_.7} parent=5 // pred_check_branch
      %117 = sbr.rel (%p114) target = $region28
    $region27: #{_lambda_.7} parent=5 // pred_region
      %s118 = ssub.s32 %s8, 1
      %s119 = smul.u32 16, %s13
      %p120 = scmp.lt.s32.totalorder %s119, 31
      %s121 = scalar_select %p120, %s119, 31
      %s122 = smul.addr %s121, 8
      %s123 = scalar_lea.vmem %s0, %s122
      %p124 = pneg %p34
      %p125 = pneg %p31
      %p126 = pneg %p55
      %p127 = pneg %p52
      %p128 = pneg %p81
      %p129 = pneg %p78
      %s130 = smul.u32 16, %s13
      %p131 = scmp.lt.s32.totalorder %s130, 31
      %s132 = scalar_select %p131, %s130, 31
      %s133 = smul.addr %s132, 8
      %s134 = scalar_lea.vmem %s2, %s133
      %s135 = smul.u32 16, %s13
      %p136 = scmp.lt.s32.totalorder %s135, 31
      %s137 = scalar_select %p136, %s135, 31
      %s138 = smul.addr %s137, 8
      %s139 = scalar_lea.vmem %s0, %s138
      %s140 = smul.u32 16, %s13
      %s141 = smul.u32 16, %s13
      %p142 = scmp.lt.s32.totalorder %s141, 31
      %s143 = scalar_select %p142, %s141, 31
      %s144 = smul.addr %s143, 8
      %s145 = scalar_lea.vmem %s2, %s144
      %s146 = smul.u32 16, %s13
      %v147 = vld [vmem:[%s139] sm:$0xff]
      %v148 = vld [vmem:[%s139 + $0x8] sm:$0xff]
      %v149 = vld [vmem:[%s139 + $0x10] sm:$0xff]
      %v150 = vld [vmem:[%s139 + $0x18] sm:$0xff]
      %v151 = vld [vmem:[%s139 + $0x20] sm:$0xff]
      %v152 = vld [vmem:[%s139 + $0x28] sm:$0xff]
      %v153 = vld [vmem:[%s139 + $0x30] sm:$0xff]
      %v154 = vld [vmem:[%s139 + $0x38] sm:$0xff]
      %v155 = vld [vmem:[%s139 + $0x40] sm:$0xff]
      %v156 = vld [vmem:[%s139 + $0x48] sm:$0xff]
      %v157 = vld [vmem:[%s139 + $0x50] sm:$0xff]
      %v158 = vld [vmem:[%s139 + $0x58] sm:$0xff]
      %v159 = vld [vmem:[%s139 + $0x60] sm:$0xff]
      %v160 = vld [vmem:[%s139 + $0x68] sm:$0xff]
      %v161 = vld [vmem:[%s139 + $0x70] sm:$0xff]
      %v162 = vld [vmem:[%s139 + $0x78] sm:$0xff]
      %v163 = vld [vmem:[%s1] sm:$0xff]
      %v164 = vld [vmem:[%s1 + $0x8] sm:$0xff]
      %v165 = vld [vmem:[%s1 + $0x10] sm:$0xff]
      %v166 = vld [vmem:[%s1 + $0x18] sm:$0xff]
      %v167 = vld [vmem:[%s1 + $0x20] sm:$0xff]
      %v168 = vld [vmem:[%s1 + $0x28] sm:$0xff]
      %v169 = vld [vmem:[%s1 + $0x30] sm:$0xff]
      %v170 = vld [vmem:[%s1 + $0x38] sm:$0xff]
      %v171 = vld [vmem:[%s1 + $0x40] sm:$0xff]
      %v172 = vld [vmem:[%s1 + $0x48] sm:$0xff]
      %v173 = vld [vmem:[%s1 + $0x50] sm:$0xff]
      %v174 = vld [vmem:[%s1 + $0x58] sm:$0xff]
      %v175 = vld [vmem:[%s1 + $0x60] sm:$0xff]
      %v176 = vld [vmem:[%s1 + $0x68] sm:$0xff]
      %v177 = vld [vmem:[%s1 + $0x70] sm:$0xff]
      %v178 = vld [vmem:[%s1 + $0x78] sm:$0xff]
      %179 = vmatprep.subr.mxu0 0.0
      %180 = vmatpush1.msra.mxu0 %v163
      %181 = vmatprep.subr.mxu0 0.0
      %182 = vmatpush1.msra.mxu0 %v164
      %183 = vmatprep.subr.mxu0 0.0
      %184 = vmatpush1.msra.mxu0 %v165
      %185 = vmatprep.subr.mxu0 0.0
      %186 = vmatpush1.msra.mxu0 %v166
      %187 = vmatprep.subr.mxu0 0.0
      %188 = vmatpush1.msra.mxu0 %v167
      %189 = vmatprep.subr.mxu0 0.0
      %190 = vmatpush1.msra.mxu0 %v168
      %191 = vmatprep.subr.mxu0 0.0
      %192 = vmatpush1.msra.mxu0 %v169
      %193 = vmatprep.subr.mxu0 0.0
      %194 = vmatpush1.msra.mxu0 %v170
      %195 = vmatprep.subr.mxu0 0.0
      %196 = vmatpush1.msra.mxu0 %v171
      %197 = vmatprep.subr.mxu0 0.0
      %198 = vmatpush1.msra.mxu0 %v172
      %199 = vmatprep.subr.mxu0 0.0
      %200 = vmatpush1.msra.mxu0 %v173
      %201 = vmatprep.subr.mxu0 0.0
      %202 = vmatpush1.msra.mxu0 %v174
      %203 = vmatprep.subr.mxu0 0.0
      %204 = vmatpush1.msra.mxu0 %v175
      %205 = vmatprep.subr.mxu0 0.0
      %206 = vmatpush1.msra.mxu0 %v176
      %207 = vmatprep.subr.mxu0 0.0
      %208 = vmatpush1.msra.mxu0 %v177
      %209 = vmatprep.subr.mxu0 0.0
      %210 = vmatpush1.msra.mxu0 %v178
      %211 = vmatprep.subr.mxu0 0.0
      %212 = vmatpush1.msra.mxu0 0.0
      %213 = vmatprep.subr.mxu0 0.0
      %214 = vmatpush1.msra.mxu0 0.0
      %215 = vmatprep.subr.mxu0 0.0
      %216 = vmatpush1.msra.mxu0 0.0
      %217 = vmatprep.subr.mxu0 0.0
      %218 = vmatpush1.msra.mxu0 0.0
      %219 = vmatprep.subr.mxu0 0.0
      %220 = vmatpush1.msra.mxu0 0.0
      %221 = vmatprep.subr.mxu0 0.0
      %222 = vmatpush1.msra.mxu0 0.0
      %223 = vmatprep.subr.mxu0 0.0
      %224 = vmatpush1.msra.mxu0 0.0
      %225 = vmatprep.subr.mxu0 0.0
      %226 = vmatpush1.msra.mxu0 0.0
      %227 = vmatprep.subr.mxu0 0.0
      %228 = vmatpush1.msra.mxu0 0.0
      %229 = vmatprep.subr.mxu0 0.0
      %230 = vmatpush1.msra.mxu0 0.0
      %231 = vmatprep.subr.mxu0 0.0
      %232 = vmatpush1.msra.mxu0 0.0
      %233 = vmatprep.subr.mxu0 0.0
      %234 = vmatpush1.msra.mxu0 0.0
      %235 = vmatprep.subr.mxu0 0.0
      %236 = vmatpush1.msra.mxu0 0.0
      %237 = vmatprep.subr.mxu0 0.0
      %238 = vmatpush1.msra.mxu0 0.0
      %239 = vmatprep.subr.mxu0 0.0
      %240 = vmatpush1.msra.mxu0 0.0
      %241 = vmatprep.subr.mxu0 0.0
      %242 = vmatpush1.msra.mxu0 0.0
      %243 = vmatprep.mubr.f32.mxu0 0.0
      %244 = vmatmul.mubr.f32.gmra.mrb[0].mxu0 %v147
      %v245 = vpop.f32.mrb[0].mxu0
      %v246 = vadd.f32 0.0, %v245
      %v247 = vpop.f32.mrb[0].mxu0
      %248 = vmatprep.mubr.f32.mxu0 0.0
      %249 = vmatmul.mubr.f32.gmra.mrb[0].mxu0 %v148
      %v250 = vpop.f32.mrb[0].mxu0
      %v251 = vadd.f32 0.0, %v250
      %v252 = vpop.f32.mrb[0].mxu0
      %253 = vmatprep.mubr.f32.mxu0 0.0
      %254 = vmatmul.mubr.f32.gmra.mrb[0].mxu0 %v149
      %v255 = vpop.f32.mrb[0].mxu0
      %v256 = vadd.f32 0.0, %v255
      %v257 = vpop.f32.mrb[0].mxu0
      %258 = vmatprep.mubr.f32.mxu0 0.0
      %259 = vmatmul.mubr.f32.gmra.mrb[0].mxu0 %v150
      %v260 = vpop.f32.mrb[0].mxu0
      %v261 = vadd.f32 0.0, %v260
      %v262 = vpop.f32.mrb[0].mxu0
      %263 = vmatprep.mubr.f32.mxu0 0.0
      %264 = vmatmul.mubr.f32.gmra.mrb[0].mxu0 %v151
      %v265 = vpop.f32.mrb[0].mxu0
      %v266 = vadd.f32 0.0, %v265
      %v267 = vpop.f32.mrb[0].mxu0
      %268 = vmatprep.mubr.f32.mxu0 0.0
      %269 = vmatmul.mubr.f32.gmra.mrb[0].mxu0 %v152
      %v270 = vpop.f32.mrb[0].mxu0
      %v271 = vadd.f32 0.0, %v270
      %v272 = vpop.f32.mrb[0].mxu0
      %273 = vmatprep.mubr.f32.mxu0 0.0
      %274 = vmatmul.mubr.f32.gmra.mrb[0].mxu0 %v153
      %v275 = vpop.f32.mrb[0].mxu0
      %v276 = vadd.f32 0.0, %v275
      %v277 = vpop.f32.mrb[0].mxu0
      %278 = vmatprep.mubr.f32.mxu0 0.0
      %279 = vmatmul.mubr.f32.gmra.mrb[0].mxu0 %v154
      %v280 = vpop.f32.mrb[0].mxu0
      %v281 = vadd.f32 0.0, %v280
      %v282 = vpop.f32.mrb[0].mxu0
      %283 = vmatprep.mubr.f32.mxu0 0.0
      %284 = vmatmul.mubr.f32.gmra.mrb[0].mxu0 %v155
      %v285 = vpop.f32.mrb[0].mxu0
      %v286 = vadd.f32 0.0, %v285
      %v287 = vpop.f32.mrb[0].mxu0
      %288 = vmatprep.mubr.f32.mxu0 0.0
      %289 = vmatmul.mubr.f32.gmra.mrb[0].mxu0 %v156
      %v290 = vpop.f32.mrb[0].mxu0
      %v291 = vadd.f32 0.0, %v290
      %v292 = vpop.f32.mrb[0].mxu0
      %293 = vmatprep.mubr.f32.mxu0 0.0
      %294 = vmatmul.mubr.f32.gmra.mrb[0].mxu0 %v157
      %v295 = vpop.f32.mrb[0].mxu0
      %v296 = vadd.f32 0.0, %v295
      %v297 = vpop.f32.mrb[0].mxu0
      %298 = vmatprep.mubr.f32.mxu0 0.0
      %299 = vmatmul.mubr.f32.gmra.mrb[0].mxu0 %v158
      %v300 = vpop.f32.mrb[0].mxu0
      %v301 = vadd.f32 0.0, %v300
      %v302 = vpop.f32.mrb[0].mxu0
      %303 = vmatprep.mubr.f32.mxu0 0.0
      %304 = vmatmul.mubr.f32.gmra.mrb[0].mxu0 %v159
      %v305 = vpop.f32.mrb[0].mxu0
      %v306 = vadd.f32 0.0, %v305
      %v307 = vpop.f32.mrb[0].mxu0
      %308 = vmatprep.mubr.f32.mxu0 0.0
      %309 = vmatmul.mubr.f32.gmra.mrb[0].mxu0 %v160
      %v310 = vpop.f32.mrb[0].mxu0
      %v311 = vadd.f32 0.0, %v310
      %v312 = vpop.f32.mrb[0].mxu0
      %313 = vmatprep.mubr.f32.mxu0 0.0
      %314 = vmatmul.mubr.f32.gmra.mrb[0].mxu0 %v161
      %v315 = vpop.f32.mrb[0].mxu0
      %v316 = vadd.f32 0.0, %v315
      %v317 = vpop.f32.mrb[0].mxu0
      %318 = vmatprep.mubr.f32.mxu0 0.0
      %319 = vmatmul.mubr.f32.gmra.mrb[0].mxu0 %v162
      %v320 = vpop.f32.mrb[0].mxu0
      %v321 = vadd.f32 0.0, %v320
      %v322 = vpop.f32.mrb[0].mxu0
      %323 = vdwg.mxu0
      %324 = vst [vmem:[%s145] sm:$0xff] %v246
      %325 = vst [vmem:[%s145 + $0x8] sm:$0xff] %v251
      %326 = vst [vmem:[%s145 + $0x10] sm:$0xff] %v256
      %327 = vst [vmem:[%s145 + $0x18] sm:$0xff] %v261
      %328 = vst [vmem:[%s145 + $0x20] sm:$0xff] %v266
      %329 = vst [vmem:[%s145 + $0x28] sm:$0xff] %v271
      %330 = vst [vmem:[%s145 + $0x30] sm:$0xff] %v276
      %331 = vst [vmem:[%s145 + $0x38] sm:$0xff] %v281
      %332 = vst [vmem:[%s145 + $0x40] sm:$0xff] %v286
      %333 = vst [vmem:[%s145 + $0x48] sm:$0xff] %v291
      %334 = vst [vmem:[%s145 + $0x50] sm:$0xff] %v296
      %335 = vst [vmem:[%s145 + $0x58] sm:$0xff] %v301
      %336 = vst [vmem:[%s145 + $0x60] sm:$0xff] %v306
      %337 = vst [vmem:[%s145 + $0x68] sm:$0xff] %v311
      %338 = vst [vmem:[%s145 + $0x70] sm:$0xff] %v316
      %339 = vst [vmem:[%s145 + $0x78] sm:$0xff] %v321
      %s340 = smul.u32 16, %s13
      %p341 = scmp.lt.s32.totalorder %s340, 31
      %s342 = scalar_select %p341, %s340, 31
      %s343 = smul.addr %s342, 8
      %s344 = scalar_lea.vmem %s2, %s343
      // Predicated region
      $region29: #{_lambda_.7} parent=27 // pred_check
        %p345 = pneg %p78
      $region30: #{_lambda_.7} parent=27 // pred_check_branch
        %347 = sbr.rel (%p345) target = $region32
      $region31: #{_lambda_.7} parent=27 // pred_region
        %s348 = smul.u32 16, %s13
      $region32: #{_lambda_.7} parent=27 // pred_fallthru
        _
    $region28: #{_lambda_.7} parent=5 // pred_fallthru
      _
    %p349 = scmp.le.s32.totalorder 2, %s8
    // Predicated region
    $region33: #{_lambda_.7} parent=5 // pred_check
      %p350 = pneg %p349
    $region34: #{_lambda_.7} parent=5 // pred_check_branch
      %352 = sbr.rel (%p350) target = $region36
    $region35: #{_lambda_.7} parent=5 // pred_region
      %s353 = ssub.s32 %s8, 2
      // Predicated region
      $region37: #{_lambda_.7} parent=35 // pred_check
        %p354 = pneg %p84
      $region38: #{_lambda_.7} parent=35 // pred_check_branch
        %356 = sbr.rel (%p354) target = $region40
      $region39: #{_lambda_.7} parent=35 // pred_region
        %s357 = smul.u32 16, %s14
        %p358 = scmp.lt.s32.totalorder %s357, 31
        %s359 = scalar_select %p358, %s357, 31
        %s360 = smul.addr %s359, 8
        %s361 = scalar_lea.vmem %s2, %s360
      $region40: #{_lambda_.7} parent=35 // pred_fallthru
        _
    $region36: #{_lambda_.7} parent=5 // pred_fallthru
      _
  $region6: #{_lambda_.7} parent=0 // loop_footer
    %s12 = sadd.s32 1, %s8
  $region7: #{_lambda_.7} parent=0 // loop_footer_branch
    %7 = sbr.rel target = $region3
  $region8: #{_lambda_.7} parent=0 // loop_exit
    _

// kernel: _lambda_.8
$region0: #{_lambda_.8}
  #allocation0 [shape = 'u32[]', space=smem, size = 0x4, offset = 0x4, fixed_abs, tag = 'smem constant byte address 0x4 - core index']
  #allocation1 [shape = 'u32[144,128]{1,0:T(1,128)}', space=vmem, size = 0x12000, scoped, tag = 'internal scratch']
  #allocation2 [shape = 'f32[128,128]{1,0:T(8,128)}', space=vmem, size = 0x10000, scoped, tag = 'scratch operand']
  %s0 = inlined_call_operand.vmem [shape: f32[256,256], index: 0, kind: input, shape index: {}]
  %s1 = inlined_call_operand.vmem [shape: f32[256,128], index: 1, kind: input, shape index: {}]
  %s2 = inlined_call_operand.vmem [shape: f32[1,128], index: 2, kind: input, shape index: {}]
  %s3 = inlined_call_operand.vmem [shape: f32[128,128], index: 3, kind: input, shape index: {}]
  %s4 = inlined_call_operand.vmem [shape: f32[256,128], index: 4, kind: output, shape index: {}]
  %s5 = sld [smem:[#allocation0]]
  $region95: #{_lambda_.8} parent=0
    _
  %s7 = ssub.s32 1, %s5
  %s8 = scalar_select 0, %s7, %s5
  $region1: #{_lambda_.8} parent=0
    #allocation3 [shape = 'u8[131072]{0}', space=vmem, size = 0x20000, scoped, tag = 'input window, operand 0']
    loop: start=0, step=1, limit=6
    $region2: #{_lambda_.8} parent=1 // loop_pre_header
      _
    $region3: #{_lambda_.8} parent=1 // loop_header
      %s10 = sphi 0, %s14
      %p11 = scmp.ge.s32.totalorder %s10, 6
      %s17 = sphi 0, %s29
      %s18 = sphi 0, %s25
      %s19 = sphi 0, %s17
      %s20 = sphi 0, %s18
      %s21 = sphi 0, %s19
      %s22 = sphi 0, %s20
      %s34 = sphi 0, %s36
      %s37 = sphi 0, %s34
      %s38 = sphi 0, %s37
      %s54 = sphi 0, %s38
      %s60 = sphi 0, %s62
      %s63 = sphi 0, %s60
      %s64 = sphi 0, %s63
      %s80 = sphi 0, %s64
      %s84 = sphi 0, %s84
      %s86 = sphi 0, %s84
      %s87 = sphi 0, %s86
      %s101 = sphi 0, %s87
      %s105 = sphi 0, %s105
      %s107 = sphi 0, %s105
      %s108 = sphi 0, %s107
      %s122 = sphi 0, %s108
      %s128 = sphi 0, %s130
      %s131 = sphi 0, %s128
      %s132 = sphi 0, %s131
      %s148 = sphi 0, %s132
    $region4: #{_lambda_.8} parent=1 // loop_header_branch
      %13 = sbr.rel (%p11) target = $region8
    $region5: #{_lambda_.8} parent=1 // loop_body
      %s15 = ssub.s32 %s10, 1
      %s16 = ssub.s32 %s10, 2
      %s23 = sadd.s32 1, %s18
      %p24 = scmp.ge.s32.totalorder %s23, 2
      %s25 = scalar_select %p24, 0, %s23
      %s26 = sadd.s32 1, %s17
      %s27 = scalar_select %p24, %s26, %s17
      %p28 = scmp.ge.s32.totalorder %s27, 2
      %s29 = scalar_select %p28, 0, %s27
      %s30 = ssub.s32 %s17, %s29
      %s31 = ssub.s32 %s18, %s25
      %s32 = sor.u32 %s30, %s31
      %p33 = scmp.eq.s32.totalorder %s32, 0
      %s35 = sadd.s32 %s34, 1
      %s36 = scalar_select %p33, %s34, %s35
      %p39 = pneg %p33
      %p40 = scmp.eq.s32.totalorder %s10, 3
      %p41 = por %p39, %p40
      %p42 = scmp.ne.s32.totalorder %s34, %s37
      %p43 = scmp.eq.s32.totalorder %s10, 0
      %p44 = por %p42, %p43
      %p45 = scmp.ne.s32.totalorder %s34, %s37
      %p46 = scmp.eq.s32.totalorder %s15, 3
      %p47 = por %p45, %p46
      %p48 = scmp.ne.s32.totalorder %s37, %s38
      %p49 = scmp.eq.s32.totalorder %s15, 0
      %p50 = por %p48, %p49
      %p51 = scmp.ne.s32.totalorder %s37, %s38
      %p52 = scmp.eq.s32.totalorder %s16, 3
      %p53 = por %p51, %p52
      %p55 = scmp.ne.s32.totalorder %s38, %s54
      %p56 = scmp.eq.s32.totalorder %s16, 0
      %p57 = por %p55, %p56
      %s58 = ssub.s32 %s18, %s25
      %p59 = scmp.eq.s32.totalorder %s58, 0
      %s61 = sadd.s32 %s60, 1
      %s62 = scalar_select %p59, %s60, %s61
      %p65 = pneg %p59
      %p66 = scmp.eq.s32.totalorder %s10, 3
      %p67 = por %p65, %p66
      %p68 = scmp.ne.s32.totalorder %s60, %s63
      %p69 = scmp.eq.s32.totalorder %s10, 0
      %p70 = por %p68, %p69
      %p71 = scmp.ne.s32.totalorder %s60, %s63
      %p72 = scmp.eq.s32.totalorder %s15, 3
      %p73 = por %p71, %p72
      %p74 = scmp.ne.s32.totalorder %s63, %s64
      %p75 = scmp.eq.s32.totalorder %s15, 0
      %p76 = por %p74, %p75
      %p77 = scmp.ne.s32.totalorder %s63, %s64
      %p78 = scmp.eq.s32.totalorder %s16, 3
      %p79 = por %p77, %p78
      %p81 = scmp.ne.s32.totalorder %s64, %s80
      %p82 = scmp.eq.s32.totalorder %s16, 0
      %p83 = por %p81, %p82
      %s85 = sadd.s32 %s84, 1
      %p88 = scmp.eq.s32.totalorder %s10, 3
      %p89 = scmp.ne.s32.totalorder %s84, %s86
      %p90 = scmp.eq.s32.totalorder %s10, 0
      %p91 = por %p89, %p90
      %p92 = scmp.ne.s32.totalorder %s84, %s86
      %p93 = scmp.eq.s32.totalorder %s15, 3
      %p94 = por %p92, %p93
      %p95 = scmp.ne.s32.totalorder %s86, %s87
      %p96 = scmp.eq.s32.totalorder %s15, 0
      %p97 = por %p95, %p96
      %p98 = scmp.ne.s32.totalorder %s86, %s87
      %p99 = scmp.eq.s32.totalorder %s16, 3
      %p100 = por %p98, %p99
      %p102 = scmp.ne.s32.totalorder %s87, %s101
      %p103 = scmp.eq.s32.totalorder %s16, 0
      %p104 = por %p102, %p103
      %s106 = sadd.s32 %s105, 1
      %p109 = scmp.eq.s32.totalorder %s10, 3
      %p110 = scmp.ne.s32.totalorder %s105, %s107
      %p111 = scmp.eq.s32.totalorder %s10, 0
      %p112 = por %p110, %p111
      %p113 = scmp.ne.s32.totalorder %s105, %s107
      %p114 = scmp.eq.s32.totalorder %s15, 3
      %p115 = por %p113, %p114
      %p116 = scmp.ne.s32.totalorder %s107, %s108
      %p117 = scmp.eq.s32.totalorder %s15, 0
      %p118 = por %p116, %p117
      %p119 = scmp.ne.s32.totalorder %s107, %s108
      %p120 = scmp.eq.s32.totalorder %s16, 3
      %p121 = por %p119, %p120
      %p123 = scmp.ne.s32.totalorder %s108, %s122
      %p124 = scmp.eq.s32.totalorder %s16, 0
      %p125 = por %p123, %p124
      %s126 = ssub.s32 %s17, %s29
      %p127 = scmp.eq.s32.totalorder %s126, 0
      %s129 = sadd.s32 %s128, 1
      %s130 = scalar_select %p127, %s128, %s129
      %p133 = pneg %p127
      %p134 = scmp.eq.s32.totalorder %s10, 3
      %p135 = por %p133, %p134
      %p136 = scmp.ne.s32.totalorder %s128, %s131
      %p137 = scmp.eq.s32.totalorder %s10, 0
      %p138 = por %p136, %p137
      %p139 = scmp.ne.s32.totalorder %s128, %s131
      %p140 = scmp.eq.s32.totalorder %s15, 3
      %p141 = por %p139, %p140
      %p142 = scmp.ne.s32.totalorder %s131, %s132
      %p143 = scmp.eq.s32.totalorder %s15, 0
      %p144 = por %p142, %p143
      %p145 = scmp.ne.s32.totalorder %s131, %s132
      %p146 = scmp.eq.s32.totalorder %s16, 3
      %p147 = por %p145, %p146
      %p149 = scmp.ne.s32.totalorder %s132, %s148
      %p150 = scmp.eq.s32.totalorder %s16, 0
      %p151 = por %p149, %p150
      %p152 = scmp.le.s32.totalorder 1, %s10
      %p153 = scmp.lt.s32.totalorder %s10, 5
      %p154 = pnand %p152, %p153
      %p155 = pneg %p154
      // Predicated region
      $region9: #{_lambda_.8} parent=5 // pred_check
        _
      $region10: #{_lambda_.8} parent=5 // pred_check_branch
        %157 = sbr.rel (%p154) target = $region12
      $region11: #{_lambda_.8} parent=5 // pred_region
        %s158 = ssub.s32 %s10, 1
        // Predicated region
        $region13: #{_lambda_.8} parent=11 // pred_check
          %p159 = pneg %p97
        $region14: #{_lambda_.8} parent=11 // pred_check_branch
          %161 = sbr.rel (%p159) target = $region16
        $region15: #{_lambda_.8} parent=11 // pred_region
          _
        $region16: #{_lambda_.8} parent=11 // pred_fallthru
          _
        // Predicated region
        $region17: #{_lambda_.8} parent=11 // pred_check
          %p162 = pneg %p118
        $region18: #{_lambda_.8} parent=11 // pred_check_branch
          %164 = sbr.rel (%p162) target = $region20
        $region19: #{_lambda_.8} parent=11 // pred_region
          _
        $region20: #{_lambda_.8} parent=11 // pred_fallthru
          _
      $region12: #{_lambda_.8} parent=5 // pred_fallthru
        _
      %p165 = scmp.lt.s32.totalorder %s10, 4
      // Predicated region
      $region21: #{_lambda_.8} parent=5 // pred_check
        %p166 = pneg %p165
      $region22: #{_lambda_.8} parent=5 // pred_check_branch
        %168 = sbr.rel (%p166) target = $region24
      $region23: #{_lambda_.8} parent=5 // pred_region
        // Predicated region
        $region25: #{_lambda_.8} parent=23 // pred_check
          %p169 = pneg %p44
        $region26: #{_lambda_.8} parent=23 // pred_check_branch
          %171 = sbr.rel (%p169) target = $region28
        $region27: #{_lambda_.8} parent=23 // pred_region
          %s172 = sand.u32 %s34, 1
          %s173 = sand.u32 %s34, 1
          %s174 = smul.addr %s173, 128
          %s175 = scalar_lea.vmem [#allocation3], %s174
          %s176 = smul.u32 16, %s17
          %s177 = smul.addr %s176, 2
          %s178 = sadd.s32 %s18, %s177
          %s179 = smul.addr %s178, 8
          %s180 = scalar_lea.vmem %s0, %s179
          // Predicated region
          $region29: #{_lambda_.8} parent=27 // pred_check
            _
          $region30: #{_lambda_.8} parent=27 // pred_check_branch
            %182 = sbr.rel (0) target = $region32
          $region31: #{_lambda_.8} parent=27 // pred_region
            // Predicated region
            $region33: #{_lambda_.8} parent=31 // pred_check
              _
            $region34: #{_lambda_.8} parent=31 // pred_check_branch
              %184 = sbr.rel (0) target = $region36
            $region35: #{_lambda_.8} parent=31 // pred_region
              // Predicated region
              $region48: #{_lambda_.8} parent=35 // pred_check
                _
              $region49: #{_lambda_.8} parent=35 // pred_check_branch
                %229 = sbr.rel (0) target = $region51
              $region50: #{_lambda_.8} parent=35 // pred_region
                loop: start=0, step=1, limit=1
                $region52: #{_lambda_.8} parent=50 // loop_pre_header
                  _
                $region53: #{_lambda_.8} parent=50 // loop_header
                  %s231 = sphi 0, %s235
                  %p232 = scmp.ge.s32.totalorder %s231, 1
                  %s236 = sphi %s180, %s180
                  %s237 = sphi %s175, %s175
                $region54: #{_lambda_.8} parent=50 // loop_header_branch
                  %234 = sbr.rel (%p232) target = $region58
                $region55: #{_lambda_.8} parent=50 // loop_body
                  %v238 = vld [vmem:[%s236] sm:$0xff]
                  %239 = vst [vmem:[%s237] sm:$0xff] %v238
                  %v240 = vld [vmem:[%s236 + $0x10] sm:$0xff]
                  %241 = vst [vmem:[%s237 + $0x8] sm:$0xff] %v240
                  %v242 = vld [vmem:[%s236 + $0x20] sm:$0xff]
                  %243 = vst [vmem:[%s237 + $0x10] sm:$0xff] %v242
                  %v244 = vld [vmem:[%s236 + $0x30] sm:$0xff]
                  %245 = vst [vmem:[%s237 + $0x18] sm:$0xff] %v244
                  %v246 = vld [vmem:[%s236 + $0x40] sm:$0xff]
                  %247 = vst [vmem:[%s237 + $0x20] sm:$0xff] %v246
                  %v248 = vld [vmem:[%s236 + $0x50] sm:$0xff]
                  %249 = vst [vmem:[%s237 + $0x28] sm:$0xff] %v248
                  %v250 = vld [vmem:[%s236 + $0x60] sm:$0xff]
                  %251 = vst [vmem:[%s237 + $0x30] sm:$0xff] %v250
                  %v252 = vld [vmem:[%s236 + $0x70] sm:$0xff]
                  %253 = vst [vmem:[%s237 + $0x38] sm:$0xff] %v252
                  %v254 = vld [vmem:[%s236 + $0x80] sm:$0xff]
                  %255 = vst [vmem:[%s237 + $0x40] sm:$0xff] %v254
                  %v256 = vld [vmem:[%s236 + $0x90] sm:$0xff]
                  %257 = vst [vmem:[%s237 + $0x48] sm:$0xff] %v256
                  %v258 = vld [vmem:[%s236 + $0xa0] sm:$0xff]
                  %259 = vst [vmem:[%s237 + $0x50] sm:$0xff] %v258
                  %v260 = vld [vmem:[%s236 + $0xb0] sm:$0xff]
                  %261 = vst [vmem:[%s237 + $0x58] sm:$0xff] %v260
                  %v262 = vld [vmem:[%s236 + $0xc0] sm:$0xff]
                  %263 = vst [vmem:[%s237 + $0x60] sm:$0xff] %v262
                  %v264 = vld [vmem:[%s236 + $0xd0] sm:$0xff]
                  %265 = vst [vmem:[%s237 + $0x68] sm:$0xff] %v264
                  %v266 = vld [vmem:[%s236 + $0xe0] sm:$0xff]
                  %267 = vst [vmem:[%s237 + $0x70] sm:$0xff] %v266
                  %v268 = vld [vmem:[%s236 + $0xf0] sm:$0xff]
                  %269 = vst [vmem:[%s237 + $0x78] sm:$0xff] %v268
                $region56: #{_lambda_.8} parent=50 // loop_footer
                  %s235 = sadd.s32 1, %s231
                $region57: #{_lambda_.8} parent=50 // loop_footer_branch
                  %230 = sbr.rel target = $region53
                $region58: #{_lambda_.8} parent=50 // loop_exit
                  _
              $region51: #{_lambda_.8} parent=35 // pred_fallthru
                _
              // Predicated region
              $region59: #{_lambda_.8} parent=35 // pred_check
                _
              $region60: #{_lambda_.8} parent=35 // pred_check_branch
                %271 = sbr.rel target = $region62
              $region61: #{_lambda_.8} parent=35 // pred_region
                _
              $region62: #{_lambda_.8} parent=35 // pred_fallthru
                _
            $region36: #{_lambda_.8} parent=31 // pred_fallthru
              _
            // Predicated region
            $region37: #{_lambda_.8} parent=31 // pred_check
              _
            $region38: #{_lambda_.8} parent=31 // pred_check_branch
              %186 = sbr.rel target = $region40
            $region39: #{_lambda_.8} parent=31 // pred_region
              loop: start=0, step=1, limit=1
              $region41: #{_lambda_.8} parent=39 // loop_pre_header
                _
              $region42: #{_lambda_.8} parent=39 // loop_header
                %s189 = sphi 0, %s193
                %p190 = scmp.ge.s32.totalorder %s189, 1
                %s194 = sphi %s180, %s180
                %s195 = sphi %s175, %s175
              $region43: #{_lambda_.8} parent=39 // loop_header_branch
                %192 = sbr.rel (%p190) target = $region47
              $region44: #{_lambda_.8} parent=39 // loop_body
                %v196 = vld [vmem:[%s194] sm:$0xff]
                %197 = vst [vmem:[%s195] sm:$0xff] %v196
                %v198 = vld [vmem:[%s194 + $0x10] sm:$0xff]
                %199 = vst [vmem:[%s195 + $0x8] sm:$0xff] %v198
                %v200 = vld [vmem:[%s194 + $0x20] sm:$0xff]
                %201 = vst [vmem:[%s195 + $0x10] sm:$0xff] %v200
                %v202 = vld [vmem:[%s194 + $0x30] sm:$0xff]
                %203 = vst [vmem:[%s195 + $0x18] sm:$0xff] %v202
                %v204 = vld [vmem:[%s194 + $0x40] sm:$0xff]
                %205 = vst [vmem:[%s195 + $0x20] sm:$0xff] %v204
                %v206 = vld [vmem:[%s194 + $0x50] sm:$0xff]
                %207 = vst [vmem:[%s195 + $0x28] sm:$0xff] %v206
                %v208 = vld [vmem:[%s194 + $0x60] sm:$0xff]
                %209 = vst [vmem:[%s195 + $0x30] sm:$0xff] %v208
                %v210 = vld [vmem:[%s194 + $0x70] sm:$0xff]
                %211 = vst [vmem:[%s195 + $0x38] sm:$0xff] %v210
                %v212 = vld [vmem:[%s194 + $0x80] sm:$0xff]
                %213 = vst [vmem:[%s195 + $0x40] sm:$0xff] %v212
                %v214 = vld [vmem:[%s194 + $0x90] sm:$0xff]
                %215 = vst [vmem:[%s195 + $0x48] sm:$0xff] %v214
                %v216 = vld [vmem:[%s194 + $0xa0] sm:$0xff]
                %217 = vst [vmem:[%s195 + $0x50] sm:$0xff] %v216
                %v218 = vld [vmem:[%s194 + $0xb0] sm:$0xff]
                %219 = vst [vmem:[%s195 + $0x58] sm:$0xff] %v218
                %v220 = vld [vmem:[%s194 + $0xc0] sm:$0xff]
                %221 = vst [vmem:[%s195 + $0x60] sm:$0xff] %v220
                %v222 = vld [vmem:[%s194 + $0xd0] sm:$0xff]
                %223 = vst [vmem:[%s195 + $0x68] sm:$0xff] %v222
                %v224 = vld [vmem:[%s194 + $0xe0] sm:$0xff]
                %225 = vst [vmem:[%s195 + $0x70] sm:$0xff] %v224
                %v226 = vld [vmem:[%s194 + $0xf0] sm:$0xff]
                %227 = vst [vmem:[%s195 + $0x78] sm:$0xff] %v226
              $region45: #{_lambda_.8} parent=39 // loop_footer
                %s193 = sadd.s32 1, %s189
              $region46: #{_lambda_.8} parent=39 // loop_footer_branch
                %188 = sbr.rel target = $region42
              $region47: #{_lambda_.8} parent=39 // loop_exit
                _
            $region40: #{_lambda_.8} parent=31 // pred_fallthru
              _
          $region32: #{_lambda_.8} parent=27 // pred_fallthru
            _
          %272 = vnop
        $region28: #{_lambda_.8} parent=23 // pred_fallthru
          _
        // Predicated region
        $region63: #{_lambda_.8} parent=23 // pred_check
          %p273 = pneg %p70
        $region64: #{_lambda_.8} parent=23 // pred_check_branch
          %275 = sbr.rel (%p273) target = $region66
        $region65: #{_lambda_.8} parent=23 // pred_region
          %s276 = smul.u32 16, %s18
          %p277 = scmp.lt.s32.totalorder %s276, 31
          %s278 = scalar_select %p277, %s276, 31
          %s279 = smul.addr %s278, 8
          %s280 = scalar_lea.vmem %s1, %s279
          %s281 = smul.u32 16, %s18
        $region66: #{_lambda_.8} parent=23 // pred_fallthru
          _
      $region24: #{_lambda_.8} parent=5 // pred_fallthru
        _
      %p282 = scmp.le.s32.totalorder 1, %s10
      %p283 = scmp.lt.s32.totalorder %s10, 5
      %p284 = pnand %p282, %p283
      %p285 = pneg %p284
      // Predicated region
      $region67: #{_lambda_.8} parent=5 // pred_check
        _
      $region68: #{_lambda_.8} parent=5 // pred_check_branch
        %287 = sbr.rel (%p284) target = $region70
      $region69: #{_lambda_.8} parent=5 // pred_region
        %s288 = ssub.s32 %s10, 1
        %s289 = sand.u32 %s37, 1
        %s290 = sand.u32 %s37, 1
        %s291 = smul.addr %s290, 128
        %s292 = scalar_lea.vmem [#allocation3], %s291
        // Predicated region
        $region71: #{_lambda_.8} parent=69 // pred_check
          %p293 = pneg %p50
        $region72: #{_lambda_.8} parent=69 // pred_check_branch
          %295 = sbr.rel (%p293) target = $region74
        $region73: #{_lambda_.8} parent=69 // pred_region
          _
        $region74: #{_lambda_.8} parent=69 // pred_fallthru
          _
        %s296 = sand.u32 %s37, 1
        %s297 = sand.u32 %s37, 1
        %s298 = smul.addr %s297, 128
        %s299 = scalar_lea.vmem [#allocation3], %s298
        %p300 = pneg %p50
        %p301 = pneg %p47
        %s302 = smul.u32 16, %s20
        %p303 = scmp.lt.s32.totalorder %s302, 31
        %s304 = scalar_select %p303, %s302, 31
        %s305 = smul.addr %s304, 8
        %s306 = scalar_lea.vmem %s1, %s305
        %p307 = pneg %p76
        %p308 = pneg %p73
        %p309 = pneg %p97
        %p310 = pneg %p94
        %p311 = pneg %p118
        %p312 = pneg %p115
        %p313 = pneg %p144
        %p314 = pneg %p141
        %s315 = smul.u32 16, %s19
        %p316 = scmp.lt.s32.totalorder %s315, 31
        %s317 = scalar_select %p316, %s315, 31
        %s318 = smul.addr %s317, 8
        %s319 = scalar_lea.vmem %s4, %s318
        %s320 = smul.u32 16, %s19
        %s321 = smul.u32 16, %s20
        %p322 = scmp.lt.s32.totalorder %s321, 31
        %s323 = scalar_select %p322, %s321, 31
        %s324 = smul.addr %s323, 8
        %s325 = scalar_lea.vmem %s1, %s324
        %s326 = smul.u32 16, %s20
        %s327 = smul.u32 16, %s19
        %p328 = scmp.lt.s32.totalorder %s327, 31
        %s329 = scalar_select %p328, %s327, 31
        %s330 = smul.addr %s329, 8
        %s331 = scalar_lea.vmem %s4, %s330
        %s332 = smul.u32 16, %s19
        %p333 = scmp.eq.s32.totalorder %s20, 0
        // Predicated region
        $region75: #{_lambda_.8} parent=69 // pred_check
          %p334 = pneg %p333
        $region76: #{_lambda_.8} parent=69 // pred_check_branch
          %336 = sbr.rel (%p334) target = $region78
        $region77: #{_lambda_.8} parent=69 // pred_region
          %337 = vst [vmem:[#allocation2] sm:$0xff] 0.0
          %338 = vst [vmem:[#allocation2 + $0x8] sm:$0xff] 0.0
          %339 = vst [vmem:[#allocation2 + $0x10] sm:$0xff] 0.0
          %340 = vst [vmem:[#allocation2 + $0x18] sm:$0xff] 0.0
          %341 = vst [vmem:[#allocation2 + $0x20] sm:$0xff] 0.0
          %342 = vst [vmem:[#allocation2 + $0x28] sm:$0xff] 0.0
          %343 = vst [vmem:[#allocation2 + $0x30] sm:$0xff] 0.0
          %344 = vst [vmem:[#allocation2 + $0x38] sm:$0xff] 0.0
          %345 = vst [vmem:[#allocation2 + $0x40] sm:$0xff] 0.0
          %346 = vst [vmem:[#allocation2 + $0x48] sm:$0xff] 0.0
          %347 = vst [vmem:[#allocation2 + $0x50] sm:$0xff] 0.0
          %348 = vst [vmem:[#allocation2 + $0x58] sm:$0xff] 0.0
          %349 = vst [vmem:[#allocation2 + $0x60] sm:$0xff] 0.0
          %350 = vst [vmem:[#allocation2 + $0x68] sm:$0xff] 0.0
          %351 = vst [vmem:[#allocation2 + $0x70] sm:$0xff] 0.0
          %352 = vst [vmem:[#allocation2 + $0x78] sm:$0xff] 0.0
        $region78: #{_lambda_.8} parent=69 // pred_fallthru
          _
        %v353 = vld [vmem:[#allocation2] sm:$0xff]
        %v354 = vld [vmem:[#allocation2 + $0x8] sm:$0xff]
        %v355 = vld [vmem:[#allocation2 + $0x10] sm:$0xff]
        %v356 = vld [vmem:[#allocation2 + $0x18] sm:$0xff]
        %v357 = vld [vmem:[#allocation2 + $0x20] sm:$0xff]
        %v358 = vld [vmem:[#allocation2 + $0x28] sm:$0xff]
        %v359 = vld [vmem:[#allocation2 + $0x30] sm:$0xff]
        %v360 = vld [vmem:[#allocation2 + $0x38] sm:$0xff]
        %v361 = vld [vmem:[#allocation2 + $0x40] sm:$0xff]
        %v362 = vld [vmem:[#allocation2 + $0x48] sm:$0xff]
        %v363 = vld [vmem:[#allocation2 + $0x50] sm:$0xff]
        %v364 = vld [vmem:[#allocation2 + $0x58] sm:$0xff]
        %v365 = vld [vmem:[#allocation2 + $0x60] sm:$0xff]
        %v366 = vld [vmem:[#allocation2 + $0x68] sm:$0xff]
        %v367 = vld [vmem:[#allocation2 + $0x70] sm:$0xff]
        %v368 = vld [vmem:[#allocation2 + $0x78] sm:$0xff]
        %v369 = vld [vmem:[%s292] sm:$0xff]
        %v370 = vld [vmem:[%s292 + $0x8] sm:$0xff]
        %v371 = vld [vmem:[%s292 + $0x10] sm:$0xff]
        %v372 = vld [vmem:[%s292 + $0x18] sm:$0xff]
        %v373 = vld [vmem:[%s292 + $0x20] sm:$0xff]
        %v374 = vld [vmem:[%s292 + $0x28] sm:$0xff]
        %v375 = vld [vmem:[%s292 + $0x30] sm:$0xff]
        %v376 = vld [vmem:[%s292 + $0x38] sm:$0xff]
        %v377 = vld [vmem:[%s292 + $0x40] sm:$0xff]
        %v378 = vld [vmem:[%s292 + $0x48] sm:$0xff]
        %v379 = vld [vmem:[%s292 + $0x50] sm:$0xff]
        %v380 = vld [vmem:[%s292 + $0x58] sm:$0xff]
        %v381 = vld [vmem:[%s292 + $0x60] sm:$0xff]
        %v382 = vld [vmem:[%s292 + $0x68] sm:$0xff]
        %v383 = vld [vmem:[%s292 + $0x70] sm:$0xff]
        %v384 = vld [vmem:[%s292 + $0x78] sm:$0xff]
        %v385 = vld [vmem:[%s325] sm:$0xff]
        %v386 = vld [vmem:[%s325 + $0x8] sm:$0xff]
        %v387 = vld [vmem:[%s325 + $0x10] sm:$0xff]
        %v388 = vld [vmem:[%s325 + $0x18] sm:$0xff]
        %v389 = vld [vmem:[%s325 + $0x20] sm:$0xff]
        %v390 = vld [vmem:[%s325 + $0x28] sm:$0xff]
        %v391 = vld [vmem:[%s325 + $0x30] sm:$0xff]
        %v392 = vld [vmem:[%s325 + $0x38] sm:$0xff]
        %v393 = vld [vmem:[%s325 + $0x40] sm:$0xff]
        %v394 = vld [vmem:[%s325 + $0x48] sm:$0xff]
        %v395 = vld [vmem:[%s325 + $0x50] sm:$0xff]
        %v396 = vld [vmem:[%s325 + $0x58] sm:$0xff]
        %v397 = vld [vmem:[%s325 + $0x60] sm:$0xff]
        %v398 = vld [vmem:[%s325 + $0x68] sm:$0xff]
        %v399 = vld [vmem:[%s325 + $0x70] sm:$0xff]
        %v400 = vld [vmem:[%s325 + $0x78] sm:$0xff]
        %401 = vmatprep.subr.mxu0 0.0
        %402 = vmatpush1.msra.mxu0 %v385
        %403 = vmatprep.subr.mxu0 0.0
        %404 = vmatpush1.msra.mxu0 %v386
        %405 = vmatprep.subr.mxu0 0.0
        %406 = vmatpush1.msra.mxu0 %v387
        %407 = vmatprep.subr.mxu0 0.0
        %408 = vmatpush1.msra.mxu0 %v388
        %409 = vmatprep.subr.mxu0 0.0
        %410 = vmatpush1.msra.mxu0 %v389
        %411 = vmatprep.subr.mxu0 0.0
        %412 = vmatpush1.msra.mxu0 %v390
        %413 = vmatprep.subr.mxu0 0.0
        %414 = vmatpush1.msra.mxu0 %v391
        %415 = vmatprep.subr.mxu0 0.0
        %416 = vmatpush1.msra.mxu0 %v392
        %417 = vmatprep.subr.mxu0 0.0
        %418 = vmatpush1.msra.mxu0 %v393
        %419 = vmatprep.subr.mxu0 0.0
        %420 = vmatpush1.msra.mxu0 %v394
        %421 = vmatprep.subr.mxu0 0.0
        %422 = vmatpush1.msra.mxu0 %v395
        %423 = vmatprep.subr.mxu0 0.0
        %424 = vmatpush1.msra.mxu0 %v396
        %425 = vmatprep.subr.mxu0 0.0
        %426 = vmatpush1.msra.mxu0 %v397
        %427 = vmatprep.subr.mxu0 0.0
        %428 = vmatpush1.msra.mxu0 %v398
        %429 = vmatprep.subr.mxu0 0.0
        %430 = vmatpush1.msra.mxu0 %v399
        %431 = vmatprep.subr.mxu0 0.0
        %432 = vmatpush1.msra.mxu0 %v400
        %433 = vmatprep.subr.mxu0 0.0
        %434 = vmatpush1.msra.mxu0 0.0
        %435 = vmatprep.subr.mxu0 0.0
        %436 = vmatpush1.msra.mxu0 0.0
        %437 = vmatprep.subr.mxu0 0.0
        %438 = vmatpush1.msra.mxu0 0.0
        %439 = vmatprep.subr.mxu0 0.0
        %440 = vmatpush1.msra.mxu0 0.0
        %441 = vmatprep.subr.mxu0 0.0
        %442 = vmatpush1.msra.mxu0 0.0
        %443 = vmatprep.subr.mxu0 0.0
        %444 = vmatpush1.msra.mxu0 0.0
        %445 = vmatprep.subr.mxu0 0.0
        %446 = vmatpush1.msra.mxu0 0.0
        %447 = vmatprep.subr.mxu0 0.0
        %448 = vmatpush1.msra.mxu0 0.0
        %449 = vmatprep.subr.mxu0 0.0
        %450 = vmatpush1.msra.mxu0 0.0
        %451 = vmatprep.subr.mxu0 0.0
        %452 = vmatpush1.msra.mxu0 0.0
        %453 = vmatprep.subr.mxu0 0.0
        %454 = vmatpush1.msra.mxu0 0.0
        %455 = vmatprep.subr.mxu0 0.0
        %456 = vmatpush1.msra.mxu0 0.0
        %457 = vmatprep.subr.mxu0 0.0
        %458 = vmatpush1.msra.mxu0 0.0
        %459 = vmatprep.subr.mxu0 0.0
        %460 = vmatpush1.msra.mxu0 0.0
        %461 = vmatprep.subr.mxu0 0.0
        %462 = vmatpush1.msra.mxu0 0.0
        %463 = vmatprep.subr.mxu0 0.0
        %464 = vmatpush1.msra.mxu0 0.0
        %465 = vmatprep.mubr.f32.mxu0 0.0
        %466 = vmatmul.mubr.f32.gmra.mrb[0].mxu0 %v369
        %v467 = vpop.f32.mrb[0].mxu0
        %v468 = vadd.f32 0.0, %v467
        %v469 = vpop.f32.mrb[0].mxu0
        %470 = vmatprep.mubr.f32.mxu0 0.0
        %471 = vmatmul.mubr.f32.gmra.mrb[0].mxu0 %v370
        %v472 = vpop.f32.mrb[0].mxu0
        %v473 = vadd.f32 0.0, %v472
        %v474 = vpop.f32.mrb[0].mxu0
        %475 = vmatprep.mubr.f32.mxu0 0.0
        %476 = vmatmul.mubr.f32.gmra.mrb[0].mxu0 %v371
        %v477 = vpop.f32.mrb[0].mxu0
        %v478 = vadd.f32 0.0, %v477
        %v479 = vpop.f32.mrb[0].mxu0
        %480 = vmatprep.mubr.f32.mxu0 0.0
        %481 = vmatmul.mubr.f32.gmra.mrb[0].mxu0 %v372
        %v482 = vpop.f32.mrb[0].mxu0
        %v483 = vadd.f32 0.0, %v482
        %v484 = vpop.f32.mrb[0].mxu0
        %485 = vmatprep.mubr.f32.mxu0 0.0
        %486 = vmatmul.mubr.f32.gmra.mrb[0].mxu0 %v373
        %v487 = vpop.f32.mrb[0].mxu0
        %v488 = vadd.f32 0.0, %v487
        %v489 = vpop.f32.mrb[0].mxu0
        %490 = vmatprep.mubr.f32.mxu0 0.0
        %491 = vmatmul.mubr.f32.gmra.mrb[0].mxu0 %v374
        %v492 = vpop.f32.mrb[0].mxu0
        %v493 = vadd.f32 0.0, %v492
        %v494 = vpop.f32.mrb[0].mxu0
        %495 = vmatprep.mubr.f32.mxu0 0.0
        %496 = vmatmul.mubr.f32.gmra.mrb[0].mxu0 %v375
        %v497 = vpop.f32.mrb[0].mxu0
        %v498 = vadd.f32 0.0, %v497
        %v499 = vpop.f32.mrb[0].mxu0
        %500 = vmatprep.mubr.f32.mxu0 0.0
        %501 = vmatmul.mubr.f32.gmra.mrb[0].mxu0 %v376
        %v502 = vpop.f32.mrb[0].mxu0
        %v503 = vadd.f32 0.0, %v502
        %v504 = vpop.f32.mrb[0].mxu0
        %505 = vmatprep.mubr.f32.mxu0 0.0
        %506 = vmatmul.mubr.f32.gmra.mrb[0].mxu0 %v377
        %v507 = vpop.f32.mrb[0].mxu0
        %v508 = vadd.f32 0.0, %v507
        %v509 = vpop.f32.mrb[0].mxu0
        %510 = vmatprep.mubr.f32.mxu0 0.0
        %511 = vmatmul.mubr.f32.gmra.mrb[0].mxu0 %v378
        %v512 = vpop.f32.mrb[0].mxu0
        %v513 = vadd.f32 0.0, %v512
        %v514 = vpop.f32.mrb[0].mxu0
        %515 = vmatprep.mubr.f32.mxu0 0.0
        %516 = vmatmul.mubr.f32.gmra.mrb[0].mxu0 %v379
        %v517 = vpop.f32.mrb[0].mxu0
        %v518 = vadd.f32 0.0, %v517
        %v519 = vpop.f32.mrb[0].mxu0
        %520 = vmatprep.mubr.f32.mxu0 0.0
        %521 = vmatmul.mubr.f32.gmra.mrb[0].mxu0 %v380
        %v522 = vpop.f32.mrb[0].mxu0
        %v523 = vadd.f32 0.0, %v522
        %v524 = vpop.f32.mrb[0].mxu0
        %525 = vmatprep.mubr.f32.mxu0 0.0
        %526 = vmatmul.mubr.f32.gmra.mrb[0].mxu0 %v381
        %v527 = vpop.f32.mrb[0].mxu0
        %v528 = vadd.f32 0.0, %v527
        %v529 = vpop.f32.mrb[0].mxu0
        %530 = vmatprep.mubr.f32.mxu0 0.0
        %531 = vmatmul.mubr.f32.gmra.mrb[0].mxu0 %v382
        %v532 = vpop.f32.mrb[0].mxu0
        %v533 = vadd.f32 0.0, %v532
        %v534 = vpop.f32.mrb[0].mxu0
        %535 = vmatprep.mubr.f32.mxu0 0.0
        %536 = vmatmul.mubr.f32.gmra.mrb[0].mxu0 %v383
        %v537 = vpop.f32.mrb[0].mxu0
        %v538 = vadd.f32 0.0, %v537
        %v539 = vpop.f32.mrb[0].mxu0
        %540 = vmatprep.mubr.f32.mxu0 0.0
        %541 = vmatmul.mubr.f32.gmra.mrb[0].mxu0 %v384
        %v542 = vpop.f32.mrb[0].mxu0
        %v543 = vadd.f32 0.0, %v542
        %v544 = vpop.f32.mrb[0].mxu0
        %545 = vdwg.mxu0
        %v546 = vadd.f32 %v353, %v468
        %v547 = vadd.f32 %v354, %v473
        %v548 = vadd.f32 %v355, %v478
        %v549 = vadd.f32 %v356, %v483
        %v550 = vadd.f32 %v357, %v488
        %v551 = vadd.f32 %v358, %v493
        %v552 = vadd.f32 %v359, %v498
        %v553 = vadd.f32 %v360, %v503
        %v554 = vadd.f32 %v361, %v508
        %v555 = vadd.f32 %v362, %v513
        %v556 = vadd.f32 %v363, %v518
        %v557 = vadd.f32 %v364, %v523
        %v558 = vadd.f32 %v365, %v528
        %v559 = vadd.f32 %v366, %v533
        %v560 = vadd.f32 %v367, %v538
        %v561 = vadd.f32 %v368, %v543
        %562 = vst [vmem:[#allocation2] sm:$0xff] %v546
        %563 = vst [vmem:[#allocation2 + $0x8] sm:$0xff] %v547
        %564 = vst [vmem:[#allocation2 + $0x10] sm:$0xff] %v548
        %565 = vst [vmem:[#allocation2 + $0x18] sm:$0xff] %v549
        %566 = vst [vmem:[#allocation2 + $0x20] sm:$0xff] %v550
        %567 = vst [vmem:[#allocation2 + $0x28] sm:$0xff] %v551
        %568 = vst [vmem:[#allocation2 + $0x30] sm:$0xff] %v552
        %569 = vst [vmem:[#allocation2 + $0x38] sm:$0xff] %v553
        %570 = vst [vmem:[#allocation2 + $0x40] sm:$0xff] %v554
        %571 = vst [vmem:[#allocation2 + $0x48] sm:$0xff] %v555
        %572 = vst [vmem:[#allocation2 + $0x50] sm:$0xff] %v556
        %573 = vst [vmem:[#allocation2 + $0x58] sm:$0xff] %v557
        %574 = vst [vmem:[#allocation2 + $0x60] sm:$0xff] %v558
        %575 = vst [vmem:[#allocation2 + $0x68] sm:$0xff] %v559
        %576 = vst [vmem:[#allocation2 + $0x70] sm:$0xff] %v560
        %577 = vst [vmem:[#allocation2 + $0x78] sm:$0xff] %v561
        %p578 = scmp.eq.s32.totalorder %s20, 1
        // Predicated region
        $region79: #{_lambda_.8} parent=69 // pred_check
          %p579 = pneg %p578
        $region80: #{_lambda_.8} parent=69 // pred_check_branch
          %581 = sbr.rel (%p579) target = $region82
        $region81: #{_lambda_.8} parent=69 // pred_region
          %v582 = vld [vmem:[#allocation2] sm:$0xff]
          %v583 = vld [vmem:[#allocation2 + $0x8] sm:$0xff]
          %v584 = vld [vmem:[#allocation2 + $0x10] sm:$0xff]
          %v585 = vld [vmem:[#allocation2 + $0x18] sm:$0xff]
          %v586 = vld [vmem:[#allocation2 + $0x20] sm:$0xff]
          %v587 = vld [vmem:[#allocation2 + $0x28] sm:$0xff]
          %v588 = vld [vmem:[#allocation2 + $0x30] sm:$0xff]
          %v589 = vld [vmem:[#allocation2 + $0x38] sm:$0xff]
          %v590 = vld [vmem:[#allocation2 + $0x40] sm:$0xff]
          %v591 = vld [vmem:[#allocation2 + $0x48] sm:$0xff]
          %v592 = vld [vmem:[#allocation2 + $0x50] sm:$0xff]
          %v593 = vld [vmem:[#allocation2 + $0x58] sm:$0xff]
          %v594 = vld [vmem:[#allocation2 + $0x60] sm:$0xff]
          %v595 = vld [vmem:[#allocation2 + $0x68] sm:$0xff]
          %v596 = vld [vmem:[#allocation2 + $0x70] sm:$0xff]
          %v597 = vld [vmem:[#allocation2 + $0x78] sm:$0xff]
          %v598 = vld [vmem:[%s2] sm:$0x1]
          %v600 = vlaneseq
          %v601 = vshrl.u32 %v600, 7
          %v602 = vsub.s32 0, %v601
          %v603 = vrot.slane %v598, %v602
          %v605 = vadd.f32 %v582, %v603
          %v606 = vadd.f32 %v583, %v603
          %v607 = vadd.f32 %v584, %v603
          %v608 = vadd.f32 %v585, %v603
          %v609 = vadd.f32 %v586, %v603
          %v610 = vadd.f32 %v587, %v603
          %v611 = vadd.f32 %v588, %v603
          %v612 = vadd.f32 %v589, %v603
          %v613 = vadd.f32 %v590, %v603
          %v614 = vadd.f32 %v591, %v603
          %v615 = vadd.f32 %v592, %v603
          %v616 = vadd.f32 %v593, %v603
          %v617 = vadd.f32 %v594, %v603
          %v618 = vadd.f32 %v595, %v603
          %v619 = vadd.f32 %v596, %v603
          %v620 = vadd.f32 %v597, %v603
          %v621 = vmax.f32 %v605, 0.0
          %v622 = vmax.f32 %v606, 0.0
          %v623 = vmax.f32 %v607, 0.0
          %v624 = vmax.f32 %v608, 0.0
          %v625 = vmax.f32 %v609, 0.0
          %v626 = vmax.f32 %v610, 0.0
          %v627 = vmax.f32 %v611, 0.0
          %v628 = vmax.f32 %v612, 0.0
          %v629 = vmax.f32 %v613, 0.0
          %v630 = vmax.f32 %v614, 0.0
          %v631 = vmax.f32 %v615, 0.0
          %v632 = vmax.f32 %v616, 0.0
          %v633 = vmax.f32 %v617, 0.0
          %v634 = vmax.f32 %v618, 0.0
          %v635 = vmax.f32 %v619, 0.0
          %v636 = vmax.f32 %v620, 0.0
          %v637 = vld [vmem:[%s3] sm:$0xff]
          %v638 = vld [vmem:[%s3 + $0x8] sm:$0xff]
          %v639 = vld [vmem:[%s3 + $0x10] sm:$0xff]
          %v640 = vld [vmem:[%s3 + $0x18] sm:$0xff]
          %v641 = vld [vmem:[%s3 + $0x20] sm:$0xff]
          %v642 = vld [vmem:[%s3 + $0x28] sm:$0xff]
          %v643 = vld [vmem:[%s3 + $0x30] sm:$0xff]
          %v644 = vld [vmem:[%s3 + $0x38] sm:$0xff]
          %v645 = vld [vmem:[%s3 + $0x40] sm:$0xff]
          %v646 = vld [vmem:[%s3 + $0x48] sm:$0xff]
          %v647 = vld [vmem:[%s3 + $0x50] sm:$0xff]
          %v648 = vld [vmem:[%s3 + $0x58] sm:$0xff]
          %v649 = vld [vmem:[%s3 + $0x60] sm:$0xff]
          %v650 = vld [vmem:[%s3 + $0x68] sm:$0xff]
          %v651 = vld [vmem:[%s3 + $0x70] sm:$0xff]
          %v652 = vld [vmem:[%s3 + $0x78] sm:$0xff]
          %653 = vmatprep.subr.mxu0 0.0
          %654 = vmatpush1.msra.mxu0 %v637
          %655 = vmatprep.subr.mxu0 0.0
          %656 = vmatpush1.msra.mxu0 %v638
          %657 = vmatprep.subr.mxu0 0.0
          %658 = vmatpush1.msra.mxu0 %v639
          %659 = vmatprep.subr.mxu0 0.0
          %660 = vmatpush1.msra.mxu0 %v640
          %661 = vmatprep.subr.mxu0 0.0
          %662 = vmatpush1.msra.mxu0 %v641
          %663 = vmatprep.subr.mxu0 0.0
          %664 = vmatpush1.msra.mxu0 %v642
          %665 = vmatprep.subr.mxu0 0.0
          %666 = vmatpush1.msra.mxu0 %v643
          %667 = vmatprep.subr.mxu0 0.0
          %668 = vmatpush1.msra.mxu0 %v644
          %669 = vmatprep.subr.mxu0 0.0
          %670 = vmatpush1.msra.mxu0 %v645
          %671 = vmatprep.subr.mxu0 0.0
          %672 = vmatpush1.msra.mxu0 %v646
          %673 = vmatprep.subr.mxu0 0.0
          %674 = vmatpush1.msra.mxu0 %v647
          %675 = vmatprep.subr.mxu0 0.0
          %676 = vmatpush1.msra.mxu0 %v648
          %677 = vmatprep.subr.mxu0 0.0
          %678 = vmatpush1.msra.mxu0 %v649
          %679 = vmatprep.subr.mxu0 0.0
          %680 = vmatpush1.msra.mxu0 %v650
          %681 = vmatprep.subr.mxu0 0.0
          %682 = vmatpush1.msra.mxu0 %v651
          %683 = vmatprep.subr.mxu0 0.0
          %684 = vmatpush1.msra.mxu0 %v652
          %685 = vmatprep.subr.mxu0 0.0
          %686 = vmatpush1.msra.mxu0 0.0
          %687 = vmatprep.subr.mxu0 0.0
          %688 = vmatpush1.msra.mxu0 0.0
          %689 = vmatprep.subr.mxu0 0.0
          %690 = vmatpush1.msra.mxu0 0.0
          %691 = vmatprep.subr.mxu0 0.0
          %692 = vmatpush1.msra.mxu0 0.0
          %693 = vmatprep.subr.mxu0 0.0
          %694 = vmatpush1.msra.mxu0 0.0
          %695 = vmatprep.subr.mxu0 0.0
          %696 = vmatpush1.msra.mxu0 0.0
          %697 = vmatprep.subr.mxu0 0.0
          %698 = vmatpush1.msra.mxu0 0.0
          %699 = vmatprep.subr.mxu0 0.0
          %700 = vmatpush1.msra.mxu0 0.0
          %701 = vmatprep.subr.mxu0 0.0
          %702 = vmatpush1.msra.mxu0 0.0
          %703 = vmatprep.subr.mxu0 0.0
          %704 = vmatpush1.msra.mxu0 0.0
          %705 = vmatprep.subr.mxu0 0.0
          %706 = vmatpush1.msra.mxu0 0.0
          %707 = vmatprep.subr.mxu0 0.0
          %708 = vmatpush1.msra.mxu0 0.0
          %709 = vmatprep.subr.mxu0 0.0
          %710 = vmatpush1.msra.mxu0 0.0
          %711 = vmatprep.subr.mxu0 0.0
          %712 = vmatpush1.msra.mxu0 0.0
          %713 = vmatprep.subr.mxu0 0.0
          %714 = vmatpush1.msra.mxu0 0.0
          %715 = vmatprep.subr.mxu0 0.0
          %716 = vmatpush1.msra.mxu0 0.0
          %717 = vmatprep.mubr.f32.mxu0 0.0
          %718 = vmatmul.mubr.f32.gmra.mrb[0].mxu0 %v621
          %v719 = vpop.f32.mrb[0].mxu0
          %v720 = vadd.f32 0.0, %v719
          %v721 = vpop.f32.mrb[0].mxu0
          %722 = vmatprep.mubr.f32.mxu0 0.0
          %723 = vmatmul.mubr.f32.gmra.mrb[0].mxu0 %v622
          %v724 = vpop.f32.mrb[0].mxu0
          %v725 = vadd.f32 0.0, %v724
          %v726 = vpop.f32.mrb[0].mxu0
          %727 = vmatprep.mubr.f32.mxu0 0.0
          %728 = vmatmul.mubr.f32.gmra.mrb[0].mxu0 %v623
          %v729 = vpop.f32.mrb[0].mxu0
          %v730 = vadd.f32 0.0, %v729
          %v731 = vpop.f32.mrb[0].mxu0
          %732 = vmatprep.mubr.f32.mxu0 0.0
          %733 = vmatmul.mubr.f32.gmra.mrb[0].mxu0 %v624
          %v734 = vpop.f32.mrb[0].mxu0
          %v735 = vadd.f32 0.0, %v734
          %v736 = vpop.f32.mrb[0].mxu0
          %737 = vmatprep.mubr.f32.mxu0 0.0
          %738 = vmatmul.mubr.f32.gmra.mrb[0].mxu0 %v625
          %v739 = vpop.f32.mrb[0].mxu0
          %v740 = vadd.f32 0.0, %v739
          %v741 = vpop.f32.mrb[0].mxu0
          %742 = vmatprep.mubr.f32.mxu0 0.0
          %743 = vmatmul.mubr.f32.gmra.mrb[0].mxu0 %v626
          %v744 = vpop.f32.mrb[0].mxu0
          %v745 = vadd.f32 0.0, %v744
          %v746 = vpop.f32.mrb[0].mxu0
          %747 = vmatprep.mubr.f32.mxu0 0.0
          %748 = vmatmul.mubr.f32.gmra.mrb[0].mxu0 %v627
          %v749 = vpop.f32.mrb[0].mxu0
          %v750 = vadd.f32 0.0, %v749
          %v751 = vpop.f32.mrb[0].mxu0
          %752 = vmatprep.mubr.f32.mxu0 0.0
          %753 = vmatmul.mubr.f32.gmra.mrb[0].mxu0 %v628
          %v754 = vpop.f32.mrb[0].mxu0
          %v755 = vadd.f32 0.0, %v754
          %v756 = vpop.f32.mrb[0].mxu0
          %757 = vmatprep.mubr.f32.mxu0 0.0
          %758 = vmatmul.mubr.f32.gmra.mrb[0].mxu0 %v629
          %v759 = vpop.f32.mrb[0].mxu0
          %v760 = vadd.f32 0.0, %v759
          %v761 = vpop.f32.mrb[0].mxu0
          %762 = vmatprep.mubr.f32.mxu0 0.0
          %763 = vmatmul.mubr.f32.gmra.mrb[0].mxu0 %v630
          %v764 = vpop.f32.mrb[0].mxu0
          %v765 = vadd.f32 0.0, %v764
          %v766 = vpop.f32.mrb[0].mxu0
          %767 = vmatprep.mubr.f32.mxu0 0.0
          %768 = vmatmul.mubr.f32.gmra.mrb[0].mxu0 %v631
          %v769 = vpop.f32.mrb[0].mxu0
          %v770 = vadd.f32 0.0, %v769
          %v771 = vpop.f32.mrb[0].mxu0
          %772 = vmatprep.mubr.f32.mxu0 0.0
          %773 = vmatmul.mubr.f32.gmra.mrb[0].mxu0 %v632
          %v774 = vpop.f32.mrb[0].mxu0
          %v775 = vadd.f32 0.0, %v774
          %v776 = vpop.f32.mrb[0].mxu0
          %777 = vmatprep.mubr.f32.mxu0 0.0
          %778 = vmatmul.mubr.f32.gmra.mrb[0].mxu0 %v633
          %v779 = vpop.f32.mrb[0].mxu0
          %v780 = vadd.f32 0.0, %v779
          %v781 = vpop.f32.mrb[0].mxu0
          %782 = vmatprep.mubr.f32.mxu0 0.0
          %783 = vmatmul.mubr.f32.gmra.mrb[0].mxu0 %v634
          %v784 = vpop.f32.mrb[0].mxu0
          %v785 = vadd.f32 0.0, %v784
          %v786 = vpop.f32.mrb[0].mxu0
          %787 = vmatprep.mubr.f32.mxu0 0.0
          %788 = vmatmul.mubr.f32.gmra.mrb[0].mxu0 %v635
          %v789 = vpop.f32.mrb[0].mxu0
          %v790 = vadd.f32 0.0, %v789
          %v791 = vpop.f32.mrb[0].mxu0
          %792 = vmatprep.mubr.f32.mxu0 0.0
          %793 = vmatmul.mubr.f32.gmra.mrb[0].mxu0 %v636
          %v794 = vpop.f32.mrb[0].mxu0
          %v795 = vadd.f32 0.0, %v794
          %v796 = vpop.f32.mrb[0].mxu0
          %797 = vdwg.mxu0
          %798 = vst [vmem:[%s331] sm:$0xff] %v720
          %799 = vst [vmem:[%s331 + $0x8] sm:$0xff] %v725
          %800 = vst [vmem:[%s331 + $0x10] sm:$0xff] %v730
          %801 = vst [vmem:[%s331 + $0x18] sm:$0xff] %v735
          %802 = vst [vmem:[%s331 + $0x20] sm:$0xff] %v740
          %803 = vst [vmem:[%s331 + $0x28] sm:$0xff] %v745
          %804 = vst [vmem:[%s331 + $0x30] sm:$0xff] %v750
          %805 = vst [vmem:[%s331 + $0x38] sm:$0xff] %v755
          %806 = vst [vmem:[%s331 + $0x40] sm:$0xff] %v760
          %807 = vst [vmem:[%s331 + $0x48] sm:$0xff] %v765
          %808 = vst [vmem:[%s331 + $0x50] sm:$0xff] %v770
          %809 = vst [vmem:[%s331 + $0x58] sm:$0xff] %v775
          %810 = vst [vmem:[%s331 + $0x60] sm:$0xff] %v780
          %811 = vst [vmem:[%s331 + $0x68] sm:$0xff] %v785
          %812 = vst [vmem:[%s331 + $0x70] sm:$0xff] %v790
          %813 = vst [vmem:[%s331 + $0x78] sm:$0xff] %v795
        $region82: #{_lambda_.8} parent=69 // pred_fallthru
          _
        %s814 = smul.u32 16, %s19
        %p815 = scmp.lt.s32.totalorder %s814, 31
        %s816 = scalar_select %p815, %s814, 31
        %s817 = smul.addr %s816, 8
        %s818 = scalar_lea.vmem %s4, %s817
        // Predicated region
        $region83: #{_lambda_.8} parent=69 // pred_check
          %p819 = pneg %p141
        $region84: #{_lambda_.8} parent=69 // pred_check_branch
          %821 = sbr.rel (%p819) target = $region86
        $region85: #{_lambda_.8} parent=69 // pred_region
          %s822 = smul.u32 16, %s19
        $region86: #{_lambda_.8} parent=69 // pred_fallthru
          _
      $region70: #{_lambda_.8} parent=5 // pred_fallthru
        _
      %p823 = scmp.le.s32.totalorder 2, %s10
      // Predicated region
      $region87: #{_lambda_.8} parent=5 // pred_check
        %p824 = pneg %p823
      $region88: #{_lambda_.8} parent=5 // pred_check_branch
        %826 = sbr.rel (%p824) target = $region90
      $region89: #{_lambda_.8} parent=5 // pred_region
        %s827 = ssub.s32 %s10, 2
        // Predicated region
        $region91: #{_lambda_.8} parent=89 // pred_check
          %p828 = pneg %p147
        $region92: #{_lambda_.8} parent=89 // pred_check_branch
          %830 = sbr.rel (%p828) target = $region94
        $region93: #{_lambda_.8} parent=89 // pred_region
          %s831 = smul.u32 16, %s21
          %p832 = scmp.lt.s32.totalorder %s831, 31
          %s833 = scalar_select %p832, %s831, 31
          %s834 = smul.addr %s833, 8
          %s835 = scalar_lea.vmem %s4, %s834
        $region94: #{_lambda_.8} parent=89 // pred_fallthru
          _
      $region90: #{_lambda_.8} parent=5 // pred_fallthru
        _
    $region6: #{_lambda_.8} parent=1 // loop_footer
      %s14 = sadd.s32 1, %s10
    $region7: #{_lambda_.8} parent=1 // loop_footer_branch
      %9 = sbr.rel target = $region3
    $region8: #{_lambda_.8} parent=1 // loop_exit
      _

// kernel: _lambda_.9
$region0: #{_lambda_.9}
  #allocation0 [shape = 'u32[]', space=smem, size = 0x4, offset = 0x4, fixed_abs, tag = 'smem constant byte address 0x4 - core index']
  #allocation1 [shape = 'u32[144,128]{1,0:T(1,128)}', space=vmem, size = 0x12000, scoped, tag = 'internal scratch']
  #allocation2 [shape = 'f32[128,128]{1,0:T(8,128)}', space=vmem, size = 0x10000, scoped, tag = 'scratch operand']
  %s0 = inlined_call_operand.vmem [shape: f32[256,256], index: 0, kind: input, shape index: {}]
  %s1 = inlined_call_operand.vmem [shape: f32[256,128], index: 1, kind: input, shape index: {}]
  %s2 = inlined_call_operand.vmem [shape: f32[1,128], index: 2, kind: input, shape index: {}]
  %s3 = inlined_call_operand.vmem [shape: f32[128,256], index: 3, kind: input, shape index: {}]
  %s4 = inlined_call_operand.vmem [shape: f32[256,256], index: 4, kind: output, shape index: {}]
  %s5 = sld [smem:[#allocation0]]
  $region95: #{_lambda_.9} parent=0
    _
  %s7 = ssub.s32 1, %s5
  %s8 = scalar_select 0, %s7, %s5
  $region1: #{_lambda_.9} parent=0
    #allocation3 [shape = 'u8[131072]{0}', space=vmem, size = 0x20000, scoped, tag = 'input window, operand 0']
    loop: start=0, step=1, limit=6
    $region2: #{_lambda_.9} parent=1 // loop_pre_header
      _
    $region3: #{_lambda_.9} parent=1 // loop_header
      %s10 = sphi 0, %s14
      %p11 = scmp.ge.s32.totalorder %s10, 6
      %s17 = sphi 0, %s29
      %s18 = sphi 0, %s25
      %s19 = sphi 0, %s17
      %s20 = sphi 0, %s18
      %s21 = sphi 0, %s19
      %s22 = sphi 0, %s20
      %s34 = sphi 0, %s36
      %s37 = sphi 0, %s34
      %s38 = sphi 0, %s37
      %s54 = sphi 0, %s38
      %s60 = sphi 0, %s62
      %s63 = sphi 0, %s60
      %s64 = sphi 0, %s63
      %s80 = sphi 0, %s64
      %s84 = sphi 0, %s84
      %s86 = sphi 0, %s84
      %s87 = sphi 0, %s86
      %s101 = sphi 0, %s87
      %s105 = sphi 0, %s105
      %s107 = sphi 0, %s105
      %s108 = sphi 0, %s107
      %s122 = sphi 0, %s108
      %s128 = sphi 0, %s130
      %s131 = sphi 0, %s128
      %s132 = sphi 0, %s131
      %s148 = sphi 0, %s132
    $region4: #{_lambda_.9} parent=1 // loop_header_branch
      %13 = sbr.rel (%p11) target = $region8
    $region5: #{_lambda_.9} parent=1 // loop_body
      %s15 = ssub.s32 %s10, 1
      %s16 = ssub.s32 %s10, 2
      %s23 = sadd.s32 1, %s18
      %p24 = scmp.ge.s32.totalorder %s23, 2
      %s25 = scalar_select %p24, 0, %s23
      %s26 = sadd.s32 1, %s17
      %s27 = scalar_select %p24, %s26, %s17
      %p28 = scmp.ge.s32.totalorder %s27, 2
      %s29 = scalar_select %p28, 0, %s27
      %s30 = ssub.s32 %s17, %s29
      %s31 = ssub.s32 %s18, %s25
      %s32 = sor.u32 %s30, %s31
      %p33 = scmp.eq.s32.totalorder %s32, 0
      %s35 = sadd.s32 %s34, 1
      %s36 = scalar_select %p33, %s34, %s35
      %p39 = pneg %p33
      %p40 = scmp.eq.s32.totalorder %s10, 3
      %p41 = por %p39, %p40
      %p42 = scmp.ne.s32.totalorder %s34, %s37
      %p43 = scmp.eq.s32.totalorder %s10, 0
      %p44 = por %p42, %p43
      %p45 = scmp.ne.s32.totalorder %s34, %s37
      %p46 = scmp.eq.s32.totalorder %s15, 3
      %p47 = por %p45, %p46
      %p48 = scmp.ne.s32.totalorder %s37, %s38
      %p49 = scmp.eq.s32.totalorder %s15, 0
      %p50 = por %p48, %p49
      %p51 = scmp.ne.s32.totalorder %s37, %s38
      %p52 = scmp.eq.s32.totalorder %s16, 3
      %p53 = por %p51, %p52
      %p55 = scmp.ne.s32.totalorder %s38, %s54
      %p56 = scmp.eq.s32.totalorder %s16, 0
      %p57 = por %p55, %p56
      %s58 = ssub.s32 %s18, %s25
      %p59 = scmp.eq.s32.totalorder %s58, 0
      %s61 = sadd.s32 %s60, 1
      %s62 = scalar_select %p59, %s60, %s61
      %p65 = pneg %p59
      %p66 = scmp.eq.s32.totalorder %s10, 3
      %p67 = por %p65, %p66
      %p68 = scmp.ne.s32.totalorder %s60, %s63
      %p69 = scmp.eq.s32.totalorder %s10, 0
      %p70 = por %p68, %p69
      %p71 = scmp.ne.s32.totalorder %s60, %s63
      %p72 = scmp.eq.s32.totalorder %s15, 3
      %p73 = por %p71, %p72
      %p74 = scmp.ne.s32.totalorder %s63, %s64
      %p75 = scmp.eq.s32.totalorder %s15, 0
      %p76 = por %p74, %p75
      %p77 = scmp.ne.s32.totalorder %s63, %s64
      %p78 = scmp.eq.s32.totalorder %s16, 3
      %p79 = por %p77, %p78
      %p81 = scmp.ne.s32.totalorder %s64, %s80
      %p82 = scmp.eq.s32.totalorder %s16, 0
      %p83 = por %p81, %p82
      %s85 = sadd.s32 %s84, 1
      %p88 = scmp.eq.s32.totalorder %s10, 3
      %p89 = scmp.ne.s32.totalorder %s84, %s86
      %p90 = scmp.eq.s32.totalorder %s10, 0
      %p91 = por %p89, %p90
      %p92 = scmp.ne.s32.totalorder %s84, %s86
      %p93 = scmp.eq.s32.totalorder %s15, 3
      %p94 = por %p92, %p93
      %p95 = scmp.ne.s32.totalorder %s86, %s87
      %p96 = scmp.eq.s32.totalorder %s15, 0
      %p97 = por %p95, %p96
      %p98 = scmp.ne.s32.totalorder %s86, %s87
      %p99 = scmp.eq.s32.totalorder %s16, 3
      %p100 = por %p98, %p99
      %p102 = scmp.ne.s32.totalorder %s87, %s101
      %p103 = scmp.eq.s32.totalorder %s16, 0
      %p104 = por %p102, %p103
      %s106 = sadd.s32 %s105, 1
      %p109 = scmp.eq.s32.totalorder %s10, 3
      %p110 = scmp.ne.s32.totalorder %s105, %s107
      %p111 = scmp.eq.s32.totalorder %s10, 0
      %p112 = por %p110, %p111
      %p113 = scmp.ne.s32.totalorder %s105, %s107
      %p114 = scmp.eq.s32.totalorder %s15, 3
      %p115 = por %p113, %p114
      %p116 = scmp.ne.s32.totalorder %s107, %s108
      %p117 = scmp.eq.s32.totalorder %s15, 0
      %p118 = por %p116, %p117
      %p119 = scmp.ne.s32.totalorder %s107, %s108
      %p120 = scmp.eq.s32.totalorder %s16, 3
      %p121 = por %p119, %p120
      %p123 = scmp.ne.s32.totalorder %s108, %s122
      %p124 = scmp.eq.s32.totalorder %s16, 0
      %p125 = por %p123, %p124
      %s126 = ssub.s32 %s17, %s29
      %p127 = scmp.eq.s32.totalorder %s126, 0
      %s129 = sadd.s32 %s128, 1
      %s130 = scalar_select %p127, %s128, %s129
      %p133 = pneg %p127
      %p134 = scmp.eq.s32.totalorder %s10, 3
      %p135 = por %p133, %p134
      %p136 = scmp.ne.s32.totalorder %s128, %s131
      %p137 = scmp.eq.s32.totalorder %s10, 0
      %p138 = por %p136, %p137
      %p139 = scmp.ne.s32.totalorder %s128, %s131
      %p140 = scmp.eq.s32.totalorder %s15, 3
      %p141 = por %p139, %p140
      %p142 = scmp.ne.s32.totalorder %s131, %s132
      %p143 = scmp.eq.s32.totalorder %s15, 0
      %p144 = por %p142, %p143
      %p145 = scmp.ne.s32.totalorder %s131, %s132
      %p146 = scmp.eq.s32.totalorder %s16, 3
      %p147 = por %p145, %p146
      %p149 = scmp.ne.s32.totalorder %s132, %s148
      %p150 = scmp.eq.s32.totalorder %s16, 0
      %p151 = por %p149, %p150
      %p152 = scmp.le.s32.totalorder 1, %s10
      %p153 = scmp.lt.s32.totalorder %s10, 5
      %p154 = pnand %p152, %p153
      %p155 = pneg %p154
      // Predicated region
      $region9: #{_lambda_.9} parent=5 // pred_check
        _
      $region10: #{_lambda_.9} parent=5 // pred_check_branch
        %157 = sbr.rel (%p154) target = $region12
      $region11: #{_lambda_.9} parent=5 // pred_region
        %s158 = ssub.s32 %s10, 1
        // Predicated region
        $region13: #{_lambda_.9} parent=11 // pred_check
          %p159 = pneg %p97
        $region14: #{_lambda_.9} parent=11 // pred_check_branch
          %161 = sbr.rel (%p159) target = $region16
        $region15: #{_lambda_.9} parent=11 // pred_region
          _
        $region16: #{_lambda_.9} parent=11 // pred_fallthru
          _
        // Predicated region
        $region17: #{_lambda_.9} parent=11 // pred_check
          %p162 = pneg %p118
        $region18: #{_lambda_.9} parent=11 // pred_check_branch
          %164 = sbr.rel (%p162) target = $region20
        $region19: #{_lambda_.9} parent=11 // pred_region
          _
        $region20: #{_lambda_.9} parent=11 // pred_fallthru
          _
      $region12: #{_lambda_.9} parent=5 // pred_fallthru
        _
      %p165 = scmp.lt.s32.totalorder %s10, 4
      // Predicated region
      $region21: #{_lambda_.9} parent=5 // pred_check
        %p166 = pneg %p165
      $region22: #{_lambda_.9} parent=5 // pred_check_branch
        %168 = sbr.rel (%p166) target = $region24
      $region23: #{_lambda_.9} parent=5 // pred_region
        // Predicated region
        $region25: #{_lambda_.9} parent=23 // pred_check
          %p169 = pneg %p44
        $region26: #{_lambda_.9} parent=23 // pred_check_branch
          %171 = sbr.rel (%p169) target = $region28
        $region27: #{_lambda_.9} parent=23 // pred_region
          %s172 = sand.u32 %s34, 1
          %s173 = sand.u32 %s34, 1
          %s174 = smul.addr %s173, 128
          %s175 = scalar_lea.vmem [#allocation3], %s174
          %s176 = smul.u32 16, %s17
          %s177 = smul.addr %s176, 2
          %s178 = sadd.s32 %s18, %s177
          %s179 = smul.addr %s178, 8
          %s180 = scalar_lea.vmem %s0, %s179
          // Predicated region
          $region29: #{_lambda_.9} parent=27 // pred_check
            _
          $region30: #{_lambda_.9} parent=27 // pred_check_branch
            %182 = sbr.rel (0) target = $region32
          $region31: #{_lambda_.9} parent=27 // pred_region
            // Predicated region
            $region33: #{_lambda_.9} parent=31 // pred_check
              _
            $region34: #{_lambda_.9} parent=31 // pred_check_branch
              %184 = sbr.rel (0) target = $region36
            $region35: #{_lambda_.9} parent=31 // pred_region
              // Predicated region
              $region48: #{_lambda_.9} parent=35 // pred_check
                _
              $region49: #{_lambda_.9} parent=35 // pred_check_branch
                %229 = sbr.rel (0) target = $region51
              $region50: #{_lambda_.9} parent=35 // pred_region
                loop: start=0, step=1, limit=1
                $region52: #{_lambda_.9} parent=50 // loop_pre_header
                  _
                $region53: #{_lambda_.9} parent=50 // loop_header
                  %s231 = sphi 0, %s235
                  %p232 = scmp.ge.s32.totalorder %s231, 1
                  %s236 = sphi %s180, %s180
                  %s237 = sphi %s175, %s175
                $region54: #{_lambda_.9} parent=50 // loop_header_branch
                  %234 = sbr.rel (%p232) target = $region58
                $region55: #{_lambda_.9} parent=50 // loop_body
                  %v238 = vld [vmem:[%s236] sm:$0xff]
                  %239 = vst [vmem:[%s237] sm:$0xff] %v238
                  %v240 = vld [vmem:[%s236 + $0x10] sm:$0xff]
                  %241 = vst [vmem:[%s237 + $0x8] sm:$0xff] %v240
                  %v242 = vld [vmem:[%s236 + $0x20] sm:$0xff]
                  %243 = vst [vmem:[%s237 + $0x10] sm:$0xff] %v242
                  %v244 = vld [vmem:[%s236 + $0x30] sm:$0xff]
                  %245 = vst [vmem:[%s237 + $0x18] sm:$0xff] %v244
                  %v246 = vld [vmem:[%s236 + $0x40] sm:$0xff]
                  %247 = vst [vmem:[%s237 + $0x20] sm:$0xff] %v246
                  %v248 = vld [vmem:[%s236 + $0x50] sm:$0xff]
                  %249 = vst [vmem:[%s237 + $0x28] sm:$0xff] %v248
                  %v250 = vld [vmem:[%s236 + $0x60] sm:$0xff]
                  %251 = vst [vmem:[%s237 + $0x30] sm:$0xff] %v250
                  %v252 = vld [vmem:[%s236 + $0x70] sm:$0xff]
                  %253 = vst [vmem:[%s237 + $0x38] sm:$0xff] %v252
                  %v254 = vld [vmem:[%s236 + $0x80] sm:$0xff]
                  %255 = vst [vmem:[%s237 + $0x40] sm:$0xff] %v254
                  %v256 = vld [vmem:[%s236 + $0x90] sm:$0xff]
                  %257 = vst [vmem:[%s237 + $0x48] sm:$0xff] %v256
                  %v258 = vld [vmem:[%s236 + $0xa0] sm:$0xff]
                  %259 = vst [vmem:[%s237 + $0x50] sm:$0xff] %v258
                  %v260 = vld [vmem:[%s236 + $0xb0] sm:$0xff]
                  %261 = vst [vmem:[%s237 + $0x58] sm:$0xff] %v260
                  %v262 = vld [vmem:[%s236 + $0xc0] sm:$0xff]
                  %263 = vst [vmem:[%s237 + $0x60] sm:$0xff] %v262
                  %v264 = vld [vmem:[%s236 + $0xd0] sm:$0xff]
                  %265 = vst [vmem:[%s237 + $0x68] sm:$0xff] %v264
                  %v266 = vld [vmem:[%s236 + $0xe0] sm:$0xff]
                  %267 = vst [vmem:[%s237 + $0x70] sm:$0xff] %v266
                  %v268 = vld [vmem:[%s236 + $0xf0] sm:$0xff]
                  %269 = vst [vmem:[%s237 + $0x78] sm:$0xff] %v268
                $region56: #{_lambda_.9} parent=50 // loop_footer
                  %s235 = sadd.s32 1, %s231
                $region57: #{_lambda_.9} parent=50 // loop_footer_branch
                  %230 = sbr.rel target = $region53
                $region58: #{_lambda_.9} parent=50 // loop_exit
                  _
              $region51: #{_lambda_.9} parent=35 // pred_fallthru
                _
              // Predicated region
              $region59: #{_lambda_.9} parent=35 // pred_check
                _
              $region60: #{_lambda_.9} parent=35 // pred_check_branch
                %271 = sbr.rel target = $region62
              $region61: #{_lambda_.9} parent=35 // pred_region
                _
              $region62: #{_lambda_.9} parent=35 // pred_fallthru
                _
            $region36: #{_lambda_.9} parent=31 // pred_fallthru
              _
            // Predicated region
            $region37: #{_lambda_.9} parent=31 // pred_check
              _
            $region38: #{_lambda_.9} parent=31 // pred_check_branch
              %186 = sbr.rel target = $region40
            $region39: #{_lambda_.9} parent=31 // pred_region
              loop: start=0, step=1, limit=1
              $region41: #{_lambda_.9} parent=39 // loop_pre_header
                _
              $region42: #{_lambda_.9} parent=39 // loop_header
                %s189 = sphi 0, %s193
                %p190 = scmp.ge.s32.totalorder %s189, 1
                %s194 = sphi %s180, %s180
                %s195 = sphi %s175, %s175
              $region43: #{_lambda_.9} parent=39 // loop_header_branch
                %192 = sbr.rel (%p190) target = $region47
              $region44: #{_lambda_.9} parent=39 // loop_body
                %v196 = vld [vmem:[%s194] sm:$0xff]
                %197 = vst [vmem:[%s195] sm:$0xff] %v196
                %v198 = vld [vmem:[%s194 + $0x10] sm:$0xff]
                %199 = vst [vmem:[%s195 + $0x8] sm:$0xff] %v198
                %v200 = vld [vmem:[%s194 + $0x20] sm:$0xff]
                %201 = vst [vmem:[%s195 + $0x10] sm:$0xff] %v200
                %v202 = vld [vmem:[%s194 + $0x30] sm:$0xff]
                %203 = vst [vmem:[%s195 + $0x18] sm:$0xff] %v202
                %v204 = vld [vmem:[%s194 + $0x40] sm:$0xff]
                %205 = vst [vmem:[%s195 + $0x20] sm:$0xff] %v204
                %v206 = vld [vmem:[%s194 + $0x50] sm:$0xff]
                %207 = vst [vmem:[%s195 + $0x28] sm:$0xff] %v206
                %v208 = vld [vmem:[%s194 + $0x60] sm:$0xff]
                %209 = vst [vmem:[%s195 + $0x30] sm:$0xff] %v208
                %v210 = vld [vmem:[%s194 + $0x70] sm:$0xff]
                %211 = vst [vmem:[%s195 + $0x38] sm:$0xff] %v210
                %v212 = vld [vmem:[%s194 + $0x80] sm:$0xff]
                %213 = vst [vmem:[%s195 + $0x40] sm:$0xff] %v212
                %v214 = vld [vmem:[%s194 + $0x90] sm:$0xff]
                %215 = vst [vmem:[%s195 + $0x48] sm:$0xff] %v214
                %v216 = vld [vmem:[%s194 + $0xa0] sm:$0xff]
                %217 = vst [vmem:[%s195 + $0x50] sm:$0xff] %v216
                %v218 = vld [vmem:[%s194 + $0xb0] sm:$0xff]
                %219 = vst [vmem:[%s195 + $0x58] sm:$0xff] %v218
                %v220 = vld [vmem:[%s194 + $0xc0] sm:$0xff]
                %221 = vst [vmem:[%s195 + $0x60] sm:$0xff] %v220
                %v222 = vld [vmem:[%s194 + $0xd0] sm:$0xff]
                %223 = vst [vmem:[%s195 + $0x68] sm:$0xff] %v222
                %v224 = vld [vmem:[%s194 + $0xe0] sm:$0xff]
                %225 = vst [vmem:[%s195 + $0x70] sm:$0xff] %v224
                %v226 = vld [vmem:[%s194 + $0xf0] sm:$0xff]
                %227 = vst [vmem:[%s195 + $0x78] sm:$0xff] %v226
              $region45: #{_lambda_.9} parent=39 // loop_footer
                %s193 = sadd.s32 1, %s189
              $region46: #{_lambda_.9} parent=39 // loop_footer_branch
                %188 = sbr.rel target = $region42
              $region47: #{_lambda_.9} parent=39 // loop_exit
                _
            $region40: #{_lambda_.9} parent=31 // pred_fallthru
              _
          $region32: #{_lambda_.9} parent=27 // pred_fallthru
            _
          %272 = vnop
        $region28: #{_lambda_.9} parent=23 // pred_fallthru
          _
        // Predicated region
        $region63: #{_lambda_.9} parent=23 // pred_check
          %p273 = pneg %p70
        $region64: #{_lambda_.9} parent=23 // pred_check_branch
          %275 = sbr.rel (%p273) target = $region66
        $region65: #{_lambda_.9} parent=23 // pred_region
          %s276 = smul.u32 16, %s18
          %p277 = scmp.lt.s32.totalorder %s276, 31
          %s278 = scalar_select %p277, %s276, 31
          %s279 = smul.addr %s278, 8
          %s280 = scalar_lea.vmem %s1, %s279
          %s281 = smul.u32 16, %s18
        $region66: #{_lambda_.9} parent=23 // pred_fallthru
          _
      $region24: #{_lambda_.9} parent=5 // pred_fallthru
        _
      %p282 = scmp.le.s32.totalorder 1, %s10
      %p283 = scmp.lt.s32.totalorder %s10, 5
      %p284 = pnand %p282, %p283
      %p285 = pneg %p284
      // Predicated region
      $region67: #{_lambda_.9} parent=5 // pred_check
        _
      $region68: #{_lambda_.9} parent=5 // pred_check_branch
        %287 = sbr.rel (%p284) target = $region70
      $region69: #{_lambda_.9} parent=5 // pred_region
        %s288 = ssub.s32 %s10, 1
        %s289 = sand.u32 %s37, 1
        %s290 = sand.u32 %s37, 1
        %s291 = smul.addr %s290, 128
        %s292 = scalar_lea.vmem [#allocation3], %s291
        // Predicated region
        $region71: #{_lambda_.9} parent=69 // pred_check
          %p293 = pneg %p50
        $region72: #{_lambda_.9} parent=69 // pred_check_branch
          %295 = sbr.rel (%p293) target = $region74
        $region73: #{_lambda_.9} parent=69 // pred_region
          _
        $region74: #{_lambda_.9} parent=69 // pred_fallthru
          _
        %s296 = sand.u32 %s37, 1
        %s297 = sand.u32 %s37, 1
        %s298 = smul.addr %s297, 128
        %s299 = scalar_lea.vmem [#allocation3], %s298
        %p300 = pneg %p50
        %p301 = pneg %p47
        %s302 = smul.u32 16, %s20
        %p303 = scmp.lt.s32.totalorder %s302, 31
        %s304 = scalar_select %p303, %s302, 31
        %s305 = smul.addr %s304, 8
        %s306 = scalar_lea.vmem %s1, %s305
        %p307 = pneg %p76
        %p308 = pneg %p73
        %p309 = pneg %p97
        %p310 = pneg %p94
        %p311 = pneg %p118
        %p312 = pneg %p115
        %p313 = pneg %p144
        %p314 = pneg %p141
        %s315 = smul.u32 16, %s19
        %p316 = scmp.lt.s32.totalorder %s315, 31
        %s317 = scalar_select %p316, %s315, 31
        %s318 = smul.addr %s317, 2
        %s319 = smul.addr %s318, 8
        %s320 = scalar_lea.vmem %s4, %s319
        %s321 = smul.u32 16, %s19
        %s322 = smul.u32 16, %s20
        %p323 = scmp.lt.s32.totalorder %s322, 31
        %s324 = scalar_select %p323, %s322, 31
        %s325 = smul.addr %s324, 8
        %s326 = scalar_lea.vmem %s1, %s325
        %s327 = smul.u32 16, %s20
        %s328 = smul.u32 16, %s19
        %p329 = scmp.lt.s32.totalorder %s328, 31
        %s330 = scalar_select %p329, %s328, 31
        %s331 = smul.addr %s330, 2
        %s332 = smul.addr %s331, 8
        %s333 = scalar_lea.vmem %s4, %s332
        %s334 = smul.u32 16, %s19
        %p335 = scmp.eq.s32.totalorder %s20, 0
        // Predicated region
        $region75: #{_lambda_.9} parent=69 // pred_check
          %p336 = pneg %p335
        $region76: #{_lambda_.9} parent=69 // pred_check_branch
          %338 = sbr.rel (%p336) target = $region78
        $region77: #{_lambda_.9} parent=69 // pred_region
          %339 = vst [vmem:[#allocation2] sm:$0xff] 0.0
          %340 = vst [vmem:[#allocation2 + $0x8] sm:$0xff] 0.0
          %341 = vst [vmem:[#allocation2 + $0x10] sm:$0xff] 0.0
          %342 = vst [vmem:[#allocation2 + $0x18] sm:$0xff] 0.0
          %343 = vst [vmem:[#allocation2 + $0x20] sm:$0xff] 0.0
          %344 = vst [vmem:[#allocation2 + $0x28] sm:$0xff] 0.0
          %345 = vst [vmem:[#allocation2 + $0x30] sm:$0xff] 0.0
          %346 = vst [vmem:[#allocation2 + $0x38] sm:$0xff] 0.0
          %347 = vst [vmem:[#allocation2 + $0x40] sm:$0xff] 0.0
          %348 = vst [vmem:[#allocation2 + $0x48] sm:$0xff] 0.0
          %349 = vst [vmem:[#allocation2 + $0x50] sm:$0xff] 0.0
          %350 = vst [vmem:[#allocation2 + $0x58] sm:$0xff] 0.0
          %351 = vst [vmem:[#allocation2 + $0x60] sm:$0xff] 0.0
          %352 = vst [vmem:[#allocation2 + $0x68] sm:$0xff] 0.0
          %353 = vst [vmem:[#allocation2 + $0x70] sm:$0xff] 0.0
          %354 = vst [vmem:[#allocation2 + $0x78] sm:$0xff] 0.0
        $region78: #{_lambda_.9} parent=69 // pred_fallthru
          _
        %v355 = vld [vmem:[#allocation2] sm:$0xff]
        %v356 = vld [vmem:[#allocation2 + $0x8] sm:$0xff]
        %v357 = vld [vmem:[#allocation2 + $0x10] sm:$0xff]
        %v358 = vld [vmem:[#allocation2 + $0x18] sm:$0xff]
        %v359 = vld [vmem:[#allocation2 + $0x20] sm:$0xff]
        %v360 = vld [vmem:[#allocation2 + $0x28] sm:$0xff]
        %v361 = vld [vmem:[#allocation2 + $0x30] sm:$0xff]
        %v362 = vld [vmem:[#allocation2 + $0x38] sm:$0xff]
        %v363 = vld [vmem:[#allocation2 + $0x40] sm:$0xff]
        %v364 = vld [vmem:[#allocation2 + $0x48] sm:$0xff]
        %v365 = vld [vmem:[#allocation2 + $0x50] sm:$0xff]
        %v366 = vld [vmem:[#allocation2 + $0x58] sm:$0xff]
        %v367 = vld [vmem:[#allocation2 + $0x60] sm:$0xff]
        %v368 = vld [vmem:[#allocation2 + $0x68] sm:$0xff]
        %v369 = vld [vmem:[#allocation2 + $0x70] sm:$0xff]
        %v370 = vld [vmem:[#allocation2 + $0x78] sm:$0xff]
        %v371 = vld [vmem:[%s292] sm:$0xff]
        %v372 = vld [vmem:[%s292 + $0x8] sm:$0xff]
        %v373 = vld [vmem:[%s292 + $0x10] sm:$0xff]
        %v374 = vld [vmem:[%s292 + $0x18] sm:$0xff]
        %v375 = vld [vmem:[%s292 + $0x20] sm:$0xff]
        %v376 = vld [vmem:[%s292 + $0x28] sm:$0xff]
        %v377 = vld [vmem:[%s292 + $0x30] sm:$0xff]
        %v378 = vld [vmem:[%s292 + $0x38] sm:$0xff]
        %v379 = vld [vmem:[%s292 + $0x40] sm:$0xff]
        %v380 = vld [vmem:[%s292 + $0x48] sm:$0xff]
        %v381 = vld [vmem:[%s292 + $0x50] sm:$0xff]
        %v382 = vld [vmem:[%s292 + $0x58] sm:$0xff]
        %v383 = vld [vmem:[%s292 + $0x60] sm:$0xff]
        %v384 = vld [vmem:[%s292 + $0x68] sm:$0xff]
        %v385 = vld [vmem:[%s292 + $0x70] sm:$0xff]
        %v386 = vld [vmem:[%s292 + $0x78] sm:$0xff]
        %v387 = vld [vmem:[%s326] sm:$0xff]
        %v388 = vld [vmem:[%s326 + $0x8] sm:$0xff]
        %v389 = vld [vmem:[%s326 + $0x10] sm:$0xff]
        %v390 = vld [vmem:[%s326 + $0x18] sm:$0xff]
        %v391 = vld [vmem:[%s326 + $0x20] sm:$0xff]
        %v392 = vld [vmem:[%s326 + $0x28] sm:$0xff]
        %v393 = vld [vmem:[%s326 + $0x30] sm:$0xff]
        %v394 = vld [vmem:[%s326 + $0x38] sm:$0xff]
        %v395 = vld [vmem:[%s326 + $0x40] sm:$0xff]
        %v396 = vld [vmem:[%s326 + $0x48] sm:$0xff]
        %v397 = vld [vmem:[%s326 + $0x50] sm:$0xff]
        %v398 = vld [vmem:[%s326 + $0x58] sm:$0xff]
        %v399 = vld [vmem:[%s326 + $0x60] sm:$0xff]
        %v400 = vld [vmem:[%s326 + $0x68] sm:$0xff]
        %v401 = vld [vmem:[%s326 + $0x70] sm:$0xff]
        %v402 = vld [vmem:[%s326 + $0x78] sm:$0xff]
        %403 = vmatprep.subr.mxu0 0.0
        %404 = vmatpush1.msra.mxu0 %v387
        %405 = vmatprep.subr.mxu0 0.0
        %406 = vmatpush1.msra.mxu0 %v388
        %407 = vmatprep.subr.mxu0 0.0
        %408 = vmatpush1.msra.mxu0 %v389
        %409 = vmatprep.subr.mxu0 0.0
        %410 = vmatpush1.msra.mxu0 %v390
        %411 = vmatprep.subr.mxu0 0.0
        %412 = vmatpush1.msra.mxu0 %v391
        %413 = vmatprep.subr.mxu0 0.0
        %414 = vmatpush1.msra.mxu0 %v392
        %415 = vmatprep.subr.mxu0 0.0
        %416 = vmatpush1.msra.mxu0 %v393
        %417 = vmatprep.subr.mxu0 0.0
        %418 = vmatpush1.msra.mxu0 %v394
        %419 = vmatprep.subr.mxu0 0.0
        %420 = vmatpush1.msra.mxu0 %v395
        %421 = vmatprep.subr.mxu0 0.0
        %422 = vmatpush1.msra.mxu0 %v396
        %423 = vmatprep.subr.mxu0 0.0
        %424 = vmatpush1.msra.mxu0 %v397
        %425 = vmatprep.subr.mxu0 0.0
        %426 = vmatpush1.msra.mxu0 %v398
        %427 = vmatprep.subr.mxu0 0.0
        %428 = vmatpush1.msra.mxu0 %v399
        %429 = vmatprep.subr.mxu0 0.0
        %430 = vmatpush1.msra.mxu0 %v400
        %431 = vmatprep.subr.mxu0 0.0
        %432 = vmatpush1.msra.mxu0 %v401
        %433 = vmatprep.subr.mxu0 0.0
        %434 = vmatpush1.msra.mxu0 %v402
        %435 = vmatprep.subr.mxu0 0.0
        %436 = vmatpush1.msra.mxu0 0.0
        %437 = vmatprep.subr.mxu0 0.0
        %438 = vmatpush1.msra.mxu0 0.0
        %439 = vmatprep.subr.mxu0 0.0
        %440 = vmatpush1.msra.mxu0 0.0
        %441 = vmatprep.subr.mxu0 0.0
        %442 = vmatpush1.msra.mxu0 0.0
        %443 = vmatprep.subr.mxu0 0.0
        %444 = vmatpush1.msra.mxu0 0.0
        %445 = vmatprep.subr.mxu0 0.0
        %446 = vmatpush1.msra.mxu0 0.0
        %447 = vmatprep.subr.mxu0 0.0
        %448 = vmatpush1.msra.mxu0 0.0
        %449 = vmatprep.subr.mxu0 0.0
        %450 = vmatpush1.msra.mxu0 0.0
        %451 = vmatprep.subr.mxu0 0.0
        %452 = vmatpush1.msra.mxu0 0.0
        %453 = vmatprep.subr.mxu0 0.0
        %454 = vmatpush1.msra.mxu0 0.0
        %455 = vmatprep.subr.mxu0 0.0
        %456 = vmatpush1.msra.mxu0 0.0
        %457 = vmatprep.subr.mxu0 0.0
        %458 = vmatpush1.msra.mxu0 0.0
        %459 = vmatprep.subr.mxu0 0.0
        %460 = vmatpush1.msra.mxu0 0.0
        %461 = vmatprep.subr.mxu0 0.0
        %462 = vmatpush1.msra.mxu0 0.0
        %463 = vmatprep.subr.mxu0 0.0
        %464 = vmatpush1.msra.mxu0 0.0
        %465 = vmatprep.subr.mxu0 0.0
        %466 = vmatpush1.msra.mxu0 0.0
        %467 = vmatprep.mubr.f32.mxu0 0.0
        %468 = vmatmul.mubr.f32.gmra.mrb[0].mxu0 %v371
        %v469 = vpop.f32.mrb[0].mxu0
        %v470 = vadd.f32 0.0, %v469
        %v471 = vpop.f32.mrb[0].mxu0
        %472 = vmatprep.mubr.f32.mxu0 0.0
        %473 = vmatmul.mubr.f32.gmra.mrb[0].mxu0 %v372
        %v474 = vpop.f32.mrb[0].mxu0
        %v475 = vadd.f32 0.0, %v474
        %v476 = vpop.f32.mrb[0].mxu0
        %477 = vmatprep.mubr.f32.mxu0 0.0
        %478 = vmatmul.mubr.f32.gmra.mrb[0].mxu0 %v373
        %v479 = vpop.f32.mrb[0].mxu0
        %v480 = vadd.f32 0.0, %v479
        %v481 = vpop.f32.mrb[0].mxu0
        %482 = vmatprep.mubr.f32.mxu0 0.0
        %483 = vmatmul.mubr.f32.gmra.mrb[0].mxu0 %v374
        %v484 = vpop.f32.mrb[0].mxu0
        %v485 = vadd.f32 0.0, %v484
        %v486 = vpop.f32.mrb[0].mxu0
        %487 = vmatprep.mubr.f32.mxu0 0.0
        %488 = vmatmul.mubr.f32.gmra.mrb[0].mxu0 %v375
        %v489 = vpop.f32.mrb[0].mxu0
        %v490 = vadd.f32 0.0, %v489
        %v491 = vpop.f32.mrb[0].mxu0
        %492 = vmatprep.mubr.f32.mxu0 0.0
        %493 = vmatmul.mubr.f32.gmra.mrb[0].mxu0 %v376
        %v494 = vpop.f32.mrb[0].mxu0
        %v495 = vadd.f32 0.0, %v494
        %v496 = vpop.f32.mrb[0].mxu0
        %497 = vmatprep.mubr.f32.mxu0 0.0
        %498 = vmatmul.mubr.f32.gmra.mrb[0].mxu0 %v377
        %v499 = vpop.f32.mrb[0].mxu0
        %v500 = vadd.f32 0.0, %v499
        %v501 = vpop.f32.mrb[0].mxu0
        %502 = vmatprep.mubr.f32.mxu0 0.0
        %503 = vmatmul.mubr.f32.gmra.mrb[0].mxu0 %v378
        %v504 = vpop.f32.mrb[0].mxu0
        %v505 = vadd.f32 0.0, %v504
        %v506 = vpop.f32.mrb[0].mxu0
        %507 = vmatprep.mubr.f32.mxu0 0.0
        %508 = vmatmul.mubr.f32.gmra.mrb[0].mxu0 %v379
        %v509 = vpop.f32.mrb[0].mxu0
        %v510 = vadd.f32 0.0, %v509
        %v511 = vpop.f32.mrb[0].mxu0
        %512 = vmatprep.mubr.f32.mxu0 0.0
        %513 = vmatmul.mubr.f32.gmra.mrb[0].mxu0 %v380
        %v514 = vpop.f32.mrb[0].mxu0
        %v515 = vadd.f32 0.0, %v514
        %v516 = vpop.f32.mrb[0].mxu0
        %517 = vmatprep.mubr.f32.mxu0 0.0
        %518 = vmatmul.mubr.f32.gmra.mrb[0].mxu0 %v381
        %v519 = vpop.f32.mrb[0].mxu0
        %v520 = vadd.f32 0.0, %v519
        %v521 = vpop.f32.mrb[0].mxu0
        %522 = vmatprep.mubr.f32.mxu0 0.0
        %523 = vmatmul.mubr.f32.gmra.mrb[0].mxu0 %v382
        %v524 = vpop.f32.mrb[0].mxu0
        %v525 = vadd.f32 0.0, %v524
        %v526 = vpop.f32.mrb[0].mxu0
        %527 = vmatprep.mubr.f32.mxu0 0.0
        %528 = vmatmul.mubr.f32.gmra.mrb[0].mxu0 %v383
        %v529 = vpop.f32.mrb[0].mxu0
        %v530 = vadd.f32 0.0, %v529
        %v531 = vpop.f32.mrb[0].mxu0
        %532 = vmatprep.mubr.f32.mxu0 0.0
        %533 = vmatmul.mubr.f32.gmra.mrb[0].mxu0 %v384
        %v534 = vpop.f32.mrb[0].mxu0
        %v535 = vadd.f32 0.0, %v534
        %v536 = vpop.f32.mrb[0].mxu0
        %537 = vmatprep.mubr.f32.mxu0 0.0
        %538 = vmatmul.mubr.f32.gmra.mrb[0].mxu0 %v385
        %v539 = vpop.f32.mrb[0].mxu0
        %v540 = vadd.f32 0.0, %v539
        %v541 = vpop.f32.mrb[0].mxu0
        %542 = vmatprep.mubr.f32.mxu0 0.0
        %543 = vmatmul.mubr.f32.gmra.mrb[0].mxu0 %v386
        %v544 = vpop.f32.mrb[0].mxu0
        %v545 = vadd.f32 0.0, %v544
        %v546 = vpop.f32.mrb[0].mxu0
        %547 = vdwg.mxu0
        %v548 = vadd.f32 %v355, %v470
        %v549 = vadd.f32 %v356, %v475
        %v550 = vadd.f32 %v357, %v480
        %v551 = vadd.f32 %v358, %v485
        %v552 = vadd.f32 %v359, %v490
        %v553 = vadd.f32 %v360, %v495
        %v554 = vadd.f32 %v361, %v500
        %v555 = vadd.f32 %v362, %v505
        %v556 = vadd.f32 %v363, %v510
        %v557 = vadd.f32 %v364, %v515
        %v558 = vadd.f32 %v365, %v520
        %v559 = vadd.f32 %v366, %v525
        %v560 = vadd.f32 %v367, %v530
        %v561 = vadd.f32 %v368, %v535
        %v562 = vadd.f32 %v369, %v540
        %v563 = vadd.f32 %v370, %v545
        %564 = vst [vmem:[#allocation2] sm:$0xff] %v548
        %565 = vst [vmem:[#allocation2 + $0x8] sm:$0xff] %v549
        %566 = vst [vmem:[#allocation2 + $0x10] sm:$0xff] %v550
        %567 = vst [vmem:[#allocation2 + $0x18] sm:$0xff] %v551
        %568 = vst [vmem:[#allocation2 + $0x20] sm:$0xff] %v552
        %569 = vst [vmem:[#allocation2 + $0x28] sm:$0xff] %v553
        %570 = vst [vmem:[#allocation2 + $0x30] sm:$0xff] %v554
        %571 = vst [vmem:[#allocation2 + $0x38] sm:$0xff] %v555
        %572 = vst [vmem:[#allocation2 + $0x40] sm:$0xff] %v556
        %573 = vst [vmem:[#allocation2 + $0x48] sm:$0xff] %v557
        %574 = vst [vmem:[#allocation2 + $0x50] sm:$0xff] %v558
        %575 = vst [vmem:[#allocation2 + $0x58] sm:$0xff] %v559
        %576 = vst [vmem:[#allocation2 + $0x60] sm:$0xff] %v560
        %577 = vst [vmem:[#allocation2 + $0x68] sm:$0xff] %v561
        %578 = vst [vmem:[#allocation2 + $0x70] sm:$0xff] %v562
        %579 = vst [vmem:[#allocation2 + $0x78] sm:$0xff] %v563
        %p580 = scmp.eq.s32.totalorder %s20, 1
        // Predicated region
        $region79: #{_lambda_.9} parent=69 // pred_check
          %p581 = pneg %p580
        $region80: #{_lambda_.9} parent=69 // pred_check_branch
          %583 = sbr.rel (%p581) target = $region82
        $region81: #{_lambda_.9} parent=69 // pred_region
          %v584 = vld [vmem:[#allocation2] sm:$0xff]
          %v585 = vld [vmem:[#allocation2 + $0x8] sm:$0xff]
          %v586 = vld [vmem:[#allocation2 + $0x10] sm:$0xff]
          %v587 = vld [vmem:[#allocation2 + $0x18] sm:$0xff]
          %v588 = vld [vmem:[#allocation2 + $0x20] sm:$0xff]
          %v589 = vld [vmem:[#allocation2 + $0x28] sm:$0xff]
          %v590 = vld [vmem:[#allocation2 + $0x30] sm:$0xff]
          %v591 = vld [vmem:[#allocation2 + $0x38] sm:$0xff]
          %v592 = vld [vmem:[#allocation2 + $0x40] sm:$0xff]
          %v593 = vld [vmem:[#allocation2 + $0x48] sm:$0xff]
          %v594 = vld [vmem:[#allocation2 + $0x50] sm:$0xff]
          %v595 = vld [vmem:[#allocation2 + $0x58] sm:$0xff]
          %v596 = vld [vmem:[#allocation2 + $0x60] sm:$0xff]
          %v597 = vld [vmem:[#allocation2 + $0x68] sm:$0xff]
          %v598 = vld [vmem:[#allocation2 + $0x70] sm:$0xff]
          %v599 = vld [vmem:[#allocation2 + $0x78] sm:$0xff]
          %v600 = vld [vmem:[%s2] sm:$0x1]
          %v602 = vlaneseq
          %v603 = vshrl.u32 %v602, 7
          %v604 = vsub.s32 0, %v603
          %v605 = vrot.slane %v600, %v604
          %v607 = vadd.f32 %v584, %v605
          %v608 = vadd.f32 %v585, %v605
          %v609 = vadd.f32 %v586, %v605
          %v610 = vadd.f32 %v587, %v605
          %v611 = vadd.f32 %v588, %v605
          %v612 = vadd.f32 %v589, %v605
          %v613 = vadd.f32 %v590, %v605
          %v614 = vadd.f32 %v591, %v605
          %v615 = vadd.f32 %v592, %v605
          %v616 = vadd.f32 %v593, %v605
          %v617 = vadd.f32 %v594, %v605
          %v618 = vadd.f32 %v595, %v605
          %v619 = vadd.f32 %v596, %v605
          %v620 = vadd.f32 %v597, %v605
          %v621 = vadd.f32 %v598, %v605
          %v622 = vadd.f32 %v599, %v605
          %v623 = vld [vmem:[%s3] sm:$0xff]
          %v624 = vld [vmem:[%s3 + $0x8] sm:$0xff]
          %v625 = vld [vmem:[%s3 + $0x10] sm:$0xff]
          %v626 = vld [vmem:[%s3 + $0x18] sm:$0xff]
          %v627 = vld [vmem:[%s3 + $0x20] sm:$0xff]
          %v628 = vld [vmem:[%s3 + $0x28] sm:$0xff]
          %v629 = vld [vmem:[%s3 + $0x30] sm:$0xff]
          %v630 = vld [vmem:[%s3 + $0x38] sm:$0xff]
          %v631 = vld [vmem:[%s3 + $0x40] sm:$0xff]
          %v632 = vld [vmem:[%s3 + $0x48] sm:$0xff]
          %v633 = vld [vmem:[%s3 + $0x50] sm:$0xff]
          %v634 = vld [vmem:[%s3 + $0x58] sm:$0xff]
          %v635 = vld [vmem:[%s3 + $0x60] sm:$0xff]
          %v636 = vld [vmem:[%s3 + $0x68] sm:$0xff]
          %v637 = vld [vmem:[%s3 + $0x70] sm:$0xff]
          %v638 = vld [vmem:[%s3 + $0x78] sm:$0xff]
          %v639 = vld [vmem:[%s3 + $0x80] sm:$0xff]
          %v640 = vld [vmem:[%s3 + $0x88] sm:$0xff]
          %v641 = vld [vmem:[%s3 + $0x90] sm:$0xff]
          %v642 = vld [vmem:[%s3 + $0x98] sm:$0xff]
          %v643 = vld [vmem:[%s3 + $0xa0] sm:$0xff]
          %v644 = vld [vmem:[%s3 + $0xa8] sm:$0xff]
          %v645 = vld [vmem:[%s3 + $0xb0] sm:$0xff]
          %v646 = vld [vmem:[%s3 + $0xb8] sm:$0xff]
          %v647 = vld [vmem:[%s3 + $0xc0] sm:$0xff]
          %v648 = vld [vmem:[%s3 + $0xc8] sm:$0xff]
          %v649 = vld [vmem:[%s3 + $0xd0] sm:$0xff]
          %v650 = vld [vmem:[%s3 + $0xd8] sm:$0xff]
          %v651 = vld [vmem:[%s3 + $0xe0] sm:$0xff]
          %v652 = vld [vmem:[%s3 + $0xe8] sm:$0xff]
          %v653 = vld [vmem:[%s3 + $0xf0] sm:$0xff]
          %v654 = vld [vmem:[%s3 + $0xf8] sm:$0xff]
          %655 = vmatprep.subr.mxu0 %v624
          %656 = vmatpush1.msra.mxu0 %v623
          %657 = vmatprep.subr.mxu0 %v626
          %658 = vmatpush1.msra.mxu0 %v625
          %659 = vmatprep.subr.mxu0 %v628
          %660 = vmatpush1.msra.mxu0 %v627
          %661 = vmatprep.subr.mxu0 %v630
          %662 = vmatpush1.msra.mxu0 %v629
          %663 = vmatprep.subr.mxu0 %v632
          %664 = vmatpush1.msra.mxu0 %v631
          %665 = vmatprep.subr.mxu0 %v634
          %666 = vmatpush1.msra.mxu0 %v633
          %667 = vmatprep.subr.mxu0 %v636
          %668 = vmatpush1.msra.mxu0 %v635
          %669 = vmatprep.subr.mxu0 %v638
          %670 = vmatpush1.msra.mxu0 %v637
          %671 = vmatprep.subr.mxu0 %v640
          %672 = vmatpush1.msra.mxu0 %v639
          %673 = vmatprep.subr.mxu0 %v642
          %674 = vmatpush1.msra.mxu0 %v641
          %675 = vmatprep.subr.mxu0 %v644
          %676 = vmatpush1.msra.mxu0 %v643
          %677 = vmatprep.subr.mxu0 %v646
          %678 = vmatpush1.msra.mxu0 %v645
          %679 = vmatprep.subr.mxu0 %v648
          %680 = vmatpush1.msra.mxu0 %v647
          %681 = vmatprep.subr.mxu0 %v650
          %682 = vmatpush1.msra.mxu0 %v649
          %683 = vmatprep.subr.mxu0 %v652
          %684 = vmatpush1.msra.mxu0 %v651
          %685 = vmatprep.subr.mxu0 %v654
          %686 = vmatpush1.msra.mxu0 %v653
          %687 = vmatprep.subr.mxu0 0.0
          %688 = vmatpush1.msra.mxu0 0.0
          %689 = vmatprep.subr.mxu0 0.0
          %690 = vmatpush1.msra.mxu0 0.0
          %691 = vmatprep.subr.mxu0 0.0
          %692 = vmatpush1.msra.mxu0 0.0
          %693 = vmatprep.subr.mxu0 0.0
          %694 = vmatpush1.msra.mxu0 0.0
          %695 = vmatprep.subr.mxu0 0.0
          %696 = vmatpush1.msra.mxu0 0.0
          %697 = vmatprep.subr.mxu0 0.0
          %698 = vmatpush1.msra.mxu0 0.0
          %699 = vmatprep.subr.mxu0 0.0
          %700 = vmatpush1.msra.mxu0 0.0
          %701 = vmatprep.subr.mxu0 0.0
          %702 = vmatpush1.msra.mxu0 0.0
          %703 = vmatprep.subr.mxu0 0.0
          %704 = vmatpush1.msra.mxu0 0.0
          %705 = vmatprep.subr.mxu0 0.0
          %706 = vmatpush1.msra.mxu0 0.0
          %707 = vmatprep.subr.mxu0 0.0
          %708 = vmatpush1.msra.mxu0 0.0
          %709 = vmatprep.subr.mxu0 0.0
          %710 = vmatpush1.msra.mxu0 0.0
          %711 = vmatprep.subr.mxu0 0.0
          %712 = vmatpush1.msra.mxu0 0.0
          %713 = vmatprep.subr.mxu0 0.0
          %714 = vmatpush1.msra.mxu0 0.0
          %715 = vmatprep.subr.mxu0 0.0
          %716 = vmatpush1.msra.mxu0 0.0
          %717 = vmatprep.subr.mxu0 0.0
          %718 = vmatpush1.msra.mxu0 0.0
          %719 = vmatprep.mubr.f32.mxu0 0.0
          %720 = vmatmul.mubr.f32.gmra.mrb[0].mxu0 %v607
          %v721 = vpop.f32.mrb[0].mxu0
          %v722 = vadd.f32 0.0, %v721
          %v723 = vpop.f32.mrb[0].mxu0
          %v724 = vadd.f32 0.0, %v723
          %725 = vmatprep.mubr.f32.mxu0 0.0
          %726 = vmatmul.mubr.f32.gmra.mrb[0].mxu0 %v608
          %v727 = vpop.f32.mrb[0].mxu0
          %v728 = vadd.f32 0.0, %v727
          %v729 = vpop.f32.mrb[0].mxu0
          %v730 = vadd.f32 0.0, %v729
          %731 = vmatprep.mubr.f32.mxu0 0.0
          %732 = vmatmul.mubr.f32.gmra.mrb[0].mxu0 %v609
          %v733 = vpop.f32.mrb[0].mxu0
          %v734 = vadd.f32 0.0, %v733
          %v735 = vpop.f32.mrb[0].mxu0
          %v736 = vadd.f32 0.0, %v735
          %737 = vmatprep.mubr.f32.mxu0 0.0
          %738 = vmatmul.mubr.f32.gmra.mrb[0].mxu0 %v610
          %v739 = vpop.f32.mrb[0].mxu0
          %v740 = vadd.f32 0.0, %v739
          %v741 = vpop.f32.mrb[0].mxu0
          %v742 = vadd.f32 0.0, %v741
          %743 = vmatprep.mubr.f32.mxu0 0.0
          %744 = vmatmul.mubr.f32.gmra.mrb[0].mxu0 %v611
          %v745 = vpop.f32.mrb[0].mxu0
          %v746 = vadd.f32 0.0, %v745
          %v747 = vpop.f32.mrb[0].mxu0
          %v748 = vadd.f32 0.0, %v747
          %749 = vmatprep.mubr.f32.mxu0 0.0
          %750 = vmatmul.mubr.f32.gmra.mrb[0].mxu0 %v612
          %v751 = vpop.f32.mrb[0].mxu0
          %v752 = vadd.f32 0.0, %v751
          %v753 = vpop.f32.mrb[0].mxu0
          %v754 = vadd.f32 0.0, %v753
          %755 = vmatprep.mubr.f32.mxu0 0.0
          %756 = vmatmul.mubr.f32.gmra.mrb[0].mxu0 %v613
          %v757 = vpop.f32.mrb[0].mxu0
          %v758 = vadd.f32 0.0, %v757
          %v759 = vpop.f32.mrb[0].mxu0
          %v760 = vadd.f32 0.0, %v759
          %761 = vmatprep.mubr.f32.mxu0 0.0
          %762 = vmatmul.mubr.f32.gmra.mrb[0].mxu0 %v614
          %v763 = vpop.f32.mrb[0].mxu0
          %v764 = vadd.f32 0.0, %v763
          %v765 = vpop.f32.mrb[0].mxu0
          %v766 = vadd.f32 0.0, %v765
          %767 = vmatprep.mubr.f32.mxu0 0.0
          %768 = vmatmul.mubr.f32.gmra.mrb[0].mxu0 %v615
          %v769 = vpop.f32.mrb[0].mxu0
          %v770 = vadd.f32 0.0, %v769
          %v771 = vpop.f32.mrb[0].mxu0
          %v772 = vadd.f32 0.0, %v771
          %773 = vmatprep.mubr.f32.mxu0 0.0
          %774 = vmatmul.mubr.f32.gmra.mrb[0].mxu0 %v616
          %v775 = vpop.f32.mrb[0].mxu0
          %v776 = vadd.f32 0.0, %v775
          %v777 = vpop.f32.mrb[0].mxu0
          %v778 = vadd.f32 0.0, %v777
          %779 = vmatprep.mubr.f32.mxu0 0.0
          %780 = vmatmul.mubr.f32.gmra.mrb[0].mxu0 %v617
          %v781 = vpop.f32.mrb[0].mxu0
          %v782 = vadd.f32 0.0, %v781
          %v783 = vpop.f32.mrb[0].mxu0
          %v784 = vadd.f32 0.0, %v783
          %785 = vmatprep.mubr.f32.mxu0 0.0
          %786 = vmatmul.mubr.f32.gmra.mrb[0].mxu0 %v618
          %v787 = vpop.f32.mrb[0].mxu0
          %v788 = vadd.f32 0.0, %v787
          %v789 = vpop.f32.mrb[0].mxu0
          %v790 = vadd.f32 0.0, %v789
          %791 = vmatprep.mubr.f32.mxu0 0.0
          %792 = vmatmul.mubr.f32.gmra.mrb[0].mxu0 %v619
          %v793 = vpop.f32.mrb[0].mxu0
          %v794 = vadd.f32 0.0, %v793
          %v795 = vpop.f32.mrb[0].mxu0
          %v796 = vadd.f32 0.0, %v795
          %797 = vmatprep.mubr.f32.mxu0 0.0
          %798 = vmatmul.mubr.f32.gmra.mrb[0].mxu0 %v620
          %v799 = vpop.f32.mrb[0].mxu0
          %v800 = vadd.f32 0.0, %v799
          %v801 = vpop.f32.mrb[0].mxu0
          %v802 = vadd.f32 0.0, %v801
          %803 = vmatprep.mubr.f32.mxu0 0.0
          %804 = vmatmul.mubr.f32.gmra.mrb[0].mxu0 %v621
          %v805 = vpop.f32.mrb[0].mxu0
          %v806 = vadd.f32 0.0, %v805
          %v807 = vpop.f32.mrb[0].mxu0
          %v808 = vadd.f32 0.0, %v807
          %809 = vmatprep.mubr.f32.mxu0 0.0
          %810 = vmatmul.mubr.f32.gmra.mrb[0].mxu0 %v622
          %v811 = vpop.f32.mrb[0].mxu0
          %v812 = vadd.f32 0.0, %v811
          %v813 = vpop.f32.mrb[0].mxu0
          %v814 = vadd.f32 0.0, %v813
          %815 = vdwg.mxu0
          %816 = vst [vmem:[%s333] sm:$0xff] %v722
          %817 = vst [vmem:[%s333 + $0x8] sm:$0xff] %v724
          %818 = vst [vmem:[%s333 + $0x10] sm:$0xff] %v728
          %819 = vst [vmem:[%s333 + $0x18] sm:$0xff] %v730
          %820 = vst [vmem:[%s333 + $0x20] sm:$0xff] %v734
          %821 = vst [vmem:[%s333 + $0x28] sm:$0xff] %v736
          %822 = vst [vmem:[%s333 + $0x30] sm:$0xff] %v740
          %823 = vst [vmem:[%s333 + $0x38] sm:$0xff] %v742
          %824 = vst [vmem:[%s333 + $0x40] sm:$0xff] %v746
          %825 = vst [vmem:[%s333 + $0x48] sm:$0xff] %v748
          %826 = vst [vmem:[%s333 + $0x50] sm:$0xff] %v752
          %827 = vst [vmem:[%s333 + $0x58] sm:$0xff] %v754
          %828 = vst [vmem:[%s333 + $0x60] sm:$0xff] %v758
          %829 = vst [vmem:[%s333 + $0x68] sm:$0xff] %v760
          %830 = vst [vmem:[%s333 + $0x70] sm:$0xff] %v764
          %831 = vst [vmem:[%s333 + $0x78] sm:$0xff] %v766
          %832 = vst [vmem:[%s333 + $0x80] sm:$0xff] %v770
          %833 = vst [vmem:[%s333 + $0x88] sm:$0xff] %v772
          %834 = vst [vmem:[%s333 + $0x90] sm:$0xff] %v776
          %835 = vst [vmem:[%s333 + $0x98] sm:$0xff] %v778
          %836 = vst [vmem:[%s333 + $0xa0] sm:$0xff] %v782
          %837 = vst [vmem:[%s333 + $0xa8] sm:$0xff] %v784
          %838 = vst [vmem:[%s333 + $0xb0] sm:$0xff] %v788
          %839 = vst [vmem:[%s333 + $0xb8] sm:$0xff] %v790
          %840 = vst [vmem:[%s333 + $0xc0] sm:$0xff] %v794
          %841 = vst [vmem:[%s333 + $0xc8] sm:$0xff] %v796
          %842 = vst [vmem:[%s333 + $0xd0] sm:$0xff] %v800
          %843 = vst [vmem:[%s333 + $0xd8] sm:$0xff] %v802
          %844 = vst [vmem:[%s333 + $0xe0] sm:$0xff] %v806
          %845 = vst [vmem:[%s333 + $0xe8] sm:$0xff] %v808
          %846 = vst [vmem:[%s333 + $0xf0] sm:$0xff] %v812
          %847 = vst [vmem:[%s333 + $0xf8] sm:$0xff] %v814
        $region82: #{_lambda_.9} parent=69 // pred_fallthru
          _
        %s848 = smul.u32 16, %s19
        %p849 = scmp.lt.s32.totalorder %s848, 31
        %s850 = scalar_select %p849, %s848, 31
        %s851 = smul.addr %s850, 2
        %s852 = smul.addr %s851, 8
        %s853 = scalar_lea.vmem %s4, %s852
        // Predicated region
        $region83: #{_lambda_.9} parent=69 // pred_check
          %p854 = pneg %p141
        $region84: #{_lambda_.9} parent=69 // pred_check_branch
          %856 = sbr.rel (%p854) target = $region86
        $region85: #{_lambda_.9} parent=69 // pred_region
          %s857 = smul.u32 16, %s19
        $region86: #{_lambda_.9} parent=69 // pred_fallthru
          _
      $region70: #{_lambda_.9} parent=5 // pred_fallthru
        _
      %p858 = scmp.le.s32.totalorder 2, %s10
      // Predicated region
      $region87: #{_lambda_.9} parent=5 // pred_check
        %p859 = pneg %p858
      $region88: #{_lambda_.9} parent=5 // pred_check_branch
        %861 = sbr.rel (%p859) target = $region90
      $region89: #{_lambda_.9} parent=5 // pred_region
        %s862 = ssub.s32 %s10, 2
        // Predicated region
        $region91: #{_lambda_.9} parent=89 // pred_check
          %p863 = pneg %p147
        $region92: #{_lambda_.9} parent=89 // pred_check_branch
          %865 = sbr.rel (%p863) target = $region94
        $region93: #{_lambda_.9} parent=89 // pred_region
          %s866 = smul.u32 16, %s21
          %p867 = scmp.lt.s32.totalorder %s866, 31
          %s868 = scalar_select %p867, %s866, 31
          %s869 = smul.addr %s868, 2
          %s870 = smul.addr %s869, 8
          %s871 = scalar_lea.vmem %s4, %s870
        $region94: #{_lambda_.9} parent=89 // pred_fallthru
          _
      $region90: #{_lambda_.9} parent=5 // pred_fallthru
        _
    $region6: #{_lambda_.9} parent=1 // loop_footer
      %s14 = sadd.s32 1, %s10
    $region7: #{_lambda_.9} parent=1 // loop_footer_branch
      %9 = sbr.rel target = $region3
    $region8: #{_lambda_.9} parent=1 // loop_exit
      _

// kernel: _lambda_.10
$region0: #{_lambda_.10}
  #allocation0 [shape = 'u32[]', space=smem, size = 0x4, offset = 0x4, fixed_abs, tag = 'smem constant byte address 0x4 - core index']
  #allocation1 [shape = 'u32[144,128]{1,0:T(1,128)}', space=vmem, size = 0x12000, scoped, tag = 'internal scratch']
  #allocation2 [shape = 'f32[128,256]{1,0:T(8,128)}', space=vmem, size = 0x20000, scoped, tag = 'scratch operand']
  %s0 = inlined_call_operand.vmem [shape: f32[256,256], index: 0, kind: input, shape index: {}]
  %s1 = inlined_call_operand.vmem [shape: f32[256,256], index: 1, kind: input, shape index: {}]
  %s2 = inlined_call_operand.vmem [shape: f32[1,256], index: 2, kind: input, shape index: {}]
  %s3 = inlined_call_operand.vmem [shape: f32[256,256], index: 3, kind: output, shape index: {}]
  %s4 = sld [smem:[#allocation0]]
  $region91: #{_lambda_.10} parent=0
    _
  %s6 = ssub.s32 1, %s4
  %s7 = scalar_select 0, %s6, %s4
  $region1: #{_lambda_.10} parent=0
    #allocation3 [shape = 'u8[131072]{0}', space=vmem, size = 0x20000, scoped, tag = 'input window, operand 0']
    loop: start=0, step=1, limit=6
    $region2: #{_lambda_.10} parent=1 // loop_pre_header
      _
    $region3: #{_lambda_.10} parent=1 // loop_header
      %s9 = sphi 0, %s13
      %p10 = scmp.ge.s32.totalorder %s9, 6
      %s16 = sphi 0, %s28
      %s17 = sphi 0, %s24
      %s18 = sphi 0, %s16
      %s19 = sphi 0, %s17
      %s20 = sphi 0, %s18
      %s21 = sphi 0, %s19
      %s33 = sphi 0, %s35
      %s36 = sphi 0, %s33
      %s37 = sphi 0, %s36
      %s53 = sphi 0, %s37
      %s59 = sphi 0, %s61
      %s62 = sphi 0, %s59
      %s63 = sphi 0, %s62
      %s79 = sphi 0, %s63
      %s83 = sphi 0, %s83
      %s85 = sphi 0, %s83
      %s86 = sphi 0, %s85
      %s100 = sphi 0, %s86
      %s106 = sphi 0, %s108
      %s109 = sphi 0, %s106
      %s110 = sphi 0, %s109
      %s126 = sphi 0, %s110
    $region4: #{_lambda_.10} parent=1 // loop_header_branch
      %12 = sbr.rel (%p10) target = $region8
    $region5: #{_lambda_.10} parent=1 // loop_body
      %s14 = ssub.s32 %s9, 1
      %s15 = ssub.s32 %s9, 2
      %s22 = sadd.s32 1, %s17
      %p23 = scmp.ge.s32.totalorder %s22, 2
      %s24 = scalar_select %p23, 0, %s22
      %s25 = sadd.s32 1, %s16
      %s26 = scalar_select %p23, %s25, %s16
      %p27 = scmp.ge.s32.totalorder %s26, 2
      %s28 = scalar_select %p27, 0, %s26
      %s29 = ssub.s32 %s16, %s28
      %s30 = ssub.s32 %s17, %s24
      %s31 = sor.u32 %s29, %s30
      %p32 = scmp.eq.s32.totalorder %s31, 0
      %s34 = sadd.s32 %s33, 1
      %s35 = scalar_select %p32, %s33, %s34
      %p38 = pneg %p32
      %p39 = scmp.eq.s32.totalorder %s9, 3
      %p40 = por %p38, %p39
      %p41 = scmp.ne.s32.totalorder %s33, %s36
      %p42 = scmp.eq.s32.totalorder %s9, 0
      %p43 = por %p41, %p42
      %p44 = scmp.ne.s32.totalorder %s33, %s36
      %p45 = scmp.eq.s32.totalorder %s14, 3
      %p46 = por %p44, %p45
      %p47 = scmp.ne.s32.totalorder %s36, %s37
      %p48 = scmp.eq.s32.totalorder %s14, 0
      %p49 = por %p47, %p48
      %p50 = scmp.ne.s32.totalorder %s36, %s37
      %p51 = scmp.eq.s32.totalorder %s15, 3
      %p52 = por %p50, %p51
      %p54 = scmp.ne.s32.totalorder %s37, %s53
      %p55 = scmp.eq.s32.totalorder %s15, 0
      %p56 = por %p54, %p55
      %s57 = ssub.s32 %s17, %s24
      %p58 = scmp.eq.s32.totalorder %s57, 0
      %s60 = sadd.s32 %s59, 1
      %s61 = scalar_select %p58, %s59, %s60
      %p64 = pneg %p58
      %p65 = scmp.eq.s32.totalorder %s9, 3
      %p66 = por %p64, %p65
      %p67 = scmp.ne.s32.totalorder %s59, %s62
      %p68 = scmp.eq.s32.totalorder %s9, 0
      %p69 = por %p67, %p68
      %p70 = scmp.ne.s32.totalorder %s59, %s62
      %p71 = scmp.eq.s32.totalorder %s14, 3
      %p72 = por %p70, %p71
      %p73 = scmp.ne.s32.totalorder %s62, %s63
      %p74 = scmp.eq.s32.totalorder %s14, 0
      %p75 = por %p73, %p74
      %p76 = scmp.ne.s32.totalorder %s62, %s63
      %p77 = scmp.eq.s32.totalorder %s15, 3
      %p78 = por %p76, %p77
      %p80 = scmp.ne.s32.totalorder %s63, %s79
      %p81 = scmp.eq.s32.totalorder %s15, 0
      %p82 = por %p80, %p81
      %s84 = sadd.s32 %s83, 1
      %p87 = scmp.eq.s32.totalorder %s9, 3
      %p88 = scmp.ne.s32.totalorder %s83, %s85
      %p89 = scmp.eq.s32.totalorder %s9, 0
      %p90 = por %p88, %p89
      %p91 = scmp.ne.s32.totalorder %s83, %s85
      %p92 = scmp.eq.s32.totalorder %s14, 3
      %p93 = por %p91, %p92
      %p94 = scmp.ne.s32.totalorder %s85, %s86
      %p95 = scmp.eq.s32.totalorder %s14, 0
      %p96 = por %p94, %p95
      %p97 = scmp.ne.s32.totalorder %s85, %s86
      %p98 = scmp.eq.s32.totalorder %s15, 3
      %p99 = por %p97, %p98
      %p101 = scmp.ne.s32.totalorder %s86, %s100
      %p102 = scmp.eq.s32.totalorder %s15, 0
      %p103 = por %p101, %p102
      %s104 = ssub.s32 %s16, %s28
      %p105 = scmp.eq.s32.totalorder %s104, 0
      %s107 = sadd.s32 %s106, 1
      %s108 = scalar_select %p105, %s106, %s107
      %p111 = pneg %p105
      %p112 = scmp.eq.s32.totalorder %s9, 3
      %p113 = por %p111, %p112
      %p114 = scmp.ne.s32.totalorder %s106, %s109
      %p115 = scmp.eq.s32.totalorder %s9, 0
      %p116 = por %p114, %p115
      %p117 = scmp.ne.s32.totalorder %s106, %s109
      %p118 = scmp.eq.s32.totalorder %s14, 3
      %p119 = por %p117, %p118
      %p120 = scmp.ne.s32.totalorder %s109, %s110
      %p121 = scmp.eq.s32.totalorder %s14, 0
      %p122 = por %p120, %p121
      %p123 = scmp.ne.s32.totalorder %s109, %s110
      %p124 = scmp.eq.s32.totalorder %s15, 3
      %p125 = por %p123, %p124
      %p127 = scmp.ne.s32.totalorder %s110, %s126
      %p128 = scmp.eq.s32.totalorder %s15, 0
      %p129 = por %p127, %p128
      %p130 = scmp.le.s32.totalorder 1, %s9
      %p131 = scmp.lt.s32.totalorder %s9, 5
      %p132 = pnand %p130, %p131
      %p133 = pneg %p132
      // Predicated region
      $region9: #{_lambda_.10} parent=5 // pred_check
        _
      $region10: #{_lambda_.10} parent=5 // pred_check_branch
        %135 = sbr.rel (%p132) target = $region12
      $region11: #{_lambda_.10} parent=5 // pred_region
        %s136 = ssub.s32 %s9, 1
        // Predicated region
        $region13: #{_lambda_.10} parent=11 // pred_check
          %p137 = pneg %p96
        $region14: #{_lambda_.10} parent=11 // pred_check_branch
          %139 = sbr.rel (%p137) target = $region16
        $region15: #{_lambda_.10} parent=11 // pred_region
          _
        $region16: #{_lambda_.10} parent=11 // pred_fallthru
          _
      $region12: #{_lambda_.10} parent=5 // pred_fallthru
        _
      %p140 = scmp.lt.s32.totalorder %s9, 4
      // Predicated region
      $region17: #{_lambda_.10} parent=5 // pred_check
        %p141 = pneg %p140
      $region18: #{_lambda_.10} parent=5 // pred_check_branch
        %143 = sbr.rel (%p141) target = $region20
      $region19: #{_lambda_.10} parent=5 // pred_region
        // Predicated region
        $region21: #{_lambda_.10} parent=19 // pred_check
          %p144 = pneg %p43
        $region22: #{_lambda_.10} parent=19 // pred_check_branch
          %146 = sbr.rel (%p144) target = $region24
        $region23: #{_lambda_.10} parent=19 // pred_region
          %s147 = sand.u32 %s33, 1
          %s148 = sand.u32 %s33, 1
          %s149 = smul.addr %s148, 128
          %s150 = scalar_lea.vmem [#allocation3], %s149
          %s151 = smul.u32 16, %s16
          %s152 = smul.addr %s151, 2
          %s153 = sadd.s32 %s17, %s152
          %s154 = smul.addr %s153, 8
          %s155 = scalar_lea.vmem %s0, %s154
          // Predicated region
          $region25: #{_lambda_.10} parent=23 // pred_check
            _
          $region26: #{_lambda_.10} parent=23 // pred_check_branch
            %157 = sbr.rel (0) target = $region28
          $region27: #{_lambda_.10} parent=23 // pred_region
            // Predicated region
            $region29: #{_lambda_.10} parent=27 // pred_check
              _
            $region30: #{_lambda_.10} parent=27 // pred_check_branch
              %159 = sbr.rel (0) target = $region32
            $region31: #{_lambda_.10} parent=27 // pred_region
              // Predicated region
              $region44: #{_lambda_.10} parent=31 // pred_check
                _
              $region45: #{_lambda_.10} parent=31 // pred_check_branch
                %204 = sbr.rel (0) target = $region47
              $region46: #{_lambda_.10} parent=31 // pred_region
                loop: start=0, step=1, limit=1
                $region48: #{_lambda_.10} parent=46 // loop_pre_header
                  _
                $region49: #{_lambda_.10} parent=46 // loop_header
                  %s206 = sphi 0, %s210
                  %p207 = scmp.ge.s32.totalorder %s206, 1
                  %s211 = sphi %s155, %s155
                  %s212 = sphi %s150, %s150
                $region50: #{_lambda_.10} parent=46 // loop_header_branch
                  %209 = sbr.rel (%p207) target = $region54
                $region51: #{_lambda_.10} parent=46 // loop_body
                  %v213 = vld [vmem:[%s211] sm:$0xff]
                  %214 = vst [vmem:[%s212] sm:$0xff] %v213
                  %v215 = vld [vmem:[%s211 + $0x10] sm:$0xff]
                  %216 = vst [vmem:[%s212 + $0x8] sm:$0xff] %v215
                  %v217 = vld [vmem:[%s211 + $0x20] sm:$0xff]
                  %218 = vst [vmem:[%s212 + $0x10] sm:$0xff] %v217
                  %v219 = vld [vmem:[%s211 + $0x30] sm:$0xff]
                  %220 = vst [vmem:[%s212 + $0x18] sm:$0xff] %v219
                  %v221 = vld [vmem:[%s211 + $0x40] sm:$0xff]
                  %222 = vst [vmem:[%s212 + $0x20] sm:$0xff] %v221
                  %v223 = vld [vmem:[%s211 + $0x50] sm:$0xff]
                  %224 = vst [vmem:[%s212 + $0x28] sm:$0xff] %v223
                  %v225 = vld [vmem:[%s211 + $0x60] sm:$0xff]
                  %226 = vst [vmem:[%s212 + $0x30] sm:$0xff] %v225
                  %v227 = vld [vmem:[%s211 + $0x70] sm:$0xff]
                  %228 = vst [vmem:[%s212 + $0x38] sm:$0xff] %v227
                  %v229 = vld [vmem:[%s211 + $0x80] sm:$0xff]
                  %230 = vst [vmem:[%s212 + $0x40] sm:$0xff] %v229
                  %v231 = vld [vmem:[%s211 + $0x90] sm:$0xff]
                  %232 = vst [vmem:[%s212 + $0x48] sm:$0xff] %v231
                  %v233 = vld [vmem:[%s211 + $0xa0] sm:$0xff]
                  %234 = vst [vmem:[%s212 + $0x50] sm:$0xff] %v233
                  %v235 = vld [vmem:[%s211 + $0xb0] sm:$0xff]
                  %236 = vst [vmem:[%s212 + $0x58] sm:$0xff] %v235
                  %v237 = vld [vmem:[%s211 + $0xc0] sm:$0xff]
                  %238 = vst [vmem:[%s212 + $0x60] sm:$0xff] %v237
                  %v239 = vld [vmem:[%s211 + $0xd0] sm:$0xff]
                  %240 = vst [vmem:[%s212 + $0x68] sm:$0xff] %v239
                  %v241 = vld [vmem:[%s211 + $0xe0] sm:$0xff]
                  %242 = vst [vmem:[%s212 + $0x70] sm:$0xff] %v241
                  %v243 = vld [vmem:[%s211 + $0xf0] sm:$0xff]
                  %244 = vst [vmem:[%s212 + $0x78] sm:$0xff] %v243
                $region52: #{_lambda_.10} parent=46 // loop_footer
                  %s210 = sadd.s32 1, %s206
                $region53: #{_lambda_.10} parent=46 // loop_footer_branch
                  %205 = sbr.rel target = $region49
                $region54: #{_lambda_.10} parent=46 // loop_exit
                  _
              $region47: #{_lambda_.10} parent=31 // pred_fallthru
                _
              // Predicated region
              $region55: #{_lambda_.10} parent=31 // pred_check
                _
              $region56: #{_lambda_.10} parent=31 // pred_check_branch
                %246 = sbr.rel target = $region58
              $region57: #{_lambda_.10} parent=31 // pred_region
                _
              $region58: #{_lambda_.10} parent=31 // pred_fallthru
                _
            $region32: #{_lambda_.10} parent=27 // pred_fallthru
              _
            // Predicated region
            $region33: #{_lambda_.10} parent=27 // pred_check
              _
            $region34: #{_lambda_.10} parent=27 // pred_check_branch
              %161 = sbr.rel target = $region36
            $region35: #{_lambda_.10} parent=27 // pred_region
              loop: start=0, step=1, limit=1
              $region37: #{_lambda_.10} parent=35 // loop_pre_header
                _
              $region38: #{_lambda_.10} parent=35 // loop_header
                %s164 = sphi 0, %s168
                %p165 = scmp.ge.s32.totalorder %s164, 1
                %s169 = sphi %s155, %s155
                %s170 = sphi %s150, %s150
              $region39: #{_lambda_.10} parent=35 // loop_header_branch
                %167 = sbr.rel (%p165) target = $region43
              $region40: #{_lambda_.10} parent=35 // loop_body
                %v171 = vld [vmem:[%s169] sm:$0xff]
                %172 = vst [vmem:[%s170] sm:$0xff] %v171
                %v173 = vld [vmem:[%s169 + $0x10] sm:$0xff]
                %174 = vst [vmem:[%s170 + $0x8] sm:$0xff] %v173
                %v175 = vld [vmem:[%s169 + $0x20] sm:$0xff]
                %176 = vst [vmem:[%s170 + $0x10] sm:$0xff] %v175
                %v177 = vld [vmem:[%s169 + $0x30] sm:$0xff]
                %178 = vst [vmem:[%s170 + $0x18] sm:$0xff] %v177
                %v179 = vld [vmem:[%s169 + $0x40] sm:$0xff]
                %180 = vst [vmem:[%s170 + $0x20] sm:$0xff] %v179
                %v181 = vld [vmem:[%s169 + $0x50] sm:$0xff]
                %182 = vst [vmem:[%s170 + $0x28] sm:$0xff] %v181
                %v183 = vld [vmem:[%s169 + $0x60] sm:$0xff]
                %184 = vst [vmem:[%s170 + $0x30] sm:$0xff] %v183
                %v185 = vld [vmem:[%s169 + $0x70] sm:$0xff]
                %186 = vst [vmem:[%s170 + $0x38] sm:$0xff] %v185
                %v187 = vld [vmem:[%s169 + $0x80] sm:$0xff]
                %188 = vst [vmem:[%s170 + $0x40] sm:$0xff] %v187
                %v189 = vld [vmem:[%s169 + $0x90] sm:$0xff]
                %190 = vst [vmem:[%s170 + $0x48] sm:$0xff] %v189
                %v191 = vld [vmem:[%s169 + $0xa0] sm:$0xff]
                %192 = vst [vmem:[%s170 + $0x50] sm:$0xff] %v191
                %v193 = vld [vmem:[%s169 + $0xb0] sm:$0xff]
                %194 = vst [vmem:[%s170 + $0x58] sm:$0xff] %v193
                %v195 = vld [vmem:[%s169 + $0xc0] sm:$0xff]
                %196 = vst [vmem:[%s170 + $0x60] sm:$0xff] %v195
                %v197 = vld [vmem:[%s169 + $0xd0] sm:$0xff]
                %198 = vst [vmem:[%s170 + $0x68] sm:$0xff] %v197
                %v199 = vld [vmem:[%s169 + $0xe0] sm:$0xff]
                %200 = vst [vmem:[%s170 + $0x70] sm:$0xff] %v199
                %v201 = vld [vmem:[%s169 + $0xf0] sm:$0xff]
                %202 = vst [vmem:[%s170 + $0x78] sm:$0xff] %v201
              $region41: #{_lambda_.10} parent=35 // loop_footer
                %s168 = sadd.s32 1, %s164
              $region42: #{_lambda_.10} parent=35 // loop_footer_branch
                %163 = sbr.rel target = $region38
              $region43: #{_lambda_.10} parent=35 // loop_exit
                _
            $region36: #{_lambda_.10} parent=27 // pred_fallthru
              _
          $region28: #{_lambda_.10} parent=23 // pred_fallthru
            _
          %247 = vnop
        $region24: #{_lambda_.10} parent=19 // pred_fallthru
          _
        // Predicated region
        $region59: #{_lambda_.10} parent=19 // pred_check
          %p248 = pneg %p69
        $region60: #{_lambda_.10} parent=19 // pred_check_branch
          %250 = sbr.rel (%p248) target = $region62
        $region61: #{_lambda_.10} parent=19 // pred_region
          %s251 = smul.u32 16, %s17
          %p252 = scmp.lt.s32.totalorder %s251, 31
          %s253 = scalar_select %p252, %s251, 31
          %s254 = smul.addr %s253, 2
          %s255 = smul.addr %s254, 8
          %s256 = scalar_lea.vmem %s1, %s255
          %s257 = smul.u32 16, %s17
        $region62: #{_lambda_.10} parent=19 // pred_fallthru
          _
      $region20: #{_lambda_.10} parent=5 // pred_fallthru
        _
      %p258 = scmp.le.s32.totalorder 1, %s9
      %p259 = scmp.lt.s32.totalorder %s9, 5
      %p260 = pnand %p258, %p259
      %p261 = pneg %p260
      // Predicated region
      $region63: #{_lambda_.10} parent=5 // pred_check
        _
      $region64: #{_lambda_.10} parent=5 // pred_check_branch
        %263 = sbr.rel (%p260) target = $region66
      $region65: #{_lambda_.10} parent=5 // pred_region
        %s264 = ssub.s32 %s9, 1
        %s265 = sand.u32 %s36, 1
        %s266 = sand.u32 %s36, 1
        %s267 = smul.addr %s266, 128
        %s268 = scalar_lea.vmem [#allocation3], %s267
        // Predicated region
        $region67: #{_lambda_.10} parent=65 // pred_check
          %p269 = pneg %p49
        $region68: #{_lambda_.10} parent=65 // pred_check_branch
          %271 = sbr.rel (%p269) target = $region70
        $region69: #{_lambda_.10} parent=65 // pred_region
          _
        $region70: #{_lambda_.10} parent=65 // pred_fallthru
          _
        %s272 = sand.u32 %s36, 1
        %s273 = sand.u32 %s36, 1
        %s274 = smul.addr %s273, 128
        %s275 = scalar_lea.vmem [#allocation3], %s274
        %p276 = pneg %p49
        %p277 = pneg %p46
        %s278 = smul.u32 16, %s19
        %p279 = scmp.lt.s32.totalorder %s278, 31
        %s280 = scalar_select %p279, %s278, 31
        %s281 = smul.addr %s280, 2
        %s282 = smul.addr %s281, 8
        %s283 = scalar_lea.vmem %s1, %s282
        %p284 = pneg %p75
        %p285 = pneg %p72
        %p286 = pneg %p96
        %p287 = pneg %p93
        %p288 = pneg %p122
        %p289 = pneg %p119
        %s290 = smul.u32 16, %s18
        %p291 = scmp.lt.s32.totalorder %s290, 31
        %s292 = scalar_select %p291, %s290, 31
        %s293 = smul.addr %s292, 2
        %s294 = smul.addr %s293, 8
        %s295 = scalar_lea.vmem %s3, %s294
        %s296 = smul.u32 16, %s18
        %s297 = smul.u32 16, %s19
        %p298 = scmp.lt.s32.totalorder %s297, 31
        %s299 = scalar_select %p298, %s297, 31
        %s300 = smul.addr %s299, 2
        %s301 = smul.addr %s300, 8
        %s302 = scalar_lea.vmem %s1, %s301
        %s303 = smul.u32 16, %s19
        %s304 = smul.u32 16, %s18
        %p305 = scmp.lt.s32.totalorder %s304, 31
        %s306 = scalar_select %p305, %s304, 31
        %s307 = smul.addr %s306, 2
        %s308 = smul.addr %s307, 8
        %s309 = scalar_lea.vmem %s3, %s308
        %s310 = smul.u32 16, %s18
        %p311 = scmp.eq.s32.totalorder %s19, 0
        // Predicated region
        $region71: #{_lambda_.10} parent=65 // pred_check
          %p312 = pneg %p311
        $region72: #{_lambda_.10} parent=65 // pred_check_branch
          %314 = sbr.rel (%p312) target = $region74
        $region73: #{_lambda_.10} parent=65 // pred_region
          %315 = vst [vmem:[#allocation2] sm:$0xff] 0.0
          %316 = vst [vmem:[#allocation2 + $0x8] sm:$0xff] 0.0
          %317 = vst [vmem:[#allocation2 + $0x10] sm:$0xff] 0.0
          %318 = vst [vmem:[#allocation2 + $0x18] sm:$0xff] 0.0
          %319 = vst [vmem:[#allocation2 + $0x20] sm:$0xff] 0.0
          %320 = vst [vmem:[#allocation2 + $0x28] sm:$0xff] 0.0
          %321 = vst [vmem:[#allocation2 + $0x30] sm:$0xff] 0.0
          %322 = vst [vmem:[#allocation2 + $0x38] sm:$0xff] 0.0
          %323 = vst [vmem:[#allocation2 + $0x40] sm:$0xff] 0.0
          %324 = vst [vmem:[#allocation2 + $0x48] sm:$0xff] 0.0
          %325 = vst [vmem:[#allocation2 + $0x50] sm:$0xff] 0.0
          %326 = vst [vmem:[#allocation2 + $0x58] sm:$0xff] 0.0
          %327 = vst [vmem:[#allocation2 + $0x60] sm:$0xff] 0.0
          %328 = vst [vmem:[#allocation2 + $0x68] sm:$0xff] 0.0
          %329 = vst [vmem:[#allocation2 + $0x70] sm:$0xff] 0.0
          %330 = vst [vmem:[#allocation2 + $0x78] sm:$0xff] 0.0
          %331 = vst [vmem:[#allocation2 + $0x80] sm:$0xff] 0.0
          %332 = vst [vmem:[#allocation2 + $0x88] sm:$0xff] 0.0
          %333 = vst [vmem:[#allocation2 + $0x90] sm:$0xff] 0.0
          %334 = vst [vmem:[#allocation2 + $0x98] sm:$0xff] 0.0
          %335 = vst [vmem:[#allocation2 + $0xa0] sm:$0xff] 0.0
          %336 = vst [vmem:[#allocation2 + $0xa8] sm:$0xff] 0.0
          %337 = vst [vmem:[#allocation2 + $0xb0] sm:$0xff] 0.0
          %338 = vst [vmem:[#allocation2 + $0xb8] sm:$0xff] 0.0
          %339 = vst [vmem:[#allocation2 + $0xc0] sm:$0xff] 0.0
          %340 = vst [vmem:[#allocation2 + $0xc8] sm:$0xff] 0.0
          %341 = vst [vmem:[#allocation2 + $0xd0] sm:$0xff] 0.0
          %342 = vst [vmem:[#allocation2 + $0xd8] sm:$0xff] 0.0
          %343 = vst [vmem:[#allocation2 + $0xe0] sm:$0xff] 0.0
          %344 = vst [vmem:[#allocation2 + $0xe8] sm:$0xff] 0.0
          %345 = vst [vmem:[#allocation2 + $0xf0] sm:$0xff] 0.0
          %346 = vst [vmem:[#allocation2 + $0xf8] sm:$0xff] 0.0
        $region74: #{_lambda_.10} parent=65 // pred_fallthru
          _
        %v347 = vld [vmem:[#allocation2] sm:$0xff]
        %v348 = vld [vmem:[#allocation2 + $0x8] sm:$0xff]
        %v349 = vld [vmem:[#allocation2 + $0x10] sm:$0xff]
        %v350 = vld [vmem:[#allocation2 + $0x18] sm:$0xff]
        %v351 = vld [vmem:[#allocation2 + $0x20] sm:$0xff]
        %v352 = vld [vmem:[#allocation2 + $0x28] sm:$0xff]
        %v353 = vld [vmem:[#allocation2 + $0x30] sm:$0xff]
        %v354 = vld [vmem:[#allocation2 + $0x38] sm:$0xff]
        %v355 = vld [vmem:[#allocation2 + $0x40] sm:$0xff]
        %v356 = vld [vmem:[#allocation2 + $0x48] sm:$0xff]
        %v357 = vld [vmem:[#allocation2 + $0x50] sm:$0xff]
        %v358 = vld [vmem:[#allocation2 + $0x58] sm:$0xff]
        %v359 = vld [vmem:[#allocation2 + $0x60] sm:$0xff]
        %v360 = vld [vmem:[#allocation2 + $0x68] sm:$0xff]
        %v361 = vld [vmem:[#allocation2 + $0x70] sm:$0xff]
        %v362 = vld [vmem:[#allocation2 + $0x78] sm:$0xff]
        %v363 = vld [vmem:[#allocation2 + $0x80] sm:$0xff]
        %v364 = vld [vmem:[#allocation2 + $0x88] sm:$0xff]
        %v365 = vld [vmem:[#allocation2 + $0x90] sm:$0xff]
        %v366 = vld [vmem:[#allocation2 + $0x98] sm:$0xff]
        %v367 = vld [vmem:[#allocation2 + $0xa0] sm:$0xff]
        %v368 = vld [vmem:[#allocation2 + $0xa8] sm:$0xff]
        %v369 = vld [vmem:[#allocation2 + $0xb0] sm:$0xff]
        %v370 = vld [vmem:[#allocation2 + $0xb8] sm:$0xff]
        %v371 = vld [vmem:[#allocation2 + $0xc0] sm:$0xff]
        %v372 = vld [vmem:[#allocation2 + $0xc8] sm:$0xff]
        %v373 = vld [vmem:[#allocation2 + $0xd0] sm:$0xff]
        %v374 = vld [vmem:[#allocation2 + $0xd8] sm:$0xff]
        %v375 = vld [vmem:[#allocation2 + $0xe0] sm:$0xff]
        %v376 = vld [vmem:[#allocation2 + $0xe8] sm:$0xff]
        %v377 = vld [vmem:[#allocation2 + $0xf0] sm:$0xff]
        %v378 = vld [vmem:[#allocation2 + $0xf8] sm:$0xff]
        %v379 = vld [vmem:[%s268] sm:$0xff]
        %v380 = vld [vmem:[%s268 + $0x8] sm:$0xff]
        %v381 = vld [vmem:[%s268 + $0x10] sm:$0xff]
        %v382 = vld [vmem:[%s268 + $0x18] sm:$0xff]
        %v383 = vld [vmem:[%s268 + $0x20] sm:$0xff]
        %v384 = vld [vmem:[%s268 + $0x28] sm:$0xff]
        %v385 = vld [vmem:[%s268 + $0x30] sm:$0xff]
        %v386 = vld [vmem:[%s268 + $0x38] sm:$0xff]
        %v387 = vld [vmem:[%s268 + $0x40] sm:$0xff]
        %v388 = vld [vmem:[%s268 + $0x48] sm:$0xff]
        %v389 = vld [vmem:[%s268 + $0x50] sm:$0xff]
        %v390 = vld [vmem:[%s268 + $0x58] sm:$0xff]
        %v391 = vld [vmem:[%s268 + $0x60] sm:$0xff]
        %v392 = vld [vmem:[%s268 + $0x68] sm:$0xff]
        %v393 = vld [vmem:[%s268 + $0x70] sm:$0xff]
        %v394 = vld [vmem:[%s268 + $0x78] sm:$0xff]
        %v395 = vld [vmem:[%s302] sm:$0xff]
        %v396 = vld [vmem:[%s302 + $0x8] sm:$0xff]
        %v397 = vld [vmem:[%s302 + $0x10] sm:$0xff]
        %v398 = vld [vmem:[%s302 + $0x18] sm:$0xff]
        %v399 = vld [vmem:[%s302 + $0x20] sm:$0xff]
        %v400 = vld [vmem:[%s302 + $0x28] sm:$0xff]
        %v401 = vld [vmem:[%s302 + $0x30] sm:$0xff]
        %v402 = vld [vmem:[%s302 + $0x38] sm:$0xff]
        %v403 = vld [vmem:[%s302 + $0x40] sm:$0xff]
        %v404 = vld [vmem:[%s302 + $0x48] sm:$0xff]
        %v405 = vld [vmem:[%s302 + $0x50] sm:$0xff]
        %v406 = vld [vmem:[%s302 + $0x58] sm:$0xff]
        %v407 = vld [vmem:[%s302 + $0x60] sm:$0xff]
        %v408 = vld [vmem:[%s302 + $0x68] sm:$0xff]
        %v409 = vld [vmem:[%s302 + $0x70] sm:$0xff]
        %v410 = vld [vmem:[%s302 + $0x78] sm:$0xff]
        %v411 = vld [vmem:[%s302 + $0x80] sm:$0xff]
        %v412 = vld [vmem:[%s302 + $0x88] sm:$0xff]
        %v413 = vld [vmem:[%s302 + $0x90] sm:$0xff]
        %v414 = vld [vmem:[%s302 + $0x98] sm:$0xff]
        %v415 = vld [vmem:[%s302 + $0xa0] sm:$0xff]
        %v416 = vld [vmem:[%s302 + $0xa8] sm:$0xff]
        %v417 = vld [vmem:[%s302 + $0xb0] sm:$0xff]
        %v418 = vld [vmem:[%s302 + $0xb8] sm:$0xff]
        %v419 = vld [vmem:[%s302 + $0xc0] sm:$0xff]
        %v420 = vld [vmem:[%s302 + $0xc8] sm:$0xff]
        %v421 = vld [vmem:[%s302 + $0xd0] sm:$0xff]
        %v422 = vld [vmem:[%s302 + $0xd8] sm:$0xff]
        %v423 = vld [vmem:[%s302 + $0xe0] sm:$0xff]
        %v424 = vld [vmem:[%s302 + $0xe8] sm:$0xff]
        %v425 = vld [vmem:[%s302 + $0xf0] sm:$0xff]
        %v426 = vld [vmem:[%s302 + $0xf8] sm:$0xff]
        %427 = vmatprep.subr.mxu0 %v396
        %428 = vmatpush1.msra.mxu0 %v395
        %429 = vmatprep.subr.mxu0 %v398
        %430 = vmatpush1.msra.mxu0 %v397
        %431 = vmatprep.subr.mxu0 %v400
        %432 = vmatpush1.msra.mxu0 %v399
        %433 = vmatprep.subr.mxu0 %v402
        %434 = vmatpush1.msra.mxu0 %v401
        %435 = vmatprep.subr.mxu0 %v404
        %436 = vmatpush1.msra.mxu0 %v403
        %437 = vmatprep.subr.mxu0 %v406
        %438 = vmatpush1.msra.mxu0 %v405
        %439 = vmatprep.subr.mxu0 %v408
        %440 = vmatpush1.msra.mxu0 %v407
        %441 = vmatprep.subr.mxu0 %v410
        %442 = vmatpush1.msra.mxu0 %v409
        %443 = vmatprep.subr.mxu0 %v412
        %444 = vmatpush1.msra.mxu0 %v411
        %445 = vmatprep.subr.mxu0 %v414
        %446 = vmatpush1.msra.mxu0 %v413
        %447 = vmatprep.subr.mxu0 %v416
        %448 = vmatpush1.msra.mxu0 %v415
        %449 = vmatprep.subr.mxu0 %v418
        %450 = vmatpush1.msra.mxu0 %v417
        %451 = vmatprep.subr.mxu0 %v420
        %452 = vmatpush1.msra.mxu0 %v419
        %453 = vmatprep.subr.mxu0 %v422
        %454 = vmatpush1.msra.mxu0 %v421
        %455 = vmatprep.subr.mxu0 %v424
        %456 = vmatpush1.msra.mxu0 %v423
        %457 = vmatprep.subr.mxu0 %v426
        %458 = vmatpush1.msra.mxu0 %v425
        %459 = vmatprep.subr.mxu0 0.0
        %460 = vmatpush1.msra.mxu0 0.0
        %461 = vmatprep.subr.mxu0 0.0
        %462 = vmatpush1.msra.mxu0 0.0
        %463 = vmatprep.subr.mxu0 0.0
        %464 = vmatpush1.msra.mxu0 0.0
        %465 = vmatprep.subr.mxu0 0.0
        %466 = vmatpush1.msra.mxu0 0.0
        %467 = vmatprep.subr.mxu0 0.0
        %468 = vmatpush1.msra.mxu0 0.0
        %469 = vmatprep.subr.mxu0 0.0
        %470 = vmatpush1.msra.mxu0 0.0
        %471 = vmatprep.subr.mxu0 0.0
        %472 = vmatpush1.msra.mxu0 0.0
        %473 = vmatprep.subr.mxu0 0.0
        %474 = vmatpush1.msra.mxu0 0.0
        %475 = vmatprep.subr.mxu0 0.0
        %476 = vmatpush1.msra.mxu0 0.0
        %477 = vmatprep.subr.mxu0 0.0
        %478 = vmatpush1.msra.mxu0 0.0
        %479 = vmatprep.subr.mxu0 0.0
        %480 = vmatpush1.msra.mxu0 0.0
        %481 = vmatprep.subr.mxu0 0.0
        %482 = vmatpush1.msra.mxu0 0.0
        %483 = vmatprep.subr.mxu0 0.0
        %484 = vmatpush1.msra.mxu0 0.0
        %485 = vmatprep.subr.mxu0 0.0
        %486 = vmatpush1.msra.mxu0 0.0
        %487 = vmatprep.subr.mxu0 0.0
        %488 = vmatpush1.msra.mxu0 0.0
        %489 = vmatprep.subr.mxu0 0.0
        %490 = vmatpush1.msra.mxu0 0.0
        %491 = vmatprep.mubr.f32.mxu0 0.0
        %492 = vmatmul.mubr.f32.gmra.mrb[0].mxu0 %v379
        %v493 = vpop.f32.mrb[0].mxu0
        %v494 = vadd.f32 0.0, %v493
        %v495 = vpop.f32.mrb[0].mxu0
        %v496 = vadd.f32 0.0, %v495
        %497 = vmatprep.mubr.f32.mxu0 0.0
        %498 = vmatmul.mubr.f32.gmra.mrb[0].mxu0 %v380
        %v499 = vpop.f32.mrb[0].mxu0
        %v500 = vadd.f32 0.0, %v499
        %v501 = vpop.f32.mrb[0].mxu0
        %v502 = vadd.f32 0.0, %v501
        %503 = vmatprep.mubr.f32.mxu0 0.0
        %504 = vmatmul.mubr.f32.gmra.mrb[0].mxu0 %v381
        %v505 = vpop.f32.mrb[0].mxu0
        %v506 = vadd.f32 0.0, %v505
        %v507 = vpop.f32.mrb[0].mxu0
        %v508 = vadd.f32 0.0, %v507
        %509 = vmatprep.mubr.f32.mxu0 0.0
        %510 = vmatmul.mubr.f32.gmra.mrb[0].mxu0 %v382
        %v511 = vpop.f32.mrb[0].mxu0
        %v512 = vadd.f32 0.0, %v511
        %v513 = vpop.f32.mrb[0].mxu0
        %v514 = vadd.f32 0.0, %v513
        %515 = vmatprep.mubr.f32.mxu0 0.0
        %516 = vmatmul.mubr.f32.gmra.mrb[0].mxu0 %v383
        %v517 = vpop.f32.mrb[0].mxu0
        %v518 = vadd.f32 0.0, %v517
        %v519 = vpop.f32.mrb[0].mxu0
        %v520 = vadd.f32 0.0, %v519
        %521 = vmatprep.mubr.f32.mxu0 0.0
        %522 = vmatmul.mubr.f32.gmra.mrb[0].mxu0 %v384
        %v523 = vpop.f32.mrb[0].mxu0
        %v524 = vadd.f32 0.0, %v523
        %v525 = vpop.f32.mrb[0].mxu0
        %v526 = vadd.f32 0.0, %v525
        %527 = vmatprep.mubr.f32.mxu0 0.0
        %528 = vmatmul.mubr.f32.gmra.mrb[0].mxu0 %v385
        %v529 = vpop.f32.mrb[0].mxu0
        %v530 = vadd.f32 0.0, %v529
        %v531 = vpop.f32.mrb[0].mxu0
        %v532 = vadd.f32 0.0, %v531
        %533 = vmatprep.mubr.f32.mxu0 0.0
        %534 = vmatmul.mubr.f32.gmra.mrb[0].mxu0 %v386
        %v535 = vpop.f32.mrb[0].mxu0
        %v536 = vadd.f32 0.0, %v535
        %v537 = vpop.f32.mrb[0].mxu0
        %v538 = vadd.f32 0.0, %v537
        %539 = vmatprep.mubr.f32.mxu0 0.0
        %540 = vmatmul.mubr.f32.gmra.mrb[0].mxu0 %v387
        %v541 = vpop.f32.mrb[0].mxu0
        %v542 = vadd.f32 0.0, %v541
        %v543 = vpop.f32.mrb[0].mxu0
        %v544 = vadd.f32 0.0, %v543
        %545 = vmatprep.mubr.f32.mxu0 0.0
        %546 = vmatmul.mubr.f32.gmra.mrb[0].mxu0 %v388
        %v547 = vpop.f32.mrb[0].mxu0
        %v548 = vadd.f32 0.0, %v547
        %v549 = vpop.f32.mrb[0].mxu0
        %v550 = vadd.f32 0.0, %v549
        %551 = vmatprep.mubr.f32.mxu0 0.0
        %552 = vmatmul.mubr.f32.gmra.mrb[0].mxu0 %v389
        %v553 = vpop.f32.mrb[0].mxu0
        %v554 = vadd.f32 0.0, %v553
        %v555 = vpop.f32.mrb[0].mxu0
        %v556 = vadd.f32 0.0, %v555
        %557 = vmatprep.mubr.f32.mxu0 0.0
        %558 = vmatmul.mubr.f32.gmra.mrb[0].mxu0 %v390
        %v559 = vpop.f32.mrb[0].mxu0
        %v560 = vadd.f32 0.0, %v559
        %v561 = vpop.f32.mrb[0].mxu0
        %v562 = vadd.f32 0.0, %v561
        %563 = vmatprep.mubr.f32.mxu0 0.0
        %564 = vmatmul.mubr.f32.gmra.mrb[0].mxu0 %v391
        %v565 = vpop.f32.mrb[0].mxu0
        %v566 = vadd.f32 0.0, %v565
        %v567 = vpop.f32.mrb[0].mxu0
        %v568 = vadd.f32 0.0, %v567
        %569 = vmatprep.mubr.f32.mxu0 0.0
        %570 = vmatmul.mubr.f32.gmra.mrb[0].mxu0 %v392
        %v571 = vpop.f32.mrb[0].mxu0
        %v572 = vadd.f32 0.0, %v571
        %v573 = vpop.f32.mrb[0].mxu0
        %v574 = vadd.f32 0.0, %v573
        %575 = vmatprep.mubr.f32.mxu0 0.0
        %576 = vmatmul.mubr.f32.gmra.mrb[0].mxu0 %v393
        %v577 = vpop.f32.mrb[0].mxu0
        %v578 = vadd.f32 0.0, %v577
        %v579 = vpop.f32.mrb[0].mxu0
        %v580 = vadd.f32 0.0, %v579
        %581 = vmatprep.mubr.f32.mxu0 0.0
        %582 = vmatmul.mubr.f32.gmra.mrb[0].mxu0 %v394
        %v583 = vpop.f32.mrb[0].mxu0
        %v584 = vadd.f32 0.0, %v583
        %v585 = vpop.f32.mrb[0].mxu0
        %v586 = vadd.f32 0.0, %v585
        %587 = vdwg.mxu0
        %v588 = vadd.f32 %v347, %v494
        %v589 = vadd.f32 %v348, %v496
        %v590 = vadd.f32 %v349, %v500
        %v591 = vadd.f32 %v350, %v502
        %v592 = vadd.f32 %v351, %v506
        %v593 = vadd.f32 %v352, %v508
        %v594 = vadd.f32 %v353, %v512
        %v595 = vadd.f32 %v354, %v514
        %v596 = vadd.f32 %v355, %v518
        %v597 = vadd.f32 %v356, %v520
        %v598 = vadd.f32 %v357, %v524
        %v599 = vadd.f32 %v358, %v526
        %v600 = vadd.f32 %v359, %v530
        %v601 = vadd.f32 %v360, %v532
        %v602 = vadd.f32 %v361, %v536
        %v603 = vadd.f32 %v362, %v538
        %v604 = vadd.f32 %v363, %v542
        %v605 = vadd.f32 %v364, %v544
        %v606 = vadd.f32 %v365, %v548
        %v607 = vadd.f32 %v366, %v550
        %v608 = vadd.f32 %v367, %v554
        %v609 = vadd.f32 %v368, %v556
        %v610 = vadd.f32 %v369, %v560
        %v611 = vadd.f32 %v370, %v562
        %v612 = vadd.f32 %v371, %v566
        %v613 = vadd.f32 %v372, %v568
        %v614 = vadd.f32 %v373, %v572
        %v615 = vadd.f32 %v374, %v574
        %v616 = vadd.f32 %v375, %v578
        %v617 = vadd.f32 %v376, %v580
        %v618 = vadd.f32 %v377, %v584
        %v619 = vadd.f32 %v378, %v586
        %620 = vst [vmem:[#allocation2] sm:$0xff] %v588
        %621 = vst [vmem:[#allocation2 + $0x8] sm:$0xff] %v589
        %622 = vst [vmem:[#allocation2 + $0x10] sm:$0xff] %v590
        %623 = vst [vmem:[#allocation2 + $0x18] sm:$0xff] %v591
        %624 = vst [vmem:[#allocation2 + $0x20] sm:$0xff] %v592
        %625 = vst [vmem:[#allocation2 + $0x28] sm:$0xff] %v593
        %626 = vst [vmem:[#allocation2 + $0x30] sm:$0xff] %v594
        %627 = vst [vmem:[#allocation2 + $0x38] sm:$0xff] %v595
        %628 = vst [vmem:[#allocation2 + $0x40] sm:$0xff] %v596
        %629 = vst [vmem:[#allocation2 + $0x48] sm:$0xff] %v597
        %630 = vst [vmem:[#allocation2 + $0x50] sm:$0xff] %v598
        %631 = vst [vmem:[#allocation2 + $0x58] sm:$0xff] %v599
        %632 = vst [vmem:[#allocation2 + $0x60] sm:$0xff] %v600
        %633 = vst [vmem:[#allocation2 + $0x68] sm:$0xff] %v601
        %634 = vst [vmem:[#allocation2 + $0x70] sm:$0xff] %v602
        %635 = vst [vmem:[#allocation2 + $0x78] sm:$0xff] %v603
        %636 = vst [vmem:[#allocation2 + $0x80] sm:$0xff] %v604
        %637 = vst [vmem:[#allocation2 + $0x88] sm:$0xff] %v605
        %638 = vst [vmem:[#allocation2 + $0x90] sm:$0xff] %v606
        %639 = vst [vmem:[#allocation2 + $0x98] sm:$0xff] %v607
        %640 = vst [vmem:[#allocation2 + $0xa0] sm:$0xff] %v608
        %641 = vst [vmem:[#allocation2 + $0xa8] sm:$0xff] %v609
        %642 = vst [vmem:[#allocation2 + $0xb0] sm:$0xff] %v610
        %643 = vst [vmem:[#allocation2 + $0xb8] sm:$0xff] %v611
        %644 = vst [vmem:[#allocation2 + $0xc0] sm:$0xff] %v612
        %645 = vst [vmem:[#allocation2 + $0xc8] sm:$0xff] %v613
        %646 = vst [vmem:[#allocation2 + $0xd0] sm:$0xff] %v614
        %647 = vst [vmem:[#allocation2 + $0xd8] sm:$0xff] %v615
        %648 = vst [vmem:[#allocation2 + $0xe0] sm:$0xff] %v616
        %649 = vst [vmem:[#allocation2 + $0xe8] sm:$0xff] %v617
        %650 = vst [vmem:[#allocation2 + $0xf0] sm:$0xff] %v618
        %651 = vst [vmem:[#allocation2 + $0xf8] sm:$0xff] %v619
        %p652 = scmp.eq.s32.totalorder %s19, 1
        // Predicated region
        $region75: #{_lambda_.10} parent=65 // pred_check
          %p653 = pneg %p652
        $region76: #{_lambda_.10} parent=65 // pred_check_branch
          %655 = sbr.rel (%p653) target = $region78
        $region77: #{_lambda_.10} parent=65 // pred_region
          %v656 = vld [vmem:[#allocation2] sm:$0xff]
          %v657 = vld [vmem:[#allocation2 + $0x8] sm:$0xff]
          %v658 = vld [vmem:[#allocation2 + $0x10] sm:$0xff]
          %v659 = vld [vmem:[#allocation2 + $0x18] sm:$0xff]
          %v660 = vld [vmem:[#allocation2 + $0x20] sm:$0xff]
          %v661 = vld [vmem:[#allocation2 + $0x28] sm:$0xff]
          %v662 = vld [vmem:[#allocation2 + $0x30] sm:$0xff]
          %v663 = vld [vmem:[#allocation2 + $0x38] sm:$0xff]
          %v664 = vld [vmem:[#allocation2 + $0x40] sm:$0xff]
          %v665 = vld [vmem:[#allocation2 + $0x48] sm:$0xff]
          %v666 = vld [vmem:[#allocation2 + $0x50] sm:$0xff]
          %v667 = vld [vmem:[#allocation2 + $0x58] sm:$0xff]
          %v668 = vld [vmem:[#allocation2 + $0x60] sm:$0xff]
          %v669 = vld [vmem:[#allocation2 + $0x68] sm:$0xff]
          %v670 = vld [vmem:[#allocation2 + $0x70] sm:$0xff]
          %v671 = vld [vmem:[#allocation2 + $0x78] sm:$0xff]
          %v672 = vld [vmem:[#allocation2 + $0x80] sm:$0xff]
          %v673 = vld [vmem:[#allocation2 + $0x88] sm:$0xff]
          %v674 = vld [vmem:[#allocation2 + $0x90] sm:$0xff]
          %v675 = vld [vmem:[#allocation2 + $0x98] sm:$0xff]
          %v676 = vld [vmem:[#allocation2 + $0xa0] sm:$0xff]
          %v677 = vld [vmem:[#allocation2 + $0xa8] sm:$0xff]
          %v678 = vld [vmem:[#allocation2 + $0xb0] sm:$0xff]
          %v679 = vld [vmem:[#allocation2 + $0xb8] sm:$0xff]
          %v680 = vld [vmem:[#allocation2 + $0xc0] sm:$0xff]
          %v681 = vld [vmem:[#allocation2 + $0xc8] sm:$0xff]
          %v682 = vld [vmem:[#allocation2 + $0xd0] sm:$0xff]
          %v683 = vld [vmem:[#allocation2 + $0xd8] sm:$0xff]
          %v684 = vld [vmem:[#allocation2 + $0xe0] sm:$0xff]
          %v685 = vld [vmem:[#allocation2 + $0xe8] sm:$0xff]
          %v686 = vld [vmem:[#allocation2 + $0xf0] sm:$0xff]
          %v687 = vld [vmem:[#allocation2 + $0xf8] sm:$0xff]
          %v688 = vld [vmem:[%s2] sm:$0x3]
          %v690 = vlaneseq
          %v691 = vshrl.u32 %v690, 7
          %v692 = vsub.s32 0, %v691
          %v693 = vrot.slane %v688, %v692
          %v694 = vlaneseq
          %v695 = vshrl.u32 %v694, 7
          %v696 = vsub.s32 1, %v695
          %v697 = vrot.slane %v688, %v696
          %v700 = vadd.f32 %v656, %v693
          %v701 = vadd.f32 %v657, %v697
          %v702 = vadd.f32 %v658, %v693
          %v703 = vadd.f32 %v659, %v697
          %v704 = vadd.f32 %v660, %v693
          %v705 = vadd.f32 %v661, %v697
          %v706 = vadd.f32 %v662, %v693
          %v707 = vadd.f32 %v663, %v697
          %v708 = vadd.f32 %v664, %v693
          %v709 = vadd.f32 %v665, %v697
          %v710 = vadd.f32 %v666, %v693
          %v711 = vadd.f32 %v667, %v697
          %v712 = vadd.f32 %v668, %v693
          %v713 = vadd.f32 %v669, %v697
          %v714 = vadd.f32 %v670, %v693
          %v715 = vadd.f32 %v671, %v697
          %v716 = vadd.f32 %v672, %v693
          %v717 = vadd.f32 %v673, %v697
          %v718 = vadd.f32 %v674, %v693
          %v719 = vadd.f32 %v675, %v697
          %v720 = vadd.f32 %v676, %v693
          %v721 = vadd.f32 %v677, %v697
          %v722 = vadd.f32 %v678, %v693
          %v723 = vadd.f32 %v679, %v697
          %v724 = vadd.f32 %v680, %v693
          %v725 = vadd.f32 %v681, %v697
          %v726 = vadd.f32 %v682, %v693
          %v727 = vadd.f32 %v683, %v697
          %v728 = vadd.f32 %v684, %v693
          %v729 = vadd.f32 %v685, %v697
          %v730 = vadd.f32 %v686, %v693
          %v731 = vadd.f32 %v687, %v697
          %732 = vst [vmem:[%s309] sm:$0xff] %v700
          %733 = vst [vmem:[%s309 + $0x8] sm:$0xff] %v701
          %734 = vst [vmem:[%s309 + $0x10] sm:$0xff] %v702
          %735 = vst [vmem:[%s309 + $0x18] sm:$0xff] %v703
          %736 = vst [vmem:[%s309 + $0x20] sm:$0xff] %v704
          %737 = vst [vmem:[%s309 + $0x28] sm:$0xff] %v705
          %738 = vst [vmem:[%s309 + $0x30] sm:$0xff] %v706
          %739 = vst [vmem:[%s309 + $0x38] sm:$0xff] %v707
          %740 = vst [vmem:[%s309 + $0x40] sm:$0xff] %v708
          %741 = vst [vmem:[%s309 + $0x48] sm:$0xff] %v709
          %742 = vst [vmem:[%s309 + $0x50] sm:$0xff] %v710
          %743 = vst [vmem:[%s309 + $0x58] sm:$0xff] %v711
          %744 = vst [vmem:[%s309 + $0x60] sm:$0xff] %v712
          %745 = vst [vmem:[%s309 + $0x68] sm:$0xff] %v713
          %746 = vst [vmem:[%s309 + $0x70] sm:$0xff] %v714
          %747 = vst [vmem:[%s309 + $0x78] sm:$0xff] %v715
          %748 = vst [vmem:[%s309 + $0x80] sm:$0xff] %v716
          %749 = vst [vmem:[%s309 + $0x88] sm:$0xff] %v717
          %750 = vst [vmem:[%s309 + $0x90] sm:$0xff] %v718
          %751 = vst [vmem:[%s309 + $0x98] sm:$0xff] %v719
          %752 = vst [vmem:[%s309 + $0xa0] sm:$0xff] %v720
          %753 = vst [vmem:[%s309 + $0xa8] sm:$0xff] %v721
          %754 = vst [vmem:[%s309 + $0xb0] sm:$0xff] %v722
          %755 = vst [vmem:[%s309 + $0xb8] sm:$0xff] %v723
          %756 = vst [vmem:[%s309 + $0xc0] sm:$0xff] %v724
          %757 = vst [vmem:[%s309 + $0xc8] sm:$0xff] %v725
          %758 = vst [vmem:[%s309 + $0xd0] sm:$0xff] %v726
          %759 = vst [vmem:[%s309 + $0xd8] sm:$0xff] %v727
          %760 = vst [vmem:[%s309 + $0xe0] sm:$0xff] %v728
          %761 = vst [vmem:[%s309 + $0xe8] sm:$0xff] %v729
          %762 = vst [vmem:[%s309 + $0xf0] sm:$0xff] %v730
          %763 = vst [vmem:[%s309 + $0xf8] sm:$0xff] %v731
        $region78: #{_lambda_.10} parent=65 // pred_fallthru
          _
        %s764 = smul.u32 16, %s18
        %p765 = scmp.lt.s32.totalorder %s764, 31
        %s766 = scalar_select %p765, %s764, 31
        %s767 = smul.addr %s766, 2
        %s768 = smul.addr %s767, 8
        %s769 = scalar_lea.vmem %s3, %s768
        // Predicated region
        $region79: #{_lambda_.10} parent=65 // pred_check
          %p770 = pneg %p119
        $region80: #{_lambda_.10} parent=65 // pred_check_branch
          %772 = sbr.rel (%p770) target = $region82
        $region81: #{_lambda_.10} parent=65 // pred_region
          %s773 = smul.u32 16, %s18
        $region82: #{_lambda_.10} parent=65 // pred_fallthru
          _
      $region66: #{_lambda_.10} parent=5 // pred_fallthru
        _
      %p774 = scmp.le.s32.totalorder 2, %s9
      // Predicated region
      $region83: #{_lambda_.10} parent=5 // pred_check
        %p775 = pneg %p774
      $region84: #{_lambda_.10} parent=5 // pred_check_branch
        %777 = sbr.rel (%p775) target = $region86
      $region85: #{_lambda_.10} parent=5 // pred_region
        %s778 = ssub.s32 %s9, 2
        // Predicated region
        $region87: #{_lambda_.10} parent=85 // pred_check
          %p779 = pneg %p125
        $region88: #{_lambda_.10} parent=85 // pred_check_branch
          %781 = sbr.rel (%p779) target = $region90
        $region89: #{_lambda_.10} parent=85 // pred_region
          %s782 = smul.u32 16, %s20
          %p783 = scmp.lt.s32.totalorder %s782, 31
          %s784 = scalar_select %p783, %s782, 31
          %s785 = smul.addr %s784, 2
          %s786 = smul.addr %s785, 8
          %s787 = scalar_lea.vmem %s3, %s786
        $region90: #{_lambda_.10} parent=85 // pred_fallthru
          _
      $region86: #{_lambda_.10} parent=5 // pred_fallthru
        _
    $region6: #{_lambda_.10} parent=1 // loop_footer
      %s13 = sadd.s32 1, %s9
    $region7: #{_lambda_.10} parent=1 // loop_footer_branch
      %8 = sbr.rel target = $region3
    $region8: #{_lambda_.10} parent=1 // loop_exit
      _

// kernel: _lambda_.11
$region0: #{_lambda_.11}
  #allocation0 [shape = 'u32[]', space=smem, size = 0x4, offset = 0x4, fixed_abs, tag = 'smem constant byte address 0x4 - core index']
  #allocation1 [shape = 'u32[144,128]{1,0:T(1,128)}', space=vmem, size = 0x12000, scoped, tag = 'internal scratch']
  %s0 = inlined_call_operand.vmem [shape: f32[256,256], index: 0, kind: input, shape index: {}]
  %s1 = inlined_call_operand.vmem [shape: f32[128,128], index: 1, kind: input, shape index: {}]
  %s2 = inlined_call_operand.vmem [shape: f32[256,128], index: 2, kind: output, shape index: {}]
  %s3 = sld [smem:[#allocation0]]
  $region79: #{_lambda_.11} parent=0
    _
  %s5 = ssub.s32 1, %s3
  %s6 = scalar_select 0, %s5, %s3
  $region1: #{_lambda_.11} parent=0
    #allocation2 [shape = 'u8[131072]{0}', space=vmem, size = 0x20000, scoped, tag = 'input window, operand 0']
    loop: start=0, step=1, limit=4
    $region2: #{_lambda_.11} parent=1 // loop_pre_header
      _
    $region3: #{_lambda_.11} parent=1 // loop_header
      %s8 = sphi 0, %s12
      %p9 = scmp.ge.s32.totalorder %s8, 4
      %s18 = sphi 0, %s20
      %s21 = sphi 0, %s18
      %s22 = sphi 0, %s21
      %s38 = sphi 0, %s22
      %s42 = sphi 0, %s42
      %s44 = sphi 0, %s42
      %s45 = sphi 0, %s44
      %s59 = sphi 0, %s45
      %s65 = sphi 0, %s67
      %s68 = sphi 0, %s65
      %s69 = sphi 0, %s68
      %s85 = sphi 0, %s69
    $region4: #{_lambda_.11} parent=1 // loop_header_branch
      %11 = sbr.rel (%p9) target = $region8
    $region5: #{_lambda_.11} parent=1 // loop_body
      %s13 = ssub.s32 %s8, 1
      %s14 = ssub.s32 %s8, 2
      %s15 = sadd.s32 %s8, 1
      %s16 = ssub.s32 %s8, %s15
      %p17 = scmp.eq.s32.totalorder %s16, 0
      %s19 = sadd.s32 %s18, 1
      %s20 = scalar_select %p17, %s18, %s19
      %p23 = pneg %p17
      %p24 = scmp.eq.s32.totalorder %s8, 1
      %p25 = por %p23, %p24
      %p26 = scmp.ne.s32.totalorder %s18, %s21
      %p27 = scmp.eq.s32.totalorder %s8, 0
      %p28 = por %p26, %p27
      %p29 = scmp.ne.s32.totalorder %s18, %s21
      %p30 = scmp.eq.s32.totalorder %s13, 1
      %p31 = por %p29, %p30
      %p32 = scmp.ne.s32.totalorder %s21, %s22
      %p33 = scmp.eq.s32.totalorder %s13, 0
      %p34 = por %p32, %p33
      %p35 = scmp.ne.s32.totalorder %s21, %s22
      %p36 = scmp.eq.s32.totalorder %s14, 1
      %p37 = por %p35, %p36
      %p39 = scmp.ne.s32.totalorder %s22, %s38
      %p40 = scmp.eq.s32.totalorder %s14, 0
      %p41 = por %p39, %p40
      %s43 = sadd.s32 %s42, 1
      %p46 = scmp.eq.s32.totalorder %s8, 1
      %p47 = scmp.ne.s32.totalorder %s42, %s44
      %p48 = scmp.eq.s32.totalorder %s8, 0
      %p49 = por %p47, %p48
      %p50 = scmp.ne.s32.totalorder %s42, %s44
      %p51 = scmp.eq.s32.totalorder %s13, 1
      %p52 = por %p50, %p51
      %p53 = scmp.ne.s32.totalorder %s44, %s45
      %p54 = scmp.eq.s32.totalorder %s13, 0
      %p55 = por %p53, %p54
      %p56 = scmp.ne.s32.totalorder %s44, %s45
      %p57 = scmp.eq.s32.totalorder %s14, 1
      %p58 = por %p56, %p57
      %p60 = scmp.ne.s32.totalorder %s45, %s59
      %p61 = scmp.eq.s32.totalorder %s14, 0
      %p62 = por %p60, %p61
      %s63 = ssub.s32 %s8, %s15
      %p64 = scmp.eq.s32.totalorder %s63, 0
      %s66 = sadd.s32 %s65, 1
      %s67 = scalar_select %p64, %s65, %s66
      %p70 = pneg %p64
      %p71 = scmp.eq.s32.totalorder %s8, 1
      %p72 = por %p70, %p71
      %p73 = scmp.ne.s32.totalorder %s65, %s68
      %p74 = scmp.eq.s32.totalorder %s8, 0
      %p75 = por %p73, %p74
      %p76 = scmp.ne.s32.totalorder %s65, %s68
      %p77 = scmp.eq.s32.totalorder %s13, 1
      %p78 = por %p76, %p77
      %p79 = scmp.ne.s32.totalorder %s68, %s69
      %p80 = scmp.eq.s32.totalorder %s13, 0
      %p81 = por %p79, %p80
      %p82 = scmp.ne.s32.totalorder %s68, %s69
      %p83 = scmp.eq.s32.totalorder %s14, 1
      %p84 = por %p82, %p83
      %p86 = scmp.ne.s32.totalorder %s69, %s85
      %p87 = scmp.eq.s32.totalorder %s14, 0
      %p88 = por %p86, %p87
      %p89 = scmp.le.s32.totalorder 1, %s8
      %p90 = scmp.lt.s32.totalorder %s8, 3
      %p91 = pnand %p89, %p90
      %p92 = pneg %p91
      // Predicated region
      $region9: #{_lambda_.11} parent=5 // pred_check
        _
      $region10: #{_lambda_.11} parent=5 // pred_check_branch
        %94 = sbr.rel (%p91) target = $region12
      $region11: #{_lambda_.11} parent=5 // pred_region
        %s95 = ssub.s32 %s8, 1
        // Predicated region
        $region13: #{_lambda_.11} parent=11 // pred_check
          %p96 = pneg %p55
        $region14: #{_lambda_.11} parent=11 // pred_check_branch
          %98 = sbr.rel (%p96) target = $region16
        $region15: #{_lambda_.11} parent=11 // pred_region
          _
        $region16: #{_lambda_.11} parent=11 // pred_fallthru
          _
      $region12: #{_lambda_.11} parent=5 // pred_fallthru
        _
      %p99 = scmp.lt.s32.totalorder %s8, 2
      // Predicated region
      $region17: #{_lambda_.11} parent=5 // pred_check
        %p100 = pneg %p99
      $region18: #{_lambda_.11} parent=5 // pred_check_branch
        %102 = sbr.rel (%p100) target = $region20
      $region19: #{_lambda_.11} parent=5 // pred_region
        // Predicated region
        $region21: #{_lambda_.11} parent=19 // pred_check
          %p103 = pneg %p28
        $region22: #{_lambda_.11} parent=19 // pred_check_branch
          %105 = sbr.rel (%p103) target = $region24
        $region23: #{_lambda_.11} parent=19 // pred_region
          %s106 = sand.u32 %s18, 1
          %s107 = sand.u32 %s18, 1
          %s108 = smul.addr %s107, 128
          %s109 = scalar_lea.vmem [#allocation2], %s108
          %s110 = smul.u32 16, %s8
          %s111 = smul.addr %s110, 2
          %s112 = smul.addr %s111, 8
          %s113 = scalar_lea.vmem %s0, %s112
          // Predicated region
          $region25: #{_lambda_.11} parent=23 // pred_check
            _
          $region26: #{_lambda_.11} parent=23 // pred_check_branch
            %115 = sbr.rel (0) target = $region28
          $region27: #{_lambda_.11} parent=23 // pred_region
            // Predicated region
            $region29: #{_lambda_.11} parent=27 // pred_check
              _
            $region30: #{_lambda_.11} parent=27 // pred_check_branch
              %117 = sbr.rel (0) target = $region32
            $region31: #{_lambda_.11} parent=27 // pred_region
              // Predicated region
              $region44: #{_lambda_.11} parent=31 // pred_check
                _
              $region45: #{_lambda_.11} parent=31 // pred_check_branch
                %162 = sbr.rel (0) target = $region47
              $region46: #{_lambda_.11} parent=31 // pred_region
                loop: start=0, step=1, limit=1
                $region48: #{_lambda_.11} parent=46 // loop_pre_header
                  _
                $region49: #{_lambda_.11} parent=46 // loop_header
                  %s164 = sphi 0, %s168
                  %p165 = scmp.ge.s32.totalorder %s164, 1
                  %s169 = sphi %s113, %s113
                  %s170 = sphi %s109, %s109
                $region50: #{_lambda_.11} parent=46 // loop_header_branch
                  %167 = sbr.rel (%p165) target = $region54
                $region51: #{_lambda_.11} parent=46 // loop_body
                  %v171 = vld [vmem:[%s169] sm:$0xff]
                  %172 = vst [vmem:[%s170] sm:$0xff] %v171
                  %v173 = vld [vmem:[%s169 + $0x10] sm:$0xff]
                  %174 = vst [vmem:[%s170 + $0x8] sm:$0xff] %v173
                  %v175 = vld [vmem:[%s169 + $0x20] sm:$0xff]
                  %176 = vst [vmem:[%s170 + $0x10] sm:$0xff] %v175
                  %v177 = vld [vmem:[%s169 + $0x30] sm:$0xff]
                  %178 = vst [vmem:[%s170 + $0x18] sm:$0xff] %v177
                  %v179 = vld [vmem:[%s169 + $0x40] sm:$0xff]
                  %180 = vst [vmem:[%s170 + $0x20] sm:$0xff] %v179
                  %v181 = vld [vmem:[%s169 + $0x50] sm:$0xff]
                  %182 = vst [vmem:[%s170 + $0x28] sm:$0xff] %v181
                  %v183 = vld [vmem:[%s169 + $0x60] sm:$0xff]
                  %184 = vst [vmem:[%s170 + $0x30] sm:$0xff] %v183
                  %v185 = vld [vmem:[%s169 + $0x70] sm:$0xff]
                  %186 = vst [vmem:[%s170 + $0x38] sm:$0xff] %v185
                  %v187 = vld [vmem:[%s169 + $0x80] sm:$0xff]
                  %188 = vst [vmem:[%s170 + $0x40] sm:$0xff] %v187
                  %v189 = vld [vmem:[%s169 + $0x90] sm:$0xff]
                  %190 = vst [vmem:[%s170 + $0x48] sm:$0xff] %v189
                  %v191 = vld [vmem:[%s169 + $0xa0] sm:$0xff]
                  %192 = vst [vmem:[%s170 + $0x50] sm:$0xff] %v191
                  %v193 = vld [vmem:[%s169 + $0xb0] sm:$0xff]
                  %194 = vst [vmem:[%s170 + $0x58] sm:$0xff] %v193
                  %v195 = vld [vmem:[%s169 + $0xc0] sm:$0xff]
                  %196 = vst [vmem:[%s170 + $0x60] sm:$0xff] %v195
                  %v197 = vld [vmem:[%s169 + $0xd0] sm:$0xff]
                  %198 = vst [vmem:[%s170 + $0x68] sm:$0xff] %v197
                  %v199 = vld [vmem:[%s169 + $0xe0] sm:$0xff]
                  %200 = vst [vmem:[%s170 + $0x70] sm:$0xff] %v199
                  %v201 = vld [vmem:[%s169 + $0xf0] sm:$0xff]
                  %202 = vst [vmem:[%s170 + $0x78] sm:$0xff] %v201
                $region52: #{_lambda_.11} parent=46 // loop_footer
                  %s168 = sadd.s32 1, %s164
                $region53: #{_lambda_.11} parent=46 // loop_footer_branch
                  %163 = sbr.rel target = $region49
                $region54: #{_lambda_.11} parent=46 // loop_exit
                  _
              $region47: #{_lambda_.11} parent=31 // pred_fallthru
                _
              // Predicated region
              $region55: #{_lambda_.11} parent=31 // pred_check
                _
              $region56: #{_lambda_.11} parent=31 // pred_check_branch
                %204 = sbr.rel target = $region58
              $region57: #{_lambda_.11} parent=31 // pred_region
                _
              $region58: #{_lambda_.11} parent=31 // pred_fallthru
                _
            $region32: #{_lambda_.11} parent=27 // pred_fallthru
              _
            // Predicated region
            $region33: #{_lambda_.11} parent=27 // pred_check
              _
            $region34: #{_lambda_.11} parent=27 // pred_check_branch
              %119 = sbr.rel target = $region36
            $region35: #{_lambda_.11} parent=27 // pred_region
              loop: start=0, step=1, limit=1
              $region37: #{_lambda_.11} parent=35 // loop_pre_header
                _
              $region38: #{_lambda_.11} parent=35 // loop_header
                %s122 = sphi 0, %s126
                %p123 = scmp.ge.s32.totalorder %s122, 1
                %s127 = sphi %s113, %s113
                %s128 = sphi %s109, %s109
              $region39: #{_lambda_.11} parent=35 // loop_header_branch
                %125 = sbr.rel (%p123) target = $region43
              $region40: #{_lambda_.11} parent=35 // loop_body
                %v129 = vld [vmem:[%s127] sm:$0xff]
                %130 = vst [vmem:[%s128] sm:$0xff] %v129
                %v131 = vld [vmem:[%s127 + $0x10] sm:$0xff]
                %132 = vst [vmem:[%s128 + $0x8] sm:$0xff] %v131
                %v133 = vld [vmem:[%s127 + $0x20] sm:$0xff]
                %134 = vst [vmem:[%s128 + $0x10] sm:$0xff] %v133
                %v135 = vld [vmem:[%s127 + $0x30] sm:$0xff]
                %136 = vst [vmem:[%s128 + $0x18] sm:$0xff] %v135
                %v137 = vld [vmem:[%s127 + $0x40] sm:$0xff]
                %138 = vst [vmem:[%s128 + $0x20] sm:$0xff] %v137
                %v139 = vld [vmem:[%s127 + $0x50] sm:$0xff]
                %140 = vst [vmem:[%s128 + $0x28] sm:$0xff] %v139
                %v141 = vld [vmem:[%s127 + $0x60] sm:$0xff]
                %142 = vst [vmem:[%s128 + $0x30] sm:$0xff] %v141
                %v143 = vld [vmem:[%s127 + $0x70] sm:$0xff]
                %144 = vst [vmem:[%s128 + $0x38] sm:$0xff] %v143
                %v145 = vld [vmem:[%s127 + $0x80] sm:$0xff]
                %146 = vst [vmem:[%s128 + $0x40] sm:$0xff] %v145
                %v147 = vld [vmem:[%s127 + $0x90] sm:$0xff]
                %148 = vst [vmem:[%s128 + $0x48] sm:$0xff] %v147
                %v149 = vld [vmem:[%s127 + $0xa0] sm:$0xff]
                %150 = vst [vmem:[%s128 + $0x50] sm:$0xff] %v149
                %v151 = vld [vmem:[%s127 + $0xb0] sm:$0xff]
                %152 = vst [vmem:[%s128 + $0x58] sm:$0xff] %v151
                %v153 = vld [vmem:[%s127 + $0xc0] sm:$0xff]
                %154 = vst [vmem:[%s128 + $0x60] sm:$0xff] %v153
                %v155 = vld [vmem:[%s127 + $0xd0] sm:$0xff]
                %156 = vst [vmem:[%s128 + $0x68] sm:$0xff] %v155
                %v157 = vld [vmem:[%s127 + $0xe0] sm:$0xff]
                %158 = vst [vmem:[%s128 + $0x70] sm:$0xff] %v157
                %v159 = vld [vmem:[%s127 + $0xf0] sm:$0xff]
                %160 = vst [vmem:[%s128 + $0x78] sm:$0xff] %v159
              $region41: #{_lambda_.11} parent=35 // loop_footer
                %s126 = sadd.s32 1, %s122
              $region42: #{_lambda_.11} parent=35 // loop_footer_branch
                %121 = sbr.rel target = $region38
              $region43: #{_lambda_.11} parent=35 // loop_exit
                _
            $region36: #{_lambda_.11} parent=27 // pred_fallthru
              _
          $region28: #{_lambda_.11} parent=23 // pred_fallthru
            _
          %205 = vnop
        $region24: #{_lambda_.11} parent=19 // pred_fallthru
          _
      $region20: #{_lambda_.11} parent=5 // pred_fallthru
        _
      %p206 = scmp.le.s32.totalorder 1, %s8
      %p207 = scmp.lt.s32.totalorder %s8, 3
      %p208 = pnand %p206, %p207
      %p209 = pneg %p208
      // Predicated region
      $region59: #{_lambda_.11} parent=5 // pred_check
        _
      $region60: #{_lambda_.11} parent=5 // pred_check_branch
        %211 = sbr.rel (%p208) target = $region62
      $region61: #{_lambda_.11} parent=5 // pred_region
        %s212 = ssub.s32 %s8, 1
        %s213 = sand.u32 %s21, 1
        %s214 = sand.u32 %s21, 1
        %s215 = smul.addr %s214, 128
        %s216 = scalar_lea.vmem [#allocation2], %s215
        // Predicated region
        $region63: #{_lambda_.11} parent=61 // pred_check
          %p217 = pneg %p34
        $region64: #{_lambda_.11} parent=61 // pred_check_branch
          %219 = sbr.rel (%p217) target = $region66
        $region65: #{_lambda_.11} parent=61 // pred_region
          _
        $region66: #{_lambda_.11} parent=61 // pred_fallthru
          _
        %s220 = sand.u32 %s21, 1
        %s221 = sand.u32 %s21, 1
        %s222 = smul.addr %s221, 128
        %s223 = scalar_lea.vmem [#allocation2], %s222
        %p224 = pneg %p34
        %p225 = pneg %p31
        %p226 = pneg %p55
        %p227 = pneg %p52
        %p228 = pneg %p81
        %p229 = pneg %p78
        %s230 = smul.u32 16, %s13
        %p231 = scmp.lt.s32.totalorder %s230, 31
        %s232 = scalar_select %p231, %s230, 31
        %s233 = smul.addr %s232, 8
        %s234 = scalar_lea.vmem %s2, %s233
        %s235 = smul.u32 16, %s13
        %s236 = smul.u32 16, %s13
        %p237 = scmp.lt.s32.totalorder %s236, 31
        %s238 = scalar_select %p237, %s236, 31
        %s239 = smul.addr %s238, 8
        %s240 = scalar_lea.vmem %s2, %s239
        %s241 = smul.u32 16, %s13
        %v242 = vld [vmem:[%s216] sm:$0xff]
        %v243 = vld [vmem:[%s216 + $0x8] sm:$0xff]
        %v244 = vld [vmem:[%s216 + $0x10] sm:$0xff]
        %v245 = vld [vmem:[%s216 + $0x18] sm:$0xff]
        %v246 = vld [vmem:[%s216 + $0x20] sm:$0xff]
        %v247 = vld [vmem:[%s216 + $0x28] sm:$0xff]
        %v248 = vld [vmem:[%s216 + $0x30] sm:$0xff]
        %v249 = vld [vmem:[%s216 + $0x38] sm:$0xff]
        %v250 = vld [vmem:[%s216 + $0x40] sm:$0xff]
        %v251 = vld [vmem:[%s216 + $0x48] sm:$0xff]
        %v252 = vld [vmem:[%s216 + $0x50] sm:$0xff]
        %v253 = vld [vmem:[%s216 + $0x58] sm:$0xff]
        %v254 = vld [vmem:[%s216 + $0x60] sm:$0xff]
        %v255 = vld [vmem:[%s216 + $0x68] sm:$0xff]
        %v256 = vld [vmem:[%s216 + $0x70] sm:$0xff]
        %v257 = vld [vmem:[%s216 + $0x78] sm:$0xff]
        %v258 = vmax.f32 %v242, 0.0
        %v259 = vmax.f32 %v243, 0.0
        %v260 = vmax.f32 %v244, 0.0
        %v261 = vmax.f32 %v245, 0.0
        %v262 = vmax.f32 %v246, 0.0
        %v263 = vmax.f32 %v247, 0.0
        %v264 = vmax.f32 %v248, 0.0
        %v265 = vmax.f32 %v249, 0.0
        %v266 = vmax.f32 %v250, 0.0
        %v267 = vmax.f32 %v251, 0.0
        %v268 = vmax.f32 %v252, 0.0
        %v269 = vmax.f32 %v253, 0.0
        %v270 = vmax.f32 %v254, 0.0
        %v271 = vmax.f32 %v255, 0.0
        %v272 = vmax.f32 %v256, 0.0
        %v273 = vmax.f32 %v257, 0.0
        %v274 = vld [vmem:[%s1] sm:$0xff]
        %v275 = vld [vmem:[%s1 + $0x8] sm:$0xff]
        %v276 = vld [vmem:[%s1 + $0x10] sm:$0xff]
        %v277 = vld [vmem:[%s1 + $0x18] sm:$0xff]
        %v278 = vld [vmem:[%s1 + $0x20] sm:$0xff]
        %v279 = vld [vmem:[%s1 + $0x28] sm:$0xff]
        %v280 = vld [vmem:[%s1 + $0x30] sm:$0xff]
        %v281 = vld [vmem:[%s1 + $0x38] sm:$0xff]
        %v282 = vld [vmem:[%s1 + $0x40] sm:$0xff]
        %v283 = vld [vmem:[%s1 + $0x48] sm:$0xff]
        %v284 = vld [vmem:[%s1 + $0x50] sm:$0xff]
        %v285 = vld [vmem:[%s1 + $0x58] sm:$0xff]
        %v286 = vld [vmem:[%s1 + $0x60] sm:$0xff]
        %v287 = vld [vmem:[%s1 + $0x68] sm:$0xff]
        %v288 = vld [vmem:[%s1 + $0x70] sm:$0xff]
        %v289 = vld [vmem:[%s1 + $0x78] sm:$0xff]
        %290 = vmatprep.subr.mxu0 0.0
        %291 = vmatpush1.msra.mxu0 %v274
        %292 = vmatprep.subr.mxu0 0.0
        %293 = vmatpush1.msra.mxu0 %v275
        %294 = vmatprep.subr.mxu0 0.0
        %295 = vmatpush1.msra.mxu0 %v276
        %296 = vmatprep.subr.mxu0 0.0
        %297 = vmatpush1.msra.mxu0 %v277
        %298 = vmatprep.subr.mxu0 0.0
        %299 = vmatpush1.msra.mxu0 %v278
        %300 = vmatprep.subr.mxu0 0.0
        %301 = vmatpush1.msra.mxu0 %v279
        %302 = vmatprep.subr.mxu0 0.0
        %303 = vmatpush1.msra.mxu0 %v280
        %304 = vmatprep.subr.mxu0 0.0
        %305 = vmatpush1.msra.mxu0 %v281
        %306 = vmatprep.subr.mxu0 0.0
        %307 = vmatpush1.msra.mxu0 %v282
        %308 = vmatprep.subr.mxu0 0.0
        %309 = vmatpush1.msra.mxu0 %v283
        %310 = vmatprep.subr.mxu0 0.0
        %311 = vmatpush1.msra.mxu0 %v284
        %312 = vmatprep.subr.mxu0 0.0
        %313 = vmatpush1.msra.mxu0 %v285
        %314 = vmatprep.subr.mxu0 0.0
        %315 = vmatpush1.msra.mxu0 %v286
        %316 = vmatprep.subr.mxu0 0.0
        %317 = vmatpush1.msra.mxu0 %v287
        %318 = vmatprep.subr.mxu0 0.0
        %319 = vmatpush1.msra.mxu0 %v288
        %320 = vmatprep.subr.mxu0 0.0
        %321 = vmatpush1.msra.mxu0 %v289
        %322 = vmatprep.subr.mxu0 0.0
        %323 = vmatpush1.msra.mxu0 0.0
        %324 = vmatprep.subr.mxu0 0.0
        %325 = vmatpush1.msra.mxu0 0.0
        %326 = vmatprep.subr.mxu0 0.0
        %327 = vmatpush1.msra.mxu0 0.0
        %328 = vmatprep.subr.mxu0 0.0
        %329 = vmatpush1.msra.mxu0 0.0
        %330 = vmatprep.subr.mxu0 0.0
        %331 = vmatpush1.msra.mxu0 0.0
        %332 = vmatprep.subr.mxu0 0.0
        %333 = vmatpush1.msra.mxu0 0.0
        %334 = vmatprep.subr.mxu0 0.0
        %335 = vmatpush1.msra.mxu0 0.0
        %336 = vmatprep.subr.mxu0 0.0
        %337 = vmatpush1.msra.mxu0 0.0
        %338 = vmatprep.subr.mxu0 0.0
        %339 = vmatpush1.msra.mxu0 0.0
        %340 = vmatprep.subr.mxu0 0.0
        %341 = vmatpush1.msra.mxu0 0.0
        %342 = vmatprep.subr.mxu0 0.0
        %343 = vmatpush1.msra.mxu0 0.0
        %344 = vmatprep.subr.mxu0 0.0
        %345 = vmatpush1.msra.mxu0 0.0
        %346 = vmatprep.subr.mxu0 0.0
        %347 = vmatpush1.msra.mxu0 0.0
        %348 = vmatprep.subr.mxu0 0.0
        %349 = vmatpush1.msra.mxu0 0.0
        %350 = vmatprep.subr.mxu0 0.0
        %351 = vmatpush1.msra.mxu0 0.0
        %352 = vmatprep.subr.mxu0 0.0
        %353 = vmatpush1.msra.mxu0 0.0
        %354 = vmatprep.mubr.f32.mxu0 0.0
        %355 = vmatmul.mubr.f32.gmra.mrb[0].mxu0 %v258
        %v356 = vpop.f32.mrb[0].mxu0
        %v357 = vadd.f32 0.0, %v356
        %v358 = vpop.f32.mrb[0].mxu0
        %359 = vmatprep.mubr.f32.mxu0 0.0
        %360 = vmatmul.mubr.f32.gmra.mrb[0].mxu0 %v259
        %v361 = vpop.f32.mrb[0].mxu0
        %v362 = vadd.f32 0.0, %v361
        %v363 = vpop.f32.mrb[0].mxu0
        %364 = vmatprep.mubr.f32.mxu0 0.0
        %365 = vmatmul.mubr.f32.gmra.mrb[0].mxu0 %v260
        %v366 = vpop.f32.mrb[0].mxu0
        %v367 = vadd.f32 0.0, %v366
        %v368 = vpop.f32.mrb[0].mxu0
        %369 = vmatprep.mubr.f32.mxu0 0.0
        %370 = vmatmul.mubr.f32.gmra.mrb[0].mxu0 %v261
        %v371 = vpop.f32.mrb[0].mxu0
        %v372 = vadd.f32 0.0, %v371
        %v373 = vpop.f32.mrb[0].mxu0
        %374 = vmatprep.mubr.f32.mxu0 0.0
        %375 = vmatmul.mubr.f32.gmra.mrb[0].mxu0 %v262
        %v376 = vpop.f32.mrb[0].mxu0
        %v377 = vadd.f32 0.0, %v376
        %v378 = vpop.f32.mrb[0].mxu0
        %379 = vmatprep.mubr.f32.mxu0 0.0
        %380 = vmatmul.mubr.f32.gmra.mrb[0].mxu0 %v263
        %v381 = vpop.f32.mrb[0].mxu0
        %v382 = vadd.f32 0.0, %v381
        %v383 = vpop.f32.mrb[0].mxu0
        %384 = vmatprep.mubr.f32.mxu0 0.0
        %385 = vmatmul.mubr.f32.gmra.mrb[0].mxu0 %v264
        %v386 = vpop.f32.mrb[0].mxu0
        %v387 = vadd.f32 0.0, %v386
        %v388 = vpop.f32.mrb[0].mxu0
        %389 = vmatprep.mubr.f32.mxu0 0.0
        %390 = vmatmul.mubr.f32.gmra.mrb[0].mxu0 %v265
        %v391 = vpop.f32.mrb[0].mxu0
        %v392 = vadd.f32 0.0, %v391
        %v393 = vpop.f32.mrb[0].mxu0
        %394 = vmatprep.mubr.f32.mxu0 0.0
        %395 = vmatmul.mubr.f32.gmra.mrb[0].mxu0 %v266
        %v396 = vpop.f32.mrb[0].mxu0
        %v397 = vadd.f32 0.0, %v396
        %v398 = vpop.f32.mrb[0].mxu0
        %399 = vmatprep.mubr.f32.mxu0 0.0
        %400 = vmatmul.mubr.f32.gmra.mrb[0].mxu0 %v267
        %v401 = vpop.f32.mrb[0].mxu0
        %v402 = vadd.f32 0.0, %v401
        %v403 = vpop.f32.mrb[0].mxu0
        %404 = vmatprep.mubr.f32.mxu0 0.0
        %405 = vmatmul.mubr.f32.gmra.mrb[0].mxu0 %v268
        %v406 = vpop.f32.mrb[0].mxu0
        %v407 = vadd.f32 0.0, %v406
        %v408 = vpop.f32.mrb[0].mxu0
        %409 = vmatprep.mubr.f32.mxu0 0.0
        %410 = vmatmul.mubr.f32.gmra.mrb[0].mxu0 %v269
        %v411 = vpop.f32.mrb[0].mxu0
        %v412 = vadd.f32 0.0, %v411
        %v413 = vpop.f32.mrb[0].mxu0
        %414 = vmatprep.mubr.f32.mxu0 0.0
        %415 = vmatmul.mubr.f32.gmra.mrb[0].mxu0 %v270
        %v416 = vpop.f32.mrb[0].mxu0
        %v417 = vadd.f32 0.0, %v416
        %v418 = vpop.f32.mrb[0].mxu0
        %419 = vmatprep.mubr.f32.mxu0 0.0
        %420 = vmatmul.mubr.f32.gmra.mrb[0].mxu0 %v271
        %v421 = vpop.f32.mrb[0].mxu0
        %v422 = vadd.f32 0.0, %v421
        %v423 = vpop.f32.mrb[0].mxu0
        %424 = vmatprep.mubr.f32.mxu0 0.0
        %425 = vmatmul.mubr.f32.gmra.mrb[0].mxu0 %v272
        %v426 = vpop.f32.mrb[0].mxu0
        %v427 = vadd.f32 0.0, %v426
        %v428 = vpop.f32.mrb[0].mxu0
        %429 = vmatprep.mubr.f32.mxu0 0.0
        %430 = vmatmul.mubr.f32.gmra.mrb[0].mxu0 %v273
        %v431 = vpop.f32.mrb[0].mxu0
        %v432 = vadd.f32 0.0, %v431
        %v433 = vpop.f32.mrb[0].mxu0
        %434 = vdwg.mxu0
        %435 = vst [vmem:[%s240] sm:$0xff] %v357
        %436 = vst [vmem:[%s240 + $0x8] sm:$0xff] %v362
        %437 = vst [vmem:[%s240 + $0x10] sm:$0xff] %v367
        %438 = vst [vmem:[%s240 + $0x18] sm:$0xff] %v372
        %439 = vst [vmem:[%s240 + $0x20] sm:$0xff] %v377
        %440 = vst [vmem:[%s240 + $0x28] sm:$0xff] %v382
        %441 = vst [vmem:[%s240 + $0x30] sm:$0xff] %v387
        %442 = vst [vmem:[%s240 + $0x38] sm:$0xff] %v392
        %443 = vst [vmem:[%s240 + $0x40] sm:$0xff] %v397
        %444 = vst [vmem:[%s240 + $0x48] sm:$0xff] %v402
        %445 = vst [vmem:[%s240 + $0x50] sm:$0xff] %v407
        %446 = vst [vmem:[%s240 + $0x58] sm:$0xff] %v412
        %447 = vst [vmem:[%s240 + $0x60] sm:$0xff] %v417
        %448 = vst [vmem:[%s240 + $0x68] sm:$0xff] %v422
        %449 = vst [vmem:[%s240 + $0x70] sm:$0xff] %v427
        %450 = vst [vmem:[%s240 + $0x78] sm:$0xff] %v432
        %s451 = smul.u32 16, %s13
        %p452 = scmp.lt.s32.totalorder %s451, 31
        %s453 = scalar_select %p452, %s451, 31
        %s454 = smul.addr %s453, 8
        %s455 = scalar_lea.vmem %s2, %s454
        // Predicated region
        $region67: #{_lambda_.11} parent=61 // pred_check
          %p456 = pneg %p78
        $region68: #{_lambda_.11} parent=61 // pred_check_branch
          %458 = sbr.rel (%p456) target = $region70
        $region69: #{_lambda_.11} parent=61 // pred_region
          %s459 = smul.u32 16, %s13
        $region70: #{_lambda_.11} parent=61 // pred_fallthru
          _
      $region62: #{_lambda_.11} parent=5 // pred_fallthru
        _
      %p460 = scmp.le.s32.totalorder 2, %s8
      // Predicated region
      $region71: #{_lambda_.11} parent=5 // pred_check
        %p461 = pneg %p460
      $region72: #{_lambda_.11} parent=5 // pred_check_branch
        %463 = sbr.rel (%p461) target = $region74
      $region73: #{_lambda_.11} parent=5 // pred_region
        %s464 = ssub.s32 %s8, 2
        // Predicated region
        $region75: #{_lambda_.11} parent=73 // pred_check
          %p465 = pneg %p84
        $region76: #{_lambda_.11} parent=73 // pred_check_branch
          %467 = sbr.rel (%p465) target = $region78
        $region77: #{_lambda_.11} parent=73 // pred_region
          %s468 = smul.u32 16, %s14
          %p469 = scmp.lt.s32.totalorder %s468, 31
          %s470 = scalar_select %p469, %s468, 31
          %s471 = smul.addr %s470, 8
          %s472 = scalar_lea.vmem %s2, %s471
        $region78: #{_lambda_.11} parent=73 // pred_fallthru
          _
      $region74: #{_lambda_.11} parent=5 // pred_fallthru
        _
    $region6: #{_lambda_.11} parent=1 // loop_footer
      %s12 = sadd.s32 1, %s8
    $region7: #{_lambda_.11} parent=1 // loop_footer_branch
      %7 = sbr.rel target = $region3
    $region8: #{_lambda_.11} parent=1 // loop_exit
      _

// kernel: _lambda_.13
$region0: #{_lambda_.13}
  #allocation0 [shape = 'u32[]', space=smem, size = 0x4, offset = 0x4, fixed_abs, tag = 'smem constant byte address 0x4 - core index']
  #allocation1 [shape = 'u32[144,128]{1,0:T(1,128)}', space=vmem, size = 0x12000, scoped, tag = 'internal scratch']
  %s0 = inlined_call_operand.vmem [shape: f32[256,256], index: 0, kind: input, shape index: {}, may-alias: {0,1}]
  %s1 = inlined_call_operand.vmem [shape: f32[256,256], index: 1, kind: input, shape index: {}, may-alias: {0,1}]
  %s2 = inlined_call_operand.hbm [shape: f32[256,256], index: 2, kind: output, shape index: {}]
  %s3 = sld [smem:[#allocation0]]
  $region117: #{_lambda_.13} parent=0
    _
  %s5 = ssub.s32 1, %s3
  %s6 = scalar_select 0, %s5, %s3
  $region1: #{_lambda_.13} parent=0
    #allocation2 [shape = 'u8[131072]{0}', space=vmem, size = 0x20000, scoped, tag = 'input window, operand 0']
    #allocation3 [shape = 'u8[131072]{0}', space=vmem, size = 0x20000, scoped, tag = 'input window, operand 1']
    #allocation4 [shape = 'u8[131072]{0}', space=vmem, size = 0x20000, scoped, tag = 'output window, operand 0']
    #allocation5 [shape = 's32[2]{0}', space=sflag, size = 0x8, scoped, tag = 'scoped memory for _lambda_.13']
    %7 = vsyncpa [#allocation5], 0
    %s8 = scalar_lea.sflag [#allocation5], 1
    %9 = vsyncpa %s8, 0
    loop: start=0, step=1, limit=6
    $region2: #{_lambda_.13} parent=1 // loop_pre_header
      _
    $region3: #{_lambda_.13} parent=1 // loop_header
      %s11 = sphi 0, %s15
      %p12 = scmp.ge.s32.totalorder %s11, 6
      %s18 = sphi 0, %s30
      %s19 = sphi 0, %s26
      %s20 = sphi 0, %s18
      %s21 = sphi 0, %s19
      %s22 = sphi 0, %s20
      %s23 = sphi 0, %s21
      %s33 = sphi 0, %s35
      %s36 = sphi 0, %s33
      %s37 = sphi 0, %s36
      %s53 = sphi 0, %s37
      %s59 = sphi 0, %s61
      %s62 = sphi 0, %s59
      %s63 = sphi 0, %s62
      %s79 = sphi 0, %s63
      %s87 = sphi 0, %s89
      %s90 = sphi 0, %s87
      %s91 = sphi 0, %s90
      %s107 = sphi 0, %s91
    $region4: #{_lambda_.13} parent=1 // loop_header_branch
      %14 = sbr.rel (%p12) target = $region8
    $region5: #{_lambda_.13} parent=1 // loop_body
      %s16 = ssub.s32 %s11, 1
      %s17 = ssub.s32 %s11, 2
      %s24 = sadd.s32 1, %s19
      %p25 = scmp.ge.s32.totalorder %s24, 2
      %s26 = scalar_select %p25, 0, %s24
      %s27 = sadd.s32 1, %s18
      %s28 = scalar_select %p25, %s27, %s18
      %p29 = scmp.ge.s32.totalorder %s28, 2
      %s30 = scalar_select %p29, 0, %s28
      %s31 = ssub.s32 %s18, %s30
      %p32 = scmp.eq.s32.totalorder %s31, 0
      %s34 = sadd.s32 %s33, 1
      %s35 = scalar_select %p32, %s33, %s34
      %p38 = pneg %p32
      %p39 = scmp.eq.s32.totalorder %s11, 3
      %p40 = por %p38, %p39
      %p41 = scmp.ne.s32.totalorder %s33, %s36
      %p42 = scmp.eq.s32.totalorder %s11, 0
      %p43 = por %p41, %p42
      %p44 = scmp.ne.s32.totalorder %s33, %s36
      %p45 = scmp.eq.s32.totalorder %s16, 3
      %p46 = por %p44, %p45
      %p47 = scmp.ne.s32.totalorder %s36, %s37
      %p48 = scmp.eq.s32.totalorder %s16, 0
      %p49 = por %p47, %p48
      %p50 = scmp.ne.s32.totalorder %s36, %s37
      %p51 = scmp.eq.s32.totalorder %s17, 3
      %p52 = por %p50, %p51
      %p54 = scmp.ne.s32.totalorder %s37, %s53
      %p55 = scmp.eq.s32.totalorder %s17, 0
      %p56 = por %p54, %p55
      %s57 = ssub.s32 %s19, %s26
      %p58 = scmp.eq.s32.totalorder %s57, 0
      %s60 = sadd.s32 %s59, 1
      %s61 = scalar_select %p58, %s59, %s60
      %p64 = pneg %p58
      %p65 = scmp.eq.s32.totalorder %s11, 3
      %p66 = por %p64, %p65
      %p67 = scmp.ne.s32.totalorder %s59, %s62
      %p68 = scmp.eq.s32.totalorder %s11, 0
      %p69 = por %p67, %p68
      %p70 = scmp.ne.s32.totalorder %s59, %s62
      %p71 = scmp.eq.s32.totalorder %s16, 3
      %p72 = por %p70, %p71
      %p73 = scmp.ne.s32.totalorder %s62, %s63
      %p74 = scmp.eq.s32.totalorder %s16, 0
      %p75 = por %p73, %p74
      %p76 = scmp.ne.s32.totalorder %s62, %s63
      %p77 = scmp.eq.s32.totalorder %s17, 3
      %p78 = por %p76, %p77
      %p80 = scmp.ne.s32.totalorder %s63, %s79
      %p81 = scmp.eq.s32.totalorder %s17, 0
      %p82 = por %p80, %p81
      %s83 = ssub.s32 %s18, %s30
      %s84 = ssub.s32 %s19, %s26
      %s85 = sor.u32 %s83, %s84
      %p86 = scmp.eq.s32.totalorder %s85, 0
      %s88 = sadd.s32 %s87, 1
      %s89 = scalar_select %p86, %s87, %s88
      %p92 = pneg %p86
      %p93 = scmp.eq.s32.totalorder %s11, 3
      %p94 = por %p92, %p93
      %p95 = scmp.ne.s32.totalorder %s87, %s90
      %p96 = scmp.eq.s32.totalorder %s11, 0
      %p97 = por %p95, %p96
      %p98 = scmp.ne.s32.totalorder %s87, %s90
      %p99 = scmp.eq.s32.totalorder %s16, 3
      %p100 = por %p98, %p99
      %p101 = scmp.ne.s32.totalorder %s90, %s91
      %p102 = scmp.eq.s32.totalorder %s16, 0
      %p103 = por %p101, %p102
      %p104 = scmp.ne.s32.totalorder %s90, %s91
      %p105 = scmp.eq.s32.totalorder %s17, 3
      %p106 = por %p104, %p105
      %p108 = scmp.ne.s32.totalorder %s91, %s107
      %p109 = scmp.eq.s32.totalorder %s17, 0
      %p110 = por %p108, %p109
      %p111 = scmp.le.s32.totalorder 1, %s11
      %p112 = scmp.lt.s32.totalorder %s11, 5
      %p113 = pnand %p111, %p112
      %p114 = pneg %p113
      // Predicated region
      $region9: #{_lambda_.13} parent=5 // pred_check
        _
      $region10: #{_lambda_.13} parent=5 // pred_check_branch
        %116 = sbr.rel (%p113) target = $region12
      $region11: #{_lambda_.13} parent=5 // pred_region
        %s117 = ssub.s32 %s11, 1
      $region12: #{_lambda_.13} parent=5 // pred_fallthru
        _
      %p118 = scmp.lt.s32.totalorder %s11, 4
      // Predicated region
      $region13: #{_lambda_.13} parent=5 // pred_check
        %p119 = pneg %p118
      $region14: #{_lambda_.13} parent=5 // pred_check_branch
        %121 = sbr.rel (%p119) target = $region16
      $region15: #{_lambda_.13} parent=5 // pred_region
        // Predicated region
        $region17: #{_lambda_.13} parent=15 // pred_check
          %p122 = pneg %p43
        $region18: #{_lambda_.13} parent=15 // pred_check_branch
          %124 = sbr.rel (%p122) target = $region20
        $region19: #{_lambda_.13} parent=15 // pred_region
          %s125 = sand.u32 %s33, 1
          %s126 = sand.u32 %s33, 1
          %s127 = smul.addr %s126, 128
          %s128 = scalar_lea.vmem [#allocation2], %s127
          %s129 = smul.u32 16, %s18
          %s130 = smul.addr %s129, 2
          %s131 = sadd.s32 1, %s130
          %s132 = smul.addr %s131, 8
          %s133 = scalar_lea.vmem %s0, %s132
          // Predicated region
          $region21: #{_lambda_.13} parent=19 // pred_check
            _
          $region22: #{_lambda_.13} parent=19 // pred_check_branch
            %135 = sbr.rel (0) target = $region24
          $region23: #{_lambda_.13} parent=19 // pred_region
            // Predicated region
            $region25: #{_lambda_.13} parent=23 // pred_check
              _
            $region26: #{_lambda_.13} parent=23 // pred_check_branch
              %137 = sbr.rel (0) target = $region28
            $region27: #{_lambda_.13} parent=23 // pred_region
              // Predicated region
              $region40: #{_lambda_.13} parent=27 // pred_check
                _
              $region41: #{_lambda_.13} parent=27 // pred_check_branch
                %182 = sbr.rel (0) target = $region43
              $region42: #{_lambda_.13} parent=27 // pred_region
                loop: start=0, step=1, limit=1
                $region44: #{_lambda_.13} parent=42 // loop_pre_header
                  _
                $region45: #{_lambda_.13} parent=42 // loop_header
                  %s184 = sphi 0, %s188
                  %p185 = scmp.ge.s32.totalorder %s184, 1
                  %s189 = sphi %s133, %s133
                  %s190 = sphi %s128, %s128
                $region46: #{_lambda_.13} parent=42 // loop_header_branch
                  %187 = sbr.rel (%p185) target = $region50
                $region47: #{_lambda_.13} parent=42 // loop_body
                  %v191 = vld [vmem:[%s189] sm:$0xff]
                  %192 = vst [vmem:[%s190] sm:$0xff] %v191
                  %v193 = vld [vmem:[%s189 + $0x10] sm:$0xff]
                  %194 = vst [vmem:[%s190 + $0x8] sm:$0xff] %v193
                  %v195 = vld [vmem:[%s189 + $0x20] sm:$0xff]
                  %196 = vst [vmem:[%s190 + $0x10] sm:$0xff] %v195
                  %v197 = vld [vmem:[%s189 + $0x30] sm:$0xff]
                  %198 = vst [vmem:[%s190 + $0x18] sm:$0xff] %v197
                  %v199 = vld [vmem:[%s189 + $0x40] sm:$0xff]
                  %200 = vst [vmem:[%s190 + $0x20] sm:$0xff] %v199
                  %v201 = vld [vmem:[%s189 + $0x50] sm:$0xff]
                  %202 = vst [vmem:[%s190 + $0x28] sm:$0xff] %v201
                  %v203 = vld [vmem:[%s189 + $0x60] sm:$0xff]
                  %204 = vst [vmem:[%s190 + $0x30] sm:$0xff] %v203
                  %v205 = vld [vmem:[%s189 + $0x70] sm:$0xff]
                  %206 = vst [vmem:[%s190 + $0x38] sm:$0xff] %v205
                  %v207 = vld [vmem:[%s189 + $0x80] sm:$0xff]
                  %208 = vst [vmem:[%s190 + $0x40] sm:$0xff] %v207
                  %v209 = vld [vmem:[%s189 + $0x90] sm:$0xff]
                  %210 = vst [vmem:[%s190 + $0x48] sm:$0xff] %v209
                  %v211 = vld [vmem:[%s189 + $0xa0] sm:$0xff]
                  %212 = vst [vmem:[%s190 + $0x50] sm:$0xff] %v211
                  %v213 = vld [vmem:[%s189 + $0xb0] sm:$0xff]
                  %214 = vst [vmem:[%s190 + $0x58] sm:$0xff] %v213
                  %v215 = vld [vmem:[%s189 + $0xc0] sm:$0xff]
                  %216 = vst [vmem:[%s190 + $0x60] sm:$0xff] %v215
                  %v217 = vld [vmem:[%s189 + $0xd0] sm:$0xff]
                  %218 = vst [vmem:[%s190 + $0x68] sm:$0xff] %v217
                  %v219 = vld [vmem:[%s189 + $0xe0] sm:$0xff]
                  %220 = vst [vmem:[%s190 + $0x70] sm:$0xff] %v219
                  %v221 = vld [vmem:[%s189 + $0xf0] sm:$0xff]
                  %222 = vst [vmem:[%s190 + $0x78] sm:$0xff] %v221
                $region48: #{_lambda_.13} parent=42 // loop_footer
                  %s188 = sadd.s32 1, %s184
                $region49: #{_lambda_.13} parent=42 // loop_footer_branch
                  %183 = sbr.rel target = $region45
                $region50: #{_lambda_.13} parent=42 // loop_exit
                  _
              $region43: #{_lambda_.13} parent=27 // pred_fallthru
                _
              // Predicated region
              $region51: #{_lambda_.13} parent=27 // pred_check
                _
              $region52: #{_lambda_.13} parent=27 // pred_check_branch
                %224 = sbr.rel target = $region54
              $region53: #{_lambda_.13} parent=27 // pred_region
                _
              $region54: #{_lambda_.13} parent=27 // pred_fallthru
                _
            $region28: #{_lambda_.13} parent=23 // pred_fallthru
              _
            // Predicated region
            $region29: #{_lambda_.13} parent=23 // pred_check
              _
            $region30: #{_lambda_.13} parent=23 // pred_check_branch
              %139 = sbr.rel target = $region32
            $region31: #{_lambda_.13} parent=23 // pred_region
              loop: start=0, step=1, limit=1
              $region33: #{_lambda_.13} parent=31 // loop_pre_header
                _
              $region34: #{_lambda_.13} parent=31 // loop_header
                %s142 = sphi 0, %s146
                %p143 = scmp.ge.s32.totalorder %s142, 1
                %s147 = sphi %s133, %s133
                %s148 = sphi %s128, %s128
              $region35: #{_lambda_.13} parent=31 // loop_header_branch
                %145 = sbr.rel (%p143) target = $region39
              $region36: #{_lambda_.13} parent=31 // loop_body
                %v149 = vld [vmem:[%s147] sm:$0xff]
                %150 = vst [vmem:[%s148] sm:$0xff] %v149
                %v151 = vld [vmem:[%s147 + $0x10] sm:$0xff]
                %152 = vst [vmem:[%s148 + $0x8] sm:$0xff] %v151
                %v153 = vld [vmem:[%s147 + $0x20] sm:$0xff]
                %154 = vst [vmem:[%s148 + $0x10] sm:$0xff] %v153
                %v155 = vld [vmem:[%s147 + $0x30] sm:$0xff]
                %156 = vst [vmem:[%s148 + $0x18] sm:$0xff] %v155
                %v157 = vld [vmem:[%s147 + $0x40] sm:$0xff]
                %158 = vst [vmem:[%s148 + $0x20] sm:$0xff] %v157
                %v159 = vld [vmem:[%s147 + $0x50] sm:$0xff]
                %160 = vst [vmem:[%s148 + $0x28] sm:$0xff] %v159
                %v161 = vld [vmem:[%s147 + $0x60] sm:$0xff]
                %162 = vst [vmem:[%s148 + $0x30] sm:$0xff] %v161
                %v163 = vld [vmem:[%s147 + $0x70] sm:$0xff]
                %164 = vst [vmem:[%s148 + $0x38] sm:$0xff] %v163
                %v165 = vld [vmem:[%s147 + $0x80] sm:$0xff]
                %166 = vst [vmem:[%s148 + $0x40] sm:$0xff] %v165
                %v167 = vld [vmem:[%s147 + $0x90] sm:$0xff]
                %168 = vst [vmem:[%s148 + $0x48] sm:$0xff] %v167
                %v169 = vld [vmem:[%s147 + $0xa0] sm:$0xff]
                %170 = vst [vmem:[%s148 + $0x50] sm:$0xff] %v169
                %v171 = vld [vmem:[%s147 + $0xb0] sm:$0xff]
                %172 = vst [vmem:[%s148 + $0x58] sm:$0xff] %v171
                %v173 = vld [vmem:[%s147 + $0xc0] sm:$0xff]
                %174 = vst [vmem:[%s148 + $0x60] sm:$0xff] %v173
                %v175 = vld [vmem:[%s147 + $0xd0] sm:$0xff]
                %176 = vst [vmem:[%s148 + $0x68] sm:$0xff] %v175
                %v177 = vld [vmem:[%s147 + $0xe0] sm:$0xff]
                %178 = vst [vmem:[%s148 + $0x70] sm:$0xff] %v177
                %v179 = vld [vmem:[%s147 + $0xf0] sm:$0xff]
                %180 = vst [vmem:[%s148 + $0x78] sm:$0xff] %v179
              $region37: #{_lambda_.13} parent=31 // loop_footer
                %s146 = sadd.s32 1, %s142
              $region38: #{_lambda_.13} parent=31 // loop_footer_branch
                %141 = sbr.rel target = $region34
              $region39: #{_lambda_.13} parent=31 // loop_exit
                _
            $region32: #{_lambda_.13} parent=23 // pred_fallthru
              _
          $region24: #{_lambda_.13} parent=19 // pred_fallthru
            _
          %225 = vnop
        $region20: #{_lambda_.13} parent=15 // pred_fallthru
          _
        // Predicated region
        $region55: #{_lambda_.13} parent=15 // pred_check
          %p226 = pneg %p69
        $region56: #{_lambda_.13} parent=15 // pred_check_branch
          %228 = sbr.rel (%p226) target = $region58
        $region57: #{_lambda_.13} parent=15 // pred_region
          %s229 = sand.u32 %s59, 1
          %s230 = sand.u32 %s59, 1
          %s231 = smul.addr %s230, 128
          %s232 = scalar_lea.vmem [#allocation3], %s231
          %s233 = smul.u32 16, %s19
          %s234 = smul.addr %s233, 2
          %s235 = sadd.s32 1, %s234
          %s236 = smul.addr %s235, 8
          %s237 = scalar_lea.vmem %s1, %s236
          // Predicated region
          $region59: #{_lambda_.13} parent=57 // pred_check
            _
          $region60: #{_lambda_.13} parent=57 // pred_check_branch
            %239 = sbr.rel (0) target = $region62
          $region61: #{_lambda_.13} parent=57 // pred_region
            // Predicated region
            $region63: #{_lambda_.13} parent=61 // pred_check
              _
            $region64: #{_lambda_.13} parent=61 // pred_check_branch
              %241 = sbr.rel (0) target = $region66
            $region65: #{_lambda_.13} parent=61 // pred_region
              // Predicated region
              $region78: #{_lambda_.13} parent=65 // pred_check
                _
              $region79: #{_lambda_.13} parent=65 // pred_check_branch
                %286 = sbr.rel (0) target = $region81
              $region80: #{_lambda_.13} parent=65 // pred_region
                loop: start=0, step=1, limit=1
                $region82: #{_lambda_.13} parent=80 // loop_pre_header
                  _
                $region83: #{_lambda_.13} parent=80 // loop_header
                  %s288 = sphi 0, %s292
                  %p289 = scmp.ge.s32.totalorder %s288, 1
                  %s293 = sphi %s237, %s237
                  %s294 = sphi %s232, %s232
                $region84: #{_lambda_.13} parent=80 // loop_header_branch
                  %291 = sbr.rel (%p289) target = $region88
                $region85: #{_lambda_.13} parent=80 // loop_body
                  %v295 = vld [vmem:[%s293] sm:$0xff]
                  %296 = vst [vmem:[%s294] sm:$0xff] %v295
                  %v297 = vld [vmem:[%s293 + $0x10] sm:$0xff]
                  %298 = vst [vmem:[%s294 + $0x8] sm:$0xff] %v297
                  %v299 = vld [vmem:[%s293 + $0x20] sm:$0xff]
                  %300 = vst [vmem:[%s294 + $0x10] sm:$0xff] %v299
                  %v301 = vld [vmem:[%s293 + $0x30] sm:$0xff]
                  %302 = vst [vmem:[%s294 + $0x18] sm:$0xff] %v301
                  %v303 = vld [vmem:[%s293 + $0x40] sm:$0xff]
                  %304 = vst [vmem:[%s294 + $0x20] sm:$0xff] %v303
                  %v305 = vld [vmem:[%s293 + $0x50] sm:$0xff]
                  %306 = vst [vmem:[%s294 + $0x28] sm:$0xff] %v305
                  %v307 = vld [vmem:[%s293 + $0x60] sm:$0xff]
                  %308 = vst [vmem:[%s294 + $0x30] sm:$0xff] %v307
                  %v309 = vld [vmem:[%s293 + $0x70] sm:$0xff]
                  %310 = vst [vmem:[%s294 + $0x38] sm:$0xff] %v309
                  %v311 = vld [vmem:[%s293 + $0x80] sm:$0xff]
                  %312 = vst [vmem:[%s294 + $0x40] sm:$0xff] %v311
                  %v313 = vld [vmem:[%s293 + $0x90] sm:$0xff]
                  %314 = vst [vmem:[%s294 + $0x48] sm:$0xff] %v313
                  %v315 = vld [vmem:[%s293 + $0xa0] sm:$0xff]
                  %316 = vst [vmem:[%s294 + $0x50] sm:$0xff] %v315
                  %v317 = vld [vmem:[%s293 + $0xb0] sm:$0xff]
                  %318 = vst [vmem:[%s294 + $0x58] sm:$0xff] %v317
                  %v319 = vld [vmem:[%s293 + $0xc0] sm:$0xff]
                  %320 = vst [vmem:[%s294 + $0x60] sm:$0xff] %v319
                  %v321 = vld [vmem:[%s293 + $0xd0] sm:$0xff]
                  %322 = vst [vmem:[%s294 + $0x68] sm:$0xff] %v321
                  %v323 = vld [vmem:[%s293 + $0xe0] sm:$0xff]
                  %324 = vst [vmem:[%s294 + $0x70] sm:$0xff] %v323
                  %v325 = vld [vmem:[%s293 + $0xf0] sm:$0xff]
                  %326 = vst [vmem:[%s294 + $0x78] sm:$0xff] %v325
                $region86: #{_lambda_.13} parent=80 // loop_footer
                  %s292 = sadd.s32 1, %s288
                $region87: #{_lambda_.13} parent=80 // loop_footer_branch
                  %287 = sbr.rel target = $region83
                $region88: #{_lambda_.13} parent=80 // loop_exit
                  _
              $region81: #{_lambda_.13} parent=65 // pred_fallthru
                _
              // Predicated region
              $region89: #{_lambda_.13} parent=65 // pred_check
                _
              $region90: #{_lambda_.13} parent=65 // pred_check_branch
                %328 = sbr.rel target = $region92
              $region91: #{_lambda_.13} parent=65 // pred_region
                _
              $region92: #{_lambda_.13} parent=65 // pred_fallthru
                _
            $region66: #{_lambda_.13} parent=61 // pred_fallthru
              _
            // Predicated region
            $region67: #{_lambda_.13} parent=61 // pred_check
              _
            $region68: #{_lambda_.13} parent=61 // pred_check_branch
              %243 = sbr.rel target = $region70
            $region69: #{_lambda_.13} parent=61 // pred_region
              loop: start=0, step=1, limit=1
              $region71: #{_lambda_.13} parent=69 // loop_pre_header
                _
              $region72: #{_lambda_.13} parent=69 // loop_header
                %s246 = sphi 0, %s250
                %p247 = scmp.ge.s32.totalorder %s246, 1
                %s251 = sphi %s237, %s237
                %s252 = sphi %s232, %s232
              $region73: #{_lambda_.13} parent=69 // loop_header_branch
                %249 = sbr.rel (%p247) target = $region77
              $region74: #{_lambda_.13} parent=69 // loop_body
                %v253 = vld [vmem:[%s251] sm:$0xff]
                %254 = vst [vmem:[%s252] sm:$0xff] %v253
                %v255 = vld [vmem:[%s251 + $0x10] sm:$0xff]
                %256 = vst [vmem:[%s252 + $0x8] sm:$0xff] %v255
                %v257 = vld [vmem:[%s251 + $0x20] sm:$0xff]
                %258 = vst [vmem:[%s252 + $0x10] sm:$0xff] %v257
                %v259 = vld [vmem:[%s251 + $0x30] sm:$0xff]
                %260 = vst [vmem:[%s252 + $0x18] sm:$0xff] %v259
                %v261 = vld [vmem:[%s251 + $0x40] sm:$0xff]
                %262 = vst [vmem:[%s252 + $0x20] sm:$0xff] %v261
                %v263 = vld [vmem:[%s251 + $0x50] sm:$0xff]
                %264 = vst [vmem:[%s252 + $0x28] sm:$0xff] %v263
                %v265 = vld [vmem:[%s251 + $0x60] sm:$0xff]
                %266 = vst [vmem:[%s252 + $0x30] sm:$0xff] %v265
                %v267 = vld [vmem:[%s251 + $0x70] sm:$0xff]
                %268 = vst [vmem:[%s252 + $0x38] sm:$0xff] %v267
                %v269 = vld [vmem:[%s251 + $0x80] sm:$0xff]
                %270 = vst [vmem:[%s252 + $0x40] sm:$0xff] %v269
                %v271 = vld [vmem:[%s251 + $0x90] sm:$0xff]
                %272 = vst [vmem:[%s252 + $0x48] sm:$0xff] %v271
                %v273 = vld [vmem:[%s251 + $0xa0] sm:$0xff]
                %274 = vst [vmem:[%s252 + $0x50] sm:$0xff] %v273
                %v275 = vld [vmem:[%s251 + $0xb0] sm:$0xff]
                %276 = vst [vmem:[%s252 + $0x58] sm:$0xff] %v275
                %v277 = vld [vmem:[%s251 + $0xc0] sm:$0xff]
                %278 = vst [vmem:[%s252 + $0x60] sm:$0xff] %v277
                %v279 = vld [vmem:[%s251 + $0xd0] sm:$0xff]
                %280 = vst [vmem:[%s252 + $0x68] sm:$0xff] %v279
                %v281 = vld [vmem:[%s251 + $0xe0] sm:$0xff]
                %282 = vst [vmem:[%s252 + $0x70] sm:$0xff] %v281
                %v283 = vld [vmem:[%s251 + $0xf0] sm:$0xff]
                %284 = vst [vmem:[%s252 + $0x78] sm:$0xff] %v283
              $region75: #{_lambda_.13} parent=69 // loop_footer
                %s250 = sadd.s32 1, %s246
              $region76: #{_lambda_.13} parent=69 // loop_footer_branch
                %245 = sbr.rel target = $region72
              $region77: #{_lambda_.13} parent=69 // loop_exit
                _
            $region70: #{_lambda_.13} parent=61 // pred_fallthru
              _
          $region62: #{_lambda_.13} parent=57 // pred_fallthru
            _
          %329 = vnop
        $region58: #{_lambda_.13} parent=15 // pred_fallthru
          _
      $region16: #{_lambda_.13} parent=5 // pred_fallthru
        _
      %p330 = scmp.le.s32.totalorder 1, %s11
      %p331 = scmp.lt.s32.totalorder %s11, 5
      %p332 = pnand %p330, %p331
      %p333 = pneg %p332
      // Predicated region
      $region93: #{_lambda_.13} parent=5 // pred_check
        _
      $region94: #{_lambda_.13} parent=5 // pred_check_branch
        %335 = sbr.rel (%p332) target = $region96
      $region95: #{_lambda_.13} parent=5 // pred_region
        %s336 = ssub.s32 %s11, 1
        %s337 = sand.u32 %s36, 1
        %s338 = sand.u32 %s36, 1
        %s339 = smul.addr %s338, 128
        %s340 = scalar_lea.vmem [#allocation2], %s339
        // Predicated region
        $region97: #{_lambda_.13} parent=95 // pred_check
          %p341 = pneg %p49
        $region98: #{_lambda_.13} parent=95 // pred_check_branch
          %343 = sbr.rel (%p341) target = $region100
        $region99: #{_lambda_.13} parent=95 // pred_region
          _
        $region100: #{_lambda_.13} parent=95 // pred_fallthru
          _
        %s344 = sand.u32 %s62, 1
        %s345 = sand.u32 %s62, 1
        %s346 = smul.addr %s345, 128
        %s347 = scalar_lea.vmem [#allocation3], %s346
        // Predicated region
        $region101: #{_lambda_.13} parent=95 // pred_check
          %p348 = pneg %p75
        $region102: #{_lambda_.13} parent=95 // pred_check_branch
          %350 = sbr.rel (%p348) target = $region104
        $region103: #{_lambda_.13} parent=95 // pred_region
          _
        $region104: #{_lambda_.13} parent=95 // pred_fallthru
          _
        %s351 = sand.u32 %s36, 1
        %s352 = sand.u32 %s36, 1
        %s353 = smul.addr %s352, 128
        %s354 = scalar_lea.vmem [#allocation2], %s353
        %p355 = pneg %p49
        %p356 = pneg %p46
        %s357 = sand.u32 %s62, 1
        %s358 = sand.u32 %s62, 1
        %s359 = smul.addr %s358, 128
        %s360 = scalar_lea.vmem [#allocation3], %s359
        %p361 = pneg %p75
        %p362 = pneg %p72
        %p363 = pneg %p103
        %p364 = pneg %p100
        %s365 = sand.u32 %s90, 1
        %s366 = scalar_lea.sflag [#allocation5], %s365
        %s367 = sand.u32 %s90, 1
        %s368 = smul.addr %s367, 128
        %s369 = scalar_lea.vmem [#allocation4], %s368
        %s370 = smul.u32 16, %s20
        %s371 = smul.u32 16, %s21
        %s372 = smul.u32 16, %s20
        %v373 = vld [vmem:[%s340] sm:$0xff]
        %v374 = vld [vmem:[%s340 + $0x8] sm:$0xff]
        %v375 = vld [vmem:[%s340 + $0x10] sm:$0xff]
        %v376 = vld [vmem:[%s340 + $0x18] sm:$0xff]
        %v377 = vld [vmem:[%s340 + $0x20] sm:$0xff]
        %v378 = vld [vmem:[%s340 + $0x28] sm:$0xff]
        %v379 = vld [vmem:[%s340 + $0x30] sm:$0xff]
        %v380 = vld [vmem:[%s340 + $0x38] sm:$0xff]
        %v381 = vld [vmem:[%s340 + $0x40] sm:$0xff]
        %v382 = vld [vmem:[%s340 + $0x48] sm:$0xff]
        %v383 = vld [vmem:[%s340 + $0x50] sm:$0xff]
        %v384 = vld [vmem:[%s340 + $0x58] sm:$0xff]
        %v385 = vld [vmem:[%s340 + $0x60] sm:$0xff]
        %v386 = vld [vmem:[%s340 + $0x68] sm:$0xff]
        %v387 = vld [vmem:[%s340 + $0x70] sm:$0xff]
        %v388 = vld [vmem:[%s340 + $0x78] sm:$0xff]
        %v389 = vld [vmem:[%s347] sm:$0xff]
        %v390 = vld [vmem:[%s347 + $0x8] sm:$0xff]
        %v391 = vld [vmem:[%s347 + $0x10] sm:$0xff]
        %v392 = vld [vmem:[%s347 + $0x18] sm:$0xff]
        %v393 = vld [vmem:[%s347 + $0x20] sm:$0xff]
        %v394 = vld [vmem:[%s347 + $0x28] sm:$0xff]
        %v395 = vld [vmem:[%s347 + $0x30] sm:$0xff]
        %v396 = vld [vmem:[%s347 + $0x38] sm:$0xff]
        %v397 = vld [vmem:[%s347 + $0x40] sm:$0xff]
        %v398 = vld [vmem:[%s347 + $0x48] sm:$0xff]
        %v399 = vld [vmem:[%s347 + $0x50] sm:$0xff]
        %v400 = vld [vmem:[%s347 + $0x58] sm:$0xff]
        %v401 = vld [vmem:[%s347 + $0x60] sm:$0xff]
        %v402 = vld [vmem:[%s347 + $0x68] sm:$0xff]
        %v403 = vld [vmem:[%s347 + $0x70] sm:$0xff]
        %v404 = vld [vmem:[%s347 + $0x78] sm:$0xff]
        %405 = vmatprep.subr.mxu0 0.0
        %406 = vmatpush1.xpose.msra.mxu0 %v389
        %407 = vmatprep.subr.mxu0 0.0
        %408 = vmatpush1.xpose.msra.mxu0 %v390
        %409 = vmatprep.subr.mxu0 0.0
        %410 = vmatpush1.xpose.msra.mxu0 %v391
        %411 = vmatprep.subr.mxu0 0.0
        %412 = vmatpush1.xpose.msra.mxu0 %v392
        %413 = vmatprep.subr.mxu0 0.0
        %414 = vmatpush1.xpose.msra.mxu0 %v393
        %415 = vmatprep.subr.mxu0 0.0
        %416 = vmatpush1.xpose.msra.mxu0 %v394
        %417 = vmatprep.subr.mxu0 0.0
        %418 = vmatpush1.xpose.msra.mxu0 %v395
        %419 = vmatprep.subr.mxu0 0.0
        %420 = vmatpush1.xpose.msra.mxu0 %v396
        %421 = vmatprep.subr.mxu0 0.0
        %422 = vmatpush1.xpose.msra.mxu0 %v397
        %423 = vmatprep.subr.mxu0 0.0
        %424 = vmatpush1.xpose.msra.mxu0 %v398
        %425 = vmatprep.subr.mxu0 0.0
        %426 = vmatpush1.xpose.msra.mxu0 %v399
        %427 = vmatprep.subr.mxu0 0.0
        %428 = vmatpush1.xpose.msra.mxu0 %v400
        %429 = vmatprep.subr.mxu0 0.0
        %430 = vmatpush1.xpose.msra.mxu0 %v401
        %431 = vmatprep.subr.mxu0 0.0
        %432 = vmatpush1.xpose.msra.mxu0 %v402
        %433 = vmatprep.subr.mxu0 0.0
        %434 = vmatpush1.xpose.msra.mxu0 %v403
        %435 = vmatprep.subr.mxu0 0.0
        %436 = vmatpush1.xpose.msra.mxu0 %v404
        %437 = vmatprep.subr.mxu0 0.0
        %438 = vmatpush1.xpose.msra.mxu0 0.0
        %439 = vmatprep.subr.mxu0 0.0
        %440 = vmatpush1.xpose.msra.mxu0 0.0
        %441 = vmatprep.subr.mxu0 0.0
        %442 = vmatpush1.xpose.msra.mxu0 0.0
        %443 = vmatprep.subr.mxu0 0.0
        %444 = vmatpush1.xpose.msra.mxu0 0.0
        %445 = vmatprep.subr.mxu0 0.0
        %446 = vmatpush1.xpose.msra.mxu0 0.0
        %447 = vmatprep.subr.mxu0 0.0
        %448 = vmatpush1.xpose.msra.mxu0 0.0
        %449 = vmatprep.subr.mxu0 0.0
        %450 = vmatpush1.xpose.msra.mxu0 0.0
        %451 = vmatprep.subr.mxu0 0.0
        %452 = vmatpush1.xpose.msra.mxu0 0.0
        %453 = vmatprep.subr.mxu0 0.0
        %454 = vmatpush1.xpose.msra.mxu0 0.0
        %455 = vmatprep.subr.mxu0 0.0
        %456 = vmatpush1.xpose.msra.mxu0 0.0
        %457 = vmatprep.subr.mxu0 0.0
        %458 = vmatpush1.xpose.msra.mxu0 0.0
        %459 = vmatprep.subr.mxu0 0.0
        %460 = vmatpush1.xpose.msra.mxu0 0.0
        %461 = vmatprep.subr.mxu0 0.0
        %462 = vmatpush1.xpose.msra.mxu0 0.0
        %463 = vmatprep.subr.mxu0 0.0
        %464 = vmatpush1.xpose.msra.mxu0 0.0
        %465 = vmatprep.subr.mxu0 0.0
        %466 = vmatpush1.xpose.msra.mxu0 0.0
        %467 = vmatprep.subr.mxu0 0.0
        %468 = vmatpush1.xpose.msra.mxu0 0.0
        %469 = vmatprep.mubr.f32.mxu0 0.0
        %470 = vmatmul.mubr.f32.gmra.mrb[0].mxu0 %v373
        %v471 = vpop.f32.mrb[0].mxu0
        %v472 = vadd.f32 0.0, %v471
        %v473 = vpop.f32.mrb[0].mxu0
        %474 = vmatprep.mubr.f32.mxu0 0.0
        %475 = vmatmul.mubr.f32.gmra.mrb[0].mxu0 %v374
        %v476 = vpop.f32.mrb[0].mxu0
        %v477 = vadd.f32 0.0, %v476
        %v478 = vpop.f32.mrb[0].mxu0
        %479 = vmatprep.mubr.f32.mxu0 0.0
        %480 = vmatmul.mubr.f32.gmra.mrb[0].mxu0 %v375
        %v481 = vpop.f32.mrb[0].mxu0
        %v482 = vadd.f32 0.0, %v481
        %v483 = vpop.f32.mrb[0].mxu0
        %484 = vmatprep.mubr.f32.mxu0 0.0
        %485 = vmatmul.mubr.f32.gmra.mrb[0].mxu0 %v376
        %v486 = vpop.f32.mrb[0].mxu0
        %v487 = vadd.f32 0.0, %v486
        %v488 = vpop.f32.mrb[0].mxu0
        %489 = vmatprep.mubr.f32.mxu0 0.0
        %490 = vmatmul.mubr.f32.gmra.mrb[0].mxu0 %v377
        %v491 = vpop.f32.mrb[0].mxu0
        %v492 = vadd.f32 0.0, %v491
        %v493 = vpop.f32.mrb[0].mxu0
        %494 = vmatprep.mubr.f32.mxu0 0.0
        %495 = vmatmul.mubr.f32.gmra.mrb[0].mxu0 %v378
        %v496 = vpop.f32.mrb[0].mxu0
        %v497 = vadd.f32 0.0, %v496
        %v498 = vpop.f32.mrb[0].mxu0
        %499 = vmatprep.mubr.f32.mxu0 0.0
        %500 = vmatmul.mubr.f32.gmra.mrb[0].mxu0 %v379
        %v501 = vpop.f32.mrb[0].mxu0
        %v502 = vadd.f32 0.0, %v501
        %v503 = vpop.f32.mrb[0].mxu0
        %504 = vmatprep.mubr.f32.mxu0 0.0
        %505 = vmatmul.mubr.f32.gmra.mrb[0].mxu0 %v380
        %v506 = vpop.f32.mrb[0].mxu0
        %v507 = vadd.f32 0.0, %v506
        %v508 = vpop.f32.mrb[0].mxu0
        %509 = vmatprep.mubr.f32.mxu0 0.0
        %510 = vmatmul.mubr.f32.gmra.mrb[0].mxu0 %v381
        %v511 = vpop.f32.mrb[0].mxu0
        %v512 = vadd.f32 0.0, %v511
        %v513 = vpop.f32.mrb[0].mxu0
        %514 = vmatprep.mubr.f32.mxu0 0.0
        %515 = vmatmul.mubr.f32.gmra.mrb[0].mxu0 %v382
        %v516 = vpop.f32.mrb[0].mxu0
        %v517 = vadd.f32 0.0, %v516
        %v518 = vpop.f32.mrb[0].mxu0
        %519 = vmatprep.mubr.f32.mxu0 0.0
        %520 = vmatmul.mubr.f32.gmra.mrb[0].mxu0 %v383
        %v521 = vpop.f32.mrb[0].mxu0
        %v522 = vadd.f32 0.0, %v521
        %v523 = vpop.f32.mrb[0].mxu0
        %524 = vmatprep.mubr.f32.mxu0 0.0
        %525 = vmatmul.mubr.f32.gmra.mrb[0].mxu0 %v384
        %v526 = vpop.f32.mrb[0].mxu0
        %v527 = vadd.f32 0.0, %v526
        %v528 = vpop.f32.mrb[0].mxu0
        %529 = vmatprep.mubr.f32.mxu0 0.0
        %530 = vmatmul.mubr.f32.gmra.mrb[0].mxu0 %v385
        %v531 = vpop.f32.mrb[0].mxu0
        %v532 = vadd.f32 0.0, %v531
        %v533 = vpop.f32.mrb[0].mxu0
        %534 = vmatprep.mubr.f32.mxu0 0.0
        %535 = vmatmul.mubr.f32.gmra.mrb[0].mxu0 %v386
        %v536 = vpop.f32.mrb[0].mxu0
        %v537 = vadd.f32 0.0, %v536
        %v538 = vpop.f32.mrb[0].mxu0
        %539 = vmatprep.mubr.f32.mxu0 0.0
        %540 = vmatmul.mubr.f32.gmra.mrb[0].mxu0 %v387
        %v541 = vpop.f32.mrb[0].mxu0
        %v542 = vadd.f32 0.0, %v541
        %v543 = vpop.f32.mrb[0].mxu0
        %544 = vmatprep.mubr.f32.mxu0 0.0
        %545 = vmatmul.mubr.f32.gmra.mrb[0].mxu0 %v388
        %v546 = vpop.f32.mrb[0].mxu0
        %v547 = vadd.f32 0.0, %v546
        %v548 = vpop.f32.mrb[0].mxu0
        %549 = vdwg.mxu0
        %550 = vst [vmem:[%s369] sm:$0xff] %v472
        %551 = vst [vmem:[%s369 + $0x8] sm:$0xff] %v477
        %552 = vst [vmem:[%s369 + $0x10] sm:$0xff] %v482
        %553 = vst [vmem:[%s369 + $0x18] sm:$0xff] %v487
        %554 = vst [vmem:[%s369 + $0x20] sm:$0xff] %v492
        %555 = vst [vmem:[%s369 + $0x28] sm:$0xff] %v497
        %556 = vst [vmem:[%s369 + $0x30] sm:$0xff] %v502
        %557 = vst [vmem:[%s369 + $0x38] sm:$0xff] %v507
        %558 = vst [vmem:[%s369 + $0x40] sm:$0xff] %v512
        %559 = vst [vmem:[%s369 + $0x48] sm:$0xff] %v517
        %560 = vst [vmem:[%s369 + $0x50] sm:$0xff] %v522
        %561 = vst [vmem:[%s369 + $0x58] sm:$0xff] %v527
        %562 = vst [vmem:[%s369 + $0x60] sm:$0xff] %v532
        %563 = vst [vmem:[%s369 + $0x68] sm:$0xff] %v537
        %564 = vst [vmem:[%s369 + $0x70] sm:$0xff] %v542
        %565 = vst [vmem:[%s369 + $0x78] sm:$0xff] %v547
        %s566 = sand.u32 %s90, 1
        %s567 = scalar_lea.sflag [#allocation5], %s566
        %s568 = sand.u32 %s90, 1
        %s569 = smul.addr %s568, 128
        %s570 = scalar_lea.vmem [#allocation4], %s569
        // Predicated region
        $region105: #{_lambda_.13} parent=95 // pred_check
          %p571 = pneg %p100
        $region106: #{_lambda_.13} parent=95 // pred_check_branch
          %573 = sbr.rel (%p571) target = $region108
        $region107: #{_lambda_.13} parent=95 // pred_region
          %s574 = smul.u32 16, %s20
          %s576 = ssub.s32 2048, 2048
          %577 = vsyncadd %s567, %s576
          %s578 = smul.addr %s574, 2
          %s579 = sadd.s32 %s21, %s578
          %s580 = smul.addr %s579, 128
          %s581 = scalar_lea.hbm %s2, %s580
          %s582 = sshll.u32 %s570, 4
          %s583 = int_to_ptr.vmem [resolvable:$true] %s582
          %588 = dma.vmem_to_hbm [thread:$0]  %s583, 2048, %s581, %s567, 128, 256, 8
        $region108: #{_lambda_.13} parent=95 // pred_fallthru
          _
      $region96: #{_lambda_.13} parent=5 // pred_fallthru
        _
      %p589 = scmp.le.s32.totalorder 2, %s11
      // Predicated region
      $region109: #{_lambda_.13} parent=5 // pred_check
        %p590 = pneg %p589
      $region110: #{_lambda_.13} parent=5 // pred_check_branch
        %592 = sbr.rel (%p590) target = $region112
      $region111: #{_lambda_.13} parent=5 // pred_region
        %s593 = ssub.s32 %s11, 2
        // Predicated region
        $region113: #{_lambda_.13} parent=111 // pred_check
          %p594 = pneg %p106
        $region114: #{_lambda_.13} parent=111 // pred_check_branch
          %596 = sbr.rel (%p594) target = $region116
        $region115: #{_lambda_.13} parent=111 // pred_region
          %s597 = sand.u32 %s91, 1
          %s598 = scalar_lea.sflag [#allocation5], %s597
          %s599 = sand.u32 %s91, 1
          %s600 = smul.addr %s599, 128
          %s601 = scalar_lea.vmem [#allocation4], %s600
          %602 = dma.done %s598, 2048
        $region116: #{_lambda_.13} parent=111 // pred_fallthru
          _
      $region112: #{_lambda_.13} parent=5 // pred_fallthru
        _
    $region6: #{_lambda_.13} parent=1 // loop_footer
      %s15 = sadd.s32 1, %s11
    $region7: #{_lambda_.13} parent=1 // loop_footer_branch
      %10 = sbr.rel target = $region3
    $region8: #{_lambda_.13} parent=1 // loop_exit
      _
    %603 = vsyncpa [#allocation5], 1
    %s604 = scalar_lea.sflag [#allocation5], 1
    %605 = vsyncpa %s604, 1

// kernel: _lambda_.12
$region0: #{_lambda_.12}
  #allocation0 [shape = 'u32[]', space=smem, size = 0x4, offset = 0x4, fixed_abs, tag = 'smem constant byte address 0x4 - core index']
  #allocation1 [shape = 'u32[144,128]{1,0:T(1,128)}', space=vmem, size = 0x12000, scoped, tag = 'internal scratch']
  #allocation2 [shape = 'f32[128,128]{1,0:T(8,128)}', space=vmem, size = 0x10000, scoped, tag = 'scratch operand']
  %s0 = inlined_call_operand.vmem [shape: f32[256,256], index: 0, kind: input, shape index: {}]
  %s1 = inlined_call_operand.vmem [shape: f32[256,128], index: 1, kind: input, shape index: {}]
  %s2 = inlined_call_operand.vmem [shape: f32[1,128], index: 2, kind: input, shape index: {}]
  %s3 = inlined_call_operand.vmem [shape: f32[256,128], index: 3, kind: output, shape index: {}]
  %s4 = sld [smem:[#allocation0]]
  $region91: #{_lambda_.12} parent=0
    _
  %s6 = ssub.s32 1, %s4
  %s7 = scalar_select 0, %s6, %s4
  $region1: #{_lambda_.12} parent=0
    #allocation3 [shape = 'u8[131072]{0}', space=vmem, size = 0x20000, scoped, tag = 'input window, operand 0']
    loop: start=0, step=1, limit=6
    $region2: #{_lambda_.12} parent=1 // loop_pre_header
      _
    $region3: #{_lambda_.12} parent=1 // loop_header
      %s9 = sphi 0, %s13
      %p10 = scmp.ge.s32.totalorder %s9, 6
      %s16 = sphi 0, %s28
      %s17 = sphi 0, %s24
      %s18 = sphi 0, %s16
      %s19 = sphi 0, %s17
      %s20 = sphi 0, %s18
      %s21 = sphi 0, %s19
      %s33 = sphi 0, %s35
      %s36 = sphi 0, %s33
      %s37 = sphi 0, %s36
      %s53 = sphi 0, %s37
      %s59 = sphi 0, %s61
      %s62 = sphi 0, %s59
      %s63 = sphi 0, %s62
      %s79 = sphi 0, %s63
      %s83 = sphi 0, %s83
      %s85 = sphi 0, %s83
      %s86 = sphi 0, %s85
      %s100 = sphi 0, %s86
      %s106 = sphi 0, %s108
      %s109 = sphi 0, %s106
      %s110 = sphi 0, %s109
      %s126 = sphi 0, %s110
    $region4: #{_lambda_.12} parent=1 // loop_header_branch
      %12 = sbr.rel (%p10) target = $region8
    $region5: #{_lambda_.12} parent=1 // loop_body
      %s14 = ssub.s32 %s9, 1
      %s15 = ssub.s32 %s9, 2
      %s22 = sadd.s32 1, %s17
      %p23 = scmp.ge.s32.totalorder %s22, 2
      %s24 = scalar_select %p23, 0, %s22
      %s25 = sadd.s32 1, %s16
      %s26 = scalar_select %p23, %s25, %s16
      %p27 = scmp.ge.s32.totalorder %s26, 2
      %s28 = scalar_select %p27, 0, %s26
      %s29 = ssub.s32 %s16, %s28
      %s30 = ssub.s32 %s17, %s24
      %s31 = sor.u32 %s29, %s30
      %p32 = scmp.eq.s32.totalorder %s31, 0
      %s34 = sadd.s32 %s33, 1
      %s35 = scalar_select %p32, %s33, %s34
      %p38 = pneg %p32
      %p39 = scmp.eq.s32.totalorder %s9, 3
      %p40 = por %p38, %p39
      %p41 = scmp.ne.s32.totalorder %s33, %s36
      %p42 = scmp.eq.s32.totalorder %s9, 0
      %p43 = por %p41, %p42
      %p44 = scmp.ne.s32.totalorder %s33, %s36
      %p45 = scmp.eq.s32.totalorder %s14, 3
      %p46 = por %p44, %p45
      %p47 = scmp.ne.s32.totalorder %s36, %s37
      %p48 = scmp.eq.s32.totalorder %s14, 0
      %p49 = por %p47, %p48
      %p50 = scmp.ne.s32.totalorder %s36, %s37
      %p51 = scmp.eq.s32.totalorder %s15, 3
      %p52 = por %p50, %p51
      %p54 = scmp.ne.s32.totalorder %s37, %s53
      %p55 = scmp.eq.s32.totalorder %s15, 0
      %p56 = por %p54, %p55
      %s57 = ssub.s32 %s17, %s24
      %p58 = scmp.eq.s32.totalorder %s57, 0
      %s60 = sadd.s32 %s59, 1
      %s61 = scalar_select %p58, %s59, %s60
      %p64 = pneg %p58
      %p65 = scmp.eq.s32.totalorder %s9, 3
      %p66 = por %p64, %p65
      %p67 = scmp.ne.s32.totalorder %s59, %s62
      %p68 = scmp.eq.s32.totalorder %s9, 0
      %p69 = por %p67, %p68
      %p70 = scmp.ne.s32.totalorder %s59, %s62
      %p71 = scmp.eq.s32.totalorder %s14, 3
      %p72 = por %p70, %p71
      %p73 = scmp.ne.s32.totalorder %s62, %s63
      %p74 = scmp.eq.s32.totalorder %s14, 0
      %p75 = por %p73, %p74
      %p76 = scmp.ne.s32.totalorder %s62, %s63
      %p77 = scmp.eq.s32.totalorder %s15, 3
      %p78 = por %p76, %p77
      %p80 = scmp.ne.s32.totalorder %s63, %s79
      %p81 = scmp.eq.s32.totalorder %s15, 0
      %p82 = por %p80, %p81
      %s84 = sadd.s32 %s83, 1
      %p87 = scmp.eq.s32.totalorder %s9, 3
      %p88 = scmp.ne.s32.totalorder %s83, %s85
      %p89 = scmp.eq.s32.totalorder %s9, 0
      %p90 = por %p88, %p89
      %p91 = scmp.ne.s32.totalorder %s83, %s85
      %p92 = scmp.eq.s32.totalorder %s14, 3
      %p93 = por %p91, %p92
      %p94 = scmp.ne.s32.totalorder %s85, %s86
      %p95 = scmp.eq.s32.totalorder %s14, 0
      %p96 = por %p94, %p95
      %p97 = scmp.ne.s32.totalorder %s85, %s86
      %p98 = scmp.eq.s32.totalorder %s15, 3
      %p99 = por %p97, %p98
      %p101 = scmp.ne.s32.totalorder %s86, %s100
      %p102 = scmp.eq.s32.totalorder %s15, 0
      %p103 = por %p101, %p102
      %s104 = ssub.s32 %s16, %s28
      %p105 = scmp.eq.s32.totalorder %s104, 0
      %s107 = sadd.s32 %s106, 1
      %s108 = scalar_select %p105, %s106, %s107
      %p111 = pneg %p105
      %p112 = scmp.eq.s32.totalorder %s9, 3
      %p113 = por %p111, %p112
      %p114 = scmp.ne.s32.totalorder %s106, %s109
      %p115 = scmp.eq.s32.totalorder %s9, 0
      %p116 = por %p114, %p115
      %p117 = scmp.ne.s32.totalorder %s106, %s109
      %p118 = scmp.eq.s32.totalorder %s14, 3
      %p119 = por %p117, %p118
      %p120 = scmp.ne.s32.totalorder %s109, %s110
      %p121 = scmp.eq.s32.totalorder %s14, 0
      %p122 = por %p120, %p121
      %p123 = scmp.ne.s32.totalorder %s109, %s110
      %p124 = scmp.eq.s32.totalorder %s15, 3
      %p125 = por %p123, %p124
      %p127 = scmp.ne.s32.totalorder %s110, %s126
      %p128 = scmp.eq.s32.totalorder %s15, 0
      %p129 = por %p127, %p128
      %p130 = scmp.le.s32.totalorder 1, %s9
      %p131 = scmp.lt.s32.totalorder %s9, 5
      %p132 = pnand %p130, %p131
      %p133 = pneg %p132
      // Predicated region
      $region9: #{_lambda_.12} parent=5 // pred_check
        _
      $region10: #{_lambda_.12} parent=5 // pred_check_branch
        %135 = sbr.rel (%p132) target = $region12
      $region11: #{_lambda_.12} parent=5 // pred_region
        %s136 = ssub.s32 %s9, 1
        // Predicated region
        $region13: #{_lambda_.12} parent=11 // pred_check
          %p137 = pneg %p96
        $region14: #{_lambda_.12} parent=11 // pred_check_branch
          %139 = sbr.rel (%p137) target = $region16
        $region15: #{_lambda_.12} parent=11 // pred_region
          _
        $region16: #{_lambda_.12} parent=11 // pred_fallthru
          _
      $region12: #{_lambda_.12} parent=5 // pred_fallthru
        _
      %p140 = scmp.lt.s32.totalorder %s9, 4
      // Predicated region
      $region17: #{_lambda_.12} parent=5 // pred_check
        %p141 = pneg %p140
      $region18: #{_lambda_.12} parent=5 // pred_check_branch
        %143 = sbr.rel (%p141) target = $region20
      $region19: #{_lambda_.12} parent=5 // pred_region
        // Predicated region
        $region21: #{_lambda_.12} parent=19 // pred_check
          %p144 = pneg %p43
        $region22: #{_lambda_.12} parent=19 // pred_check_branch
          %146 = sbr.rel (%p144) target = $region24
        $region23: #{_lambda_.12} parent=19 // pred_region
          %s147 = sand.u32 %s33, 1
          %s148 = sand.u32 %s33, 1
          %s149 = smul.addr %s148, 128
          %s150 = scalar_lea.vmem [#allocation3], %s149
          %s151 = smul.u32 16, %s16
          %s152 = smul.addr %s151, 2
          %s153 = sadd.s32 %s17, %s152
          %s154 = smul.addr %s153, 8
          %s155 = scalar_lea.vmem %s0, %s154
          // Predicated region
          $region25: #{_lambda_.12} parent=23 // pred_check
            _
          $region26: #{_lambda_.12} parent=23 // pred_check_branch
            %157 = sbr.rel (0) target = $region28
          $region27: #{_lambda_.12} parent=23 // pred_region
            // Predicated region
            $region29: #{_lambda_.12} parent=27 // pred_check
              _
            $region30: #{_lambda_.12} parent=27 // pred_check_branch
              %159 = sbr.rel (0) target = $region32
            $region31: #{_lambda_.12} parent=27 // pred_region
              // Predicated region
              $region44: #{_lambda_.12} parent=31 // pred_check
                _
              $region45: #{_lambda_.12} parent=31 // pred_check_branch
                %204 = sbr.rel (0) target = $region47
              $region46: #{_lambda_.12} parent=31 // pred_region
                loop: start=0, step=1, limit=1
                $region48: #{_lambda_.12} parent=46 // loop_pre_header
                  _
                $region49: #{_lambda_.12} parent=46 // loop_header
                  %s206 = sphi 0, %s210
                  %p207 = scmp.ge.s32.totalorder %s206, 1
                  %s211 = sphi %s155, %s155
                  %s212 = sphi %s150, %s150
                $region50: #{_lambda_.12} parent=46 // loop_header_branch
                  %209 = sbr.rel (%p207) target = $region54
                $region51: #{_lambda_.12} parent=46 // loop_body
                  %v213 = vld [vmem:[%s211] sm:$0xff]
                  %214 = vst [vmem:[%s212] sm:$0xff] %v213
                  %v215 = vld [vmem:[%s211 + $0x10] sm:$0xff]
                  %216 = vst [vmem:[%s212 + $0x8] sm:$0xff] %v215
                  %v217 = vld [vmem:[%s211 + $0x20] sm:$0xff]
                  %218 = vst [vmem:[%s212 + $0x10] sm:$0xff] %v217
                  %v219 = vld [vmem:[%s211 + $0x30] sm:$0xff]
                  %220 = vst [vmem:[%s212 + $0x18] sm:$0xff] %v219
                  %v221 = vld [vmem:[%s211 + $0x40] sm:$0xff]
                  %222 = vst [vmem:[%s212 + $0x20] sm:$0xff] %v221
                  %v223 = vld [vmem:[%s211 + $0x50] sm:$0xff]
                  %224 = vst [vmem:[%s212 + $0x28] sm:$0xff] %v223
                  %v225 = vld [vmem:[%s211 + $0x60] sm:$0xff]
                  %226 = vst [vmem:[%s212 + $0x30] sm:$0xff] %v225
                  %v227 = vld [vmem:[%s211 + $0x70] sm:$0xff]
                  %228 = vst [vmem:[%s212 + $0x38] sm:$0xff] %v227
                  %v229 = vld [vmem:[%s211 + $0x80] sm:$0xff]
                  %230 = vst [vmem:[%s212 + $0x40] sm:$0xff] %v229
                  %v231 = vld [vmem:[%s211 + $0x90] sm:$0xff]
                  %232 = vst [vmem:[%s212 + $0x48] sm:$0xff] %v231
                  %v233 = vld [vmem:[%s211 + $0xa0] sm:$0xff]
                  %234 = vst [vmem:[%s212 + $0x50] sm:$0xff] %v233
                  %v235 = vld [vmem:[%s211 + $0xb0] sm:$0xff]
                  %236 = vst [vmem:[%s212 + $0x58] sm:$0xff] %v235
                  %v237 = vld [vmem:[%s211 + $0xc0] sm:$0xff]
                  %238 = vst [vmem:[%s212 + $0x60] sm:$0xff] %v237
                  %v239 = vld [vmem:[%s211 + $0xd0] sm:$0xff]
                  %240 = vst [vmem:[%s212 + $0x68] sm:$0xff] %v239
                  %v241 = vld [vmem:[%s211 + $0xe0] sm:$0xff]
                  %242 = vst [vmem:[%s212 + $0x70] sm:$0xff] %v241
                  %v243 = vld [vmem:[%s211 + $0xf0] sm:$0xff]
                  %244 = vst [vmem:[%s212 + $0x78] sm:$0xff] %v243
                $region52: #{_lambda_.12} parent=46 // loop_footer
                  %s210 = sadd.s32 1, %s206
                $region53: #{_lambda_.12} parent=46 // loop_footer_branch
                  %205 = sbr.rel target = $region49
                $region54: #{_lambda_.12} parent=46 // loop_exit
                  _
              $region47: #{_lambda_.12} parent=31 // pred_fallthru
                _
              // Predicated region
              $region55: #{_lambda_.12} parent=31 // pred_check
                _
              $region56: #{_lambda_.12} parent=31 // pred_check_branch
                %246 = sbr.rel target = $region58
              $region57: #{_lambda_.12} parent=31 // pred_region
                _
              $region58: #{_lambda_.12} parent=31 // pred_fallthru
                _
            $region32: #{_lambda_.12} parent=27 // pred_fallthru
              _
            // Predicated region
            $region33: #{_lambda_.12} parent=27 // pred_check
              _
            $region34: #{_lambda_.12} parent=27 // pred_check_branch
              %161 = sbr.rel target = $region36
            $region35: #{_lambda_.12} parent=27 // pred_region
              loop: start=0, step=1, limit=1
              $region37: #{_lambda_.12} parent=35 // loop_pre_header
                _
              $region38: #{_lambda_.12} parent=35 // loop_header
                %s164 = sphi 0, %s168
                %p165 = scmp.ge.s32.totalorder %s164, 1
                %s169 = sphi %s155, %s155
                %s170 = sphi %s150, %s150
              $region39: #{_lambda_.12} parent=35 // loop_header_branch
                %167 = sbr.rel (%p165) target = $region43
              $region40: #{_lambda_.12} parent=35 // loop_body
                %v171 = vld [vmem:[%s169] sm:$0xff]
                %172 = vst [vmem:[%s170] sm:$0xff] %v171
                %v173 = vld [vmem:[%s169 + $0x10] sm:$0xff]
                %174 = vst [vmem:[%s170 + $0x8] sm:$0xff] %v173
                %v175 = vld [vmem:[%s169 + $0x20] sm:$0xff]
                %176 = vst [vmem:[%s170 + $0x10] sm:$0xff] %v175
                %v177 = vld [vmem:[%s169 + $0x30] sm:$0xff]
                %178 = vst [vmem:[%s170 + $0x18] sm:$0xff] %v177
                %v179 = vld [vmem:[%s169 + $0x40] sm:$0xff]
                %180 = vst [vmem:[%s170 + $0x20] sm:$0xff] %v179
                %v181 = vld [vmem:[%s169 + $0x50] sm:$0xff]
                %182 = vst [vmem:[%s170 + $0x28] sm:$0xff] %v181
                %v183 = vld [vmem:[%s169 + $0x60] sm:$0xff]
                %184 = vst [vmem:[%s170 + $0x30] sm:$0xff] %v183
                %v185 = vld [vmem:[%s169 + $0x70] sm:$0xff]
                %186 = vst [vmem:[%s170 + $0x38] sm:$0xff] %v185
                %v187 = vld [vmem:[%s169 + $0x80] sm:$0xff]
                %188 = vst [vmem:[%s170 + $0x40] sm:$0xff] %v187
                %v189 = vld [vmem:[%s169 + $0x90] sm:$0xff]
                %190 = vst [vmem:[%s170 + $0x48] sm:$0xff] %v189
                %v191 = vld [vmem:[%s169 + $0xa0] sm:$0xff]
                %192 = vst [vmem:[%s170 + $0x50] sm:$0xff] %v191
                %v193 = vld [vmem:[%s169 + $0xb0] sm:$0xff]
                %194 = vst [vmem:[%s170 + $0x58] sm:$0xff] %v193
                %v195 = vld [vmem:[%s169 + $0xc0] sm:$0xff]
                %196 = vst [vmem:[%s170 + $0x60] sm:$0xff] %v195
                %v197 = vld [vmem:[%s169 + $0xd0] sm:$0xff]
                %198 = vst [vmem:[%s170 + $0x68] sm:$0xff] %v197
                %v199 = vld [vmem:[%s169 + $0xe0] sm:$0xff]
                %200 = vst [vmem:[%s170 + $0x70] sm:$0xff] %v199
                %v201 = vld [vmem:[%s169 + $0xf0] sm:$0xff]
                %202 = vst [vmem:[%s170 + $0x78] sm:$0xff] %v201
              $region41: #{_lambda_.12} parent=35 // loop_footer
                %s168 = sadd.s32 1, %s164
              $region42: #{_lambda_.12} parent=35 // loop_footer_branch
                %163 = sbr.rel target = $region38
              $region43: #{_lambda_.12} parent=35 // loop_exit
                _
            $region36: #{_lambda_.12} parent=27 // pred_fallthru
              _
          $region28: #{_lambda_.12} parent=23 // pred_fallthru
            _
          %247 = vnop
        $region24: #{_lambda_.12} parent=19 // pred_fallthru
          _
        // Predicated region
        $region59: #{_lambda_.12} parent=19 // pred_check
          %p248 = pneg %p69
        $region60: #{_lambda_.12} parent=19 // pred_check_branch
          %250 = sbr.rel (%p248) target = $region62
        $region61: #{_lambda_.12} parent=19 // pred_region
          %s251 = smul.u32 16, %s17
          %p252 = scmp.lt.s32.totalorder %s251, 31
          %s253 = scalar_select %p252, %s251, 31
          %s254 = smul.addr %s253, 8
          %s255 = scalar_lea.vmem %s1, %s254
          %s256 = smul.u32 16, %s17
        $region62: #{_lambda_.12} parent=19 // pred_fallthru
          _
      $region20: #{_lambda_.12} parent=5 // pred_fallthru
        _
      %p257 = scmp.le.s32.totalorder 1, %s9
      %p258 = scmp.lt.s32.totalorder %s9, 5
      %p259 = pnand %p257, %p258
      %p260 = pneg %p259
      // Predicated region
      $region63: #{_lambda_.12} parent=5 // pred_check
        _
      $region64: #{_lambda_.12} parent=5 // pred_check_branch
        %262 = sbr.rel (%p259) target = $region66
      $region65: #{_lambda_.12} parent=5 // pred_region
        %s263 = ssub.s32 %s9, 1
        %s264 = sand.u32 %s36, 1
        %s265 = sand.u32 %s36, 1
        %s266 = smul.addr %s265, 128
        %s267 = scalar_lea.vmem [#allocation3], %s266
        // Predicated region
        $region67: #{_lambda_.12} parent=65 // pred_check
          %p268 = pneg %p49
        $region68: #{_lambda_.12} parent=65 // pred_check_branch
          %270 = sbr.rel (%p268) target = $region70
        $region69: #{_lambda_.12} parent=65 // pred_region
          _
        $region70: #{_lambda_.12} parent=65 // pred_fallthru
          _
        %s271 = sand.u32 %s36, 1
        %s272 = sand.u32 %s36, 1
        %s273 = smul.addr %s272, 128
        %s274 = scalar_lea.vmem [#allocation3], %s273
        %p275 = pneg %p49
        %p276 = pneg %p46
        %s277 = smul.u32 16, %s19
        %p278 = scmp.lt.s32.totalorder %s277, 31
        %s279 = scalar_select %p278, %s277, 31
        %s280 = smul.addr %s279, 8
        %s281 = scalar_lea.vmem %s1, %s280
        %p282 = pneg %p75
        %p283 = pneg %p72
        %p284 = pneg %p96
        %p285 = pneg %p93
        %p286 = pneg %p122
        %p287 = pneg %p119
        %s288 = smul.u32 16, %s18
        %p289 = scmp.lt.s32.totalorder %s288, 31
        %s290 = scalar_select %p289, %s288, 31
        %s291 = smul.addr %s290, 8
        %s292 = scalar_lea.vmem %s3, %s291
        %s293 = smul.u32 16, %s18
        %s294 = smul.u32 16, %s19
        %p295 = scmp.lt.s32.totalorder %s294, 31
        %s296 = scalar_select %p295, %s294, 31
        %s297 = smul.addr %s296, 8
        %s298 = scalar_lea.vmem %s1, %s297
        %s299 = smul.u32 16, %s19
        %s300 = smul.u32 16, %s18
        %p301 = scmp.lt.s32.totalorder %s300, 31
        %s302 = scalar_select %p301, %s300, 31
        %s303 = smul.addr %s302, 8
        %s304 = scalar_lea.vmem %s3, %s303
        %s305 = smul.u32 16, %s18
        %p306 = scmp.eq.s32.totalorder %s19, 0
        // Predicated region
        $region71: #{_lambda_.12} parent=65 // pred_check
          %p307 = pneg %p306
        $region72: #{_lambda_.12} parent=65 // pred_check_branch
          %309 = sbr.rel (%p307) target = $region74
        $region73: #{_lambda_.12} parent=65 // pred_region
          %310 = vst [vmem:[#allocation2] sm:$0xff] 0.0
          %311 = vst [vmem:[#allocation2 + $0x8] sm:$0xff] 0.0
          %312 = vst [vmem:[#allocation2 + $0x10] sm:$0xff] 0.0
          %313 = vst [vmem:[#allocation2 + $0x18] sm:$0xff] 0.0
          %314 = vst [vmem:[#allocation2 + $0x20] sm:$0xff] 0.0
          %315 = vst [vmem:[#allocation2 + $0x28] sm:$0xff] 0.0
          %316 = vst [vmem:[#allocation2 + $0x30] sm:$0xff] 0.0
          %317 = vst [vmem:[#allocation2 + $0x38] sm:$0xff] 0.0
          %318 = vst [vmem:[#allocation2 + $0x40] sm:$0xff] 0.0
          %319 = vst [vmem:[#allocation2 + $0x48] sm:$0xff] 0.0
          %320 = vst [vmem:[#allocation2 + $0x50] sm:$0xff] 0.0
          %321 = vst [vmem:[#allocation2 + $0x58] sm:$0xff] 0.0
          %322 = vst [vmem:[#allocation2 + $0x60] sm:$0xff] 0.0
          %323 = vst [vmem:[#allocation2 + $0x68] sm:$0xff] 0.0
          %324 = vst [vmem:[#allocation2 + $0x70] sm:$0xff] 0.0
          %325 = vst [vmem:[#allocation2 + $0x78] sm:$0xff] 0.0
        $region74: #{_lambda_.12} parent=65 // pred_fallthru
          _
        %v326 = vld [vmem:[#allocation2] sm:$0xff]
        %v327 = vld [vmem:[#allocation2 + $0x8] sm:$0xff]
        %v328 = vld [vmem:[#allocation2 + $0x10] sm:$0xff]
        %v329 = vld [vmem:[#allocation2 + $0x18] sm:$0xff]
        %v330 = vld [vmem:[#allocation2 + $0x20] sm:$0xff]
        %v331 = vld [vmem:[#allocation2 + $0x28] sm:$0xff]
        %v332 = vld [vmem:[#allocation2 + $0x30] sm:$0xff]
        %v333 = vld [vmem:[#allocation2 + $0x38] sm:$0xff]
        %v334 = vld [vmem:[#allocation2 + $0x40] sm:$0xff]
        %v335 = vld [vmem:[#allocation2 + $0x48] sm:$0xff]
        %v336 = vld [vmem:[#allocation2 + $0x50] sm:$0xff]
        %v337 = vld [vmem:[#allocation2 + $0x58] sm:$0xff]
        %v338 = vld [vmem:[#allocation2 + $0x60] sm:$0xff]
        %v339 = vld [vmem:[#allocation2 + $0x68] sm:$0xff]
        %v340 = vld [vmem:[#allocation2 + $0x70] sm:$0xff]
        %v341 = vld [vmem:[#allocation2 + $0x78] sm:$0xff]
        %v342 = vld [vmem:[%s267] sm:$0xff]
        %v343 = vld [vmem:[%s267 + $0x8] sm:$0xff]
        %v344 = vld [vmem:[%s267 + $0x10] sm:$0xff]
        %v345 = vld [vmem:[%s267 + $0x18] sm:$0xff]
        %v346 = vld [vmem:[%s267 + $0x20] sm:$0xff]
        %v347 = vld [vmem:[%s267 + $0x28] sm:$0xff]
        %v348 = vld [vmem:[%s267 + $0x30] sm:$0xff]
        %v349 = vld [vmem:[%s267 + $0x38] sm:$0xff]
        %v350 = vld [vmem:[%s267 + $0x40] sm:$0xff]
        %v351 = vld [vmem:[%s267 + $0x48] sm:$0xff]
        %v352 = vld [vmem:[%s267 + $0x50] sm:$0xff]
        %v353 = vld [vmem:[%s267 + $0x58] sm:$0xff]
        %v354 = vld [vmem:[%s267 + $0x60] sm:$0xff]
        %v355 = vld [vmem:[%s267 + $0x68] sm:$0xff]
        %v356 = vld [vmem:[%s267 + $0x70] sm:$0xff]
        %v357 = vld [vmem:[%s267 + $0x78] sm:$0xff]
        %v358 = vld [vmem:[%s298] sm:$0xff]
        %v359 = vld [vmem:[%s298 + $0x8] sm:$0xff]
        %v360 = vld [vmem:[%s298 + $0x10] sm:$0xff]
        %v361 = vld [vmem:[%s298 + $0x18] sm:$0xff]
        %v362 = vld [vmem:[%s298 + $0x20] sm:$0xff]
        %v363 = vld [vmem:[%s298 + $0x28] sm:$0xff]
        %v364 = vld [vmem:[%s298 + $0x30] sm:$0xff]
        %v365 = vld [vmem:[%s298 + $0x38] sm:$0xff]
        %v366 = vld [vmem:[%s298 + $0x40] sm:$0xff]
        %v367 = vld [vmem:[%s298 + $0x48] sm:$0xff]
        %v368 = vld [vmem:[%s298 + $0x50] sm:$0xff]
        %v369 = vld [vmem:[%s298 + $0x58] sm:$0xff]
        %v370 = vld [vmem:[%s298 + $0x60] sm:$0xff]
        %v371 = vld [vmem:[%s298 + $0x68] sm:$0xff]
        %v372 = vld [vmem:[%s298 + $0x70] sm:$0xff]
        %v373 = vld [vmem:[%s298 + $0x78] sm:$0xff]
        %374 = vmatprep.subr.mxu0 0.0
        %375 = vmatpush1.msra.mxu0 %v358
        %376 = vmatprep.subr.mxu0 0.0
        %377 = vmatpush1.msra.mxu0 %v359
        %378 = vmatprep.subr.mxu0 0.0
        %379 = vmatpush1.msra.mxu0 %v360
        %380 = vmatprep.subr.mxu0 0.0
        %381 = vmatpush1.msra.mxu0 %v361
        %382 = vmatprep.subr.mxu0 0.0
        %383 = vmatpush1.msra.mxu0 %v362
        %384 = vmatprep.subr.mxu0 0.0
        %385 = vmatpush1.msra.mxu0 %v363
        %386 = vmatprep.subr.mxu0 0.0
        %387 = vmatpush1.msra.mxu0 %v364
        %388 = vmatprep.subr.mxu0 0.0
        %389 = vmatpush1.msra.mxu0 %v365
        %390 = vmatprep.subr.mxu0 0.0
        %391 = vmatpush1.msra.mxu0 %v366
        %392 = vmatprep.subr.mxu0 0.0
        %393 = vmatpush1.msra.mxu0 %v367
        %394 = vmatprep.subr.mxu0 0.0
        %395 = vmatpush1.msra.mxu0 %v368
        %396 = vmatprep.subr.mxu0 0.0
        %397 = vmatpush1.msra.mxu0 %v369
        %398 = vmatprep.subr.mxu0 0.0
        %399 = vmatpush1.msra.mxu0 %v370
        %400 = vmatprep.subr.mxu0 0.0
        %401 = vmatpush1.msra.mxu0 %v371
        %402 = vmatprep.subr.mxu0 0.0
        %403 = vmatpush1.msra.mxu0 %v372
        %404 = vmatprep.subr.mxu0 0.0
        %405 = vmatpush1.msra.mxu0 %v373
        %406 = vmatprep.subr.mxu0 0.0
        %407 = vmatpush1.msra.mxu0 0.0
        %408 = vmatprep.subr.mxu0 0.0
        %409 = vmatpush1.msra.mxu0 0.0
        %410 = vmatprep.subr.mxu0 0.0
        %411 = vmatpush1.msra.mxu0 0.0
        %412 = vmatprep.subr.mxu0 0.0
        %413 = vmatpush1.msra.mxu0 0.0
        %414 = vmatprep.subr.mxu0 0.0
        %415 = vmatpush1.msra.mxu0 0.0
        %416 = vmatprep.subr.mxu0 0.0
        %417 = vmatpush1.msra.mxu0 0.0
        %418 = vmatprep.subr.mxu0 0.0
        %419 = vmatpush1.msra.mxu0 0.0
        %420 = vmatprep.subr.mxu0 0.0
        %421 = vmatpush1.msra.mxu0 0.0
        %422 = vmatprep.subr.mxu0 0.0
        %423 = vmatpush1.msra.mxu0 0.0
        %424 = vmatprep.subr.mxu0 0.0
        %425 = vmatpush1.msra.mxu0 0.0
        %426 = vmatprep.subr.mxu0 0.0
        %427 = vmatpush1.msra.mxu0 0.0
        %428 = vmatprep.subr.mxu0 0.0
        %429 = vmatpush1.msra.mxu0 0.0
        %430 = vmatprep.subr.mxu0 0.0
        %431 = vmatpush1.msra.mxu0 0.0
        %432 = vmatprep.subr.mxu0 0.0
        %433 = vmatpush1.msra.mxu0 0.0
        %434 = vmatprep.subr.mxu0 0.0
        %435 = vmatpush1.msra.mxu0 0.0
        %436 = vmatprep.subr.mxu0 0.0
        %437 = vmatpush1.msra.mxu0 0.0
        %438 = vmatprep.mubr.f32.mxu0 0.0
        %439 = vmatmul.mubr.f32.gmra.mrb[0].mxu0 %v342
        %v440 = vpop.f32.mrb[0].mxu0
        %v441 = vadd.f32 0.0, %v440
        %v442 = vpop.f32.mrb[0].mxu0
        %443 = vmatprep.mubr.f32.mxu0 0.0
        %444 = vmatmul.mubr.f32.gmra.mrb[0].mxu0 %v343
        %v445 = vpop.f32.mrb[0].mxu0
        %v446 = vadd.f32 0.0, %v445
        %v447 = vpop.f32.mrb[0].mxu0
        %448 = vmatprep.mubr.f32.mxu0 0.0
        %449 = vmatmul.mubr.f32.gmra.mrb[0].mxu0 %v344
        %v450 = vpop.f32.mrb[0].mxu0
        %v451 = vadd.f32 0.0, %v450
        %v452 = vpop.f32.mrb[0].mxu0
        %453 = vmatprep.mubr.f32.mxu0 0.0
        %454 = vmatmul.mubr.f32.gmra.mrb[0].mxu0 %v345
        %v455 = vpop.f32.mrb[0].mxu0
        %v456 = vadd.f32 0.0, %v455
        %v457 = vpop.f32.mrb[0].mxu0
        %458 = vmatprep.mubr.f32.mxu0 0.0
        %459 = vmatmul.mubr.f32.gmra.mrb[0].mxu0 %v346
        %v460 = vpop.f32.mrb[0].mxu0
        %v461 = vadd.f32 0.0, %v460
        %v462 = vpop.f32.mrb[0].mxu0
        %463 = vmatprep.mubr.f32.mxu0 0.0
        %464 = vmatmul.mubr.f32.gmra.mrb[0].mxu0 %v347
        %v465 = vpop.f32.mrb[0].mxu0
        %v466 = vadd.f32 0.0, %v465
        %v467 = vpop.f32.mrb[0].mxu0
        %468 = vmatprep.mubr.f32.mxu0 0.0
        %469 = vmatmul.mubr.f32.gmra.mrb[0].mxu0 %v348
        %v470 = vpop.f32.mrb[0].mxu0
        %v471 = vadd.f32 0.0, %v470
        %v472 = vpop.f32.mrb[0].mxu0
        %473 = vmatprep.mubr.f32.mxu0 0.0
        %474 = vmatmul.mubr.f32.gmra.mrb[0].mxu0 %v349
        %v475 = vpop.f32.mrb[0].mxu0
        %v476 = vadd.f32 0.0, %v475
        %v477 = vpop.f32.mrb[0].mxu0
        %478 = vmatprep.mubr.f32.mxu0 0.0
        %479 = vmatmul.mubr.f32.gmra.mrb[0].mxu0 %v350
        %v480 = vpop.f32.mrb[0].mxu0
        %v481 = vadd.f32 0.0, %v480
        %v482 = vpop.f32.mrb[0].mxu0
        %483 = vmatprep.mubr.f32.mxu0 0.0
        %484 = vmatmul.mubr.f32.gmra.mrb[0].mxu0 %v351
        %v485 = vpop.f32.mrb[0].mxu0
        %v486 = vadd.f32 0.0, %v485
        %v487 = vpop.f32.mrb[0].mxu0
        %488 = vmatprep.mubr.f32.mxu0 0.0
        %489 = vmatmul.mubr.f32.gmra.mrb[0].mxu0 %v352
        %v490 = vpop.f32.mrb[0].mxu0
        %v491 = vadd.f32 0.0, %v490
        %v492 = vpop.f32.mrb[0].mxu0
        %493 = vmatprep.mubr.f32.mxu0 0.0
        %494 = vmatmul.mubr.f32.gmra.mrb[0].mxu0 %v353
        %v495 = vpop.f32.mrb[0].mxu0
        %v496 = vadd.f32 0.0, %v495
        %v497 = vpop.f32.mrb[0].mxu0
        %498 = vmatprep.mubr.f32.mxu0 0.0
        %499 = vmatmul.mubr.f32.gmra.mrb[0].mxu0 %v354
        %v500 = vpop.f32.mrb[0].mxu0
        %v501 = vadd.f32 0.0, %v500
        %v502 = vpop.f32.mrb[0].mxu0
        %503 = vmatprep.mubr.f32.mxu0 0.0
        %504 = vmatmul.mubr.f32.gmra.mrb[0].mxu0 %v355
        %v505 = vpop.f32.mrb[0].mxu0
        %v506 = vadd.f32 0.0, %v505
        %v507 = vpop.f32.mrb[0].mxu0
        %508 = vmatprep.mubr.f32.mxu0 0.0
        %509 = vmatmul.mubr.f32.gmra.mrb[0].mxu0 %v356
        %v510 = vpop.f32.mrb[0].mxu0
        %v511 = vadd.f32 0.0, %v510
        %v512 = vpop.f32.mrb[0].mxu0
        %513 = vmatprep.mubr.f32.mxu0 0.0
        %514 = vmatmul.mubr.f32.gmra.mrb[0].mxu0 %v357
        %v515 = vpop.f32.mrb[0].mxu0
        %v516 = vadd.f32 0.0, %v515
        %v517 = vpop.f32.mrb[0].mxu0
        %518 = vdwg.mxu0
        %v519 = vadd.f32 %v326, %v441
        %v520 = vadd.f32 %v327, %v446
        %v521 = vadd.f32 %v328, %v451
        %v522 = vadd.f32 %v329, %v456
        %v523 = vadd.f32 %v330, %v461
        %v524 = vadd.f32 %v331, %v466
        %v525 = vadd.f32 %v332, %v471
        %v526 = vadd.f32 %v333, %v476
        %v527 = vadd.f32 %v334, %v481
        %v528 = vadd.f32 %v335, %v486
        %v529 = vadd.f32 %v336, %v491
        %v530 = vadd.f32 %v337, %v496
        %v531 = vadd.f32 %v338, %v501
        %v532 = vadd.f32 %v339, %v506
        %v533 = vadd.f32 %v340, %v511
        %v534 = vadd.f32 %v341, %v516
        %535 = vst [vmem:[#allocation2] sm:$0xff] %v519
        %536 = vst [vmem:[#allocation2 + $0x8] sm:$0xff] %v520
        %537 = vst [vmem:[#allocation2 + $0x10] sm:$0xff] %v521
        %538 = vst [vmem:[#allocation2 + $0x18] sm:$0xff] %v522
        %539 = vst [vmem:[#allocation2 + $0x20] sm:$0xff] %v523
        %540 = vst [vmem:[#allocation2 + $0x28] sm:$0xff] %v524
        %541 = vst [vmem:[#allocation2 + $0x30] sm:$0xff] %v525
        %542 = vst [vmem:[#allocation2 + $0x38] sm:$0xff] %v526
        %543 = vst [vmem:[#allocation2 + $0x40] sm:$0xff] %v527
        %544 = vst [vmem:[#allocation2 + $0x48] sm:$0xff] %v528
        %545 = vst [vmem:[#allocation2 + $0x50] sm:$0xff] %v529
        %546 = vst [vmem:[#allocation2 + $0x58] sm:$0xff] %v530
        %547 = vst [vmem:[#allocation2 + $0x60] sm:$0xff] %v531
        %548 = vst [vmem:[#allocation2 + $0x68] sm:$0xff] %v532
        %549 = vst [vmem:[#allocation2 + $0x70] sm:$0xff] %v533
        %550 = vst [vmem:[#allocation2 + $0x78] sm:$0xff] %v534
        %p551 = scmp.eq.s32.totalorder %s19, 1
        // Predicated region
        $region75: #{_lambda_.12} parent=65 // pred_check
          %p552 = pneg %p551
        $region76: #{_lambda_.12} parent=65 // pred_check_branch
          %554 = sbr.rel (%p552) target = $region78
        $region77: #{_lambda_.12} parent=65 // pred_region
          %v555 = vld [vmem:[#allocation2] sm:$0xff]
          %v556 = vld [vmem:[#allocation2 + $0x8] sm:$0xff]
          %v557 = vld [vmem:[#allocation2 + $0x10] sm:$0xff]
          %v558 = vld [vmem:[#allocation2 + $0x18] sm:$0xff]
          %v559 = vld [vmem:[#allocation2 + $0x20] sm:$0xff]
          %v560 = vld [vmem:[#allocation2 + $0x28] sm:$0xff]
          %v561 = vld [vmem:[#allocation2 + $0x30] sm:$0xff]
          %v562 = vld [vmem:[#allocation2 + $0x38] sm:$0xff]
          %v563 = vld [vmem:[#allocation2 + $0x40] sm:$0xff]
          %v564 = vld [vmem:[#allocation2 + $0x48] sm:$0xff]
          %v565 = vld [vmem:[#allocation2 + $0x50] sm:$0xff]
          %v566 = vld [vmem:[#allocation2 + $0x58] sm:$0xff]
          %v567 = vld [vmem:[#allocation2 + $0x60] sm:$0xff]
          %v568 = vld [vmem:[#allocation2 + $0x68] sm:$0xff]
          %v569 = vld [vmem:[#allocation2 + $0x70] sm:$0xff]
          %v570 = vld [vmem:[#allocation2 + $0x78] sm:$0xff]
          %v571 = vld [vmem:[%s2] sm:$0x1]
          %v573 = vlaneseq
          %v574 = vshrl.u32 %v573, 7
          %v575 = vsub.s32 0, %v574
          %v576 = vrot.slane %v571, %v575
          %v578 = vadd.f32 %v555, %v576
          %v579 = vadd.f32 %v556, %v576
          %v580 = vadd.f32 %v557, %v576
          %v581 = vadd.f32 %v558, %v576
          %v582 = vadd.f32 %v559, %v576
          %v583 = vadd.f32 %v560, %v576
          %v584 = vadd.f32 %v561, %v576
          %v585 = vadd.f32 %v562, %v576
          %v586 = vadd.f32 %v563, %v576
          %v587 = vadd.f32 %v564, %v576
          %v588 = vadd.f32 %v565, %v576
          %v589 = vadd.f32 %v566, %v576
          %v590 = vadd.f32 %v567, %v576
          %v591 = vadd.f32 %v568, %v576
          %v592 = vadd.f32 %v569, %v576
          %v593 = vadd.f32 %v570, %v576
          %594 = vst [vmem:[%s304] sm:$0xff] %v578
          %595 = vst [vmem:[%s304 + $0x8] sm:$0xff] %v579
          %596 = vst [vmem:[%s304 + $0x10] sm:$0xff] %v580
          %597 = vst [vmem:[%s304 + $0x18] sm:$0xff] %v581
          %598 = vst [vmem:[%s304 + $0x20] sm:$0xff] %v582
          %599 = vst [vmem:[%s304 + $0x28] sm:$0xff] %v583
          %600 = vst [vmem:[%s304 + $0x30] sm:$0xff] %v584
          %601 = vst [vmem:[%s304 + $0x38] sm:$0xff] %v585
          %602 = vst [vmem:[%s304 + $0x40] sm:$0xff] %v586
          %603 = vst [vmem:[%s304 + $0x48] sm:$0xff] %v587
          %604 = vst [vmem:[%s304 + $0x50] sm:$0xff] %v588
          %605 = vst [vmem:[%s304 + $0x58] sm:$0xff] %v589
          %606 = vst [vmem:[%s304 + $0x60] sm:$0xff] %v590
          %607 = vst [vmem:[%s304 + $0x68] sm:$0xff] %v591
          %608 = vst [vmem:[%s304 + $0x70] sm:$0xff] %v592
          %609 = vst [vmem:[%s304 + $0x78] sm:$0xff] %v593
        $region78: #{_lambda_.12} parent=65 // pred_fallthru
          _
        %s610 = smul.u32 16, %s18
        %p611 = scmp.lt.s32.totalorder %s610, 31
        %s612 = scalar_select %p611, %s610, 31
        %s613 = smul.addr %s612, 8
        %s614 = scalar_lea.vmem %s3, %s613
        // Predicated region
        $region79: #{_lambda_.12} parent=65 // pred_check
          %p615 = pneg %p119
        $region80: #{_lambda_.12} parent=65 // pred_check_branch
          %617 = sbr.rel (%p615) target = $region82
        $region81: #{_lambda_.12} parent=65 // pred_region
          %s618 = smul.u32 16, %s18
        $region82: #{_lambda_.12} parent=65 // pred_fallthru
          _
      $region66: #{_lambda_.12} parent=5 // pred_fallthru
        _
      %p619 = scmp.le.s32.totalorder 2, %s9
      // Predicated region
      $region83: #{_lambda_.12} parent=5 // pred_check
        %p620 = pneg %p619
      $region84: #{_lambda_.12} parent=5 // pred_check_branch
        %622 = sbr.rel (%p620) target = $region86
      $region85: #{_lambda_.12} parent=5 // pred_region
        %s623 = ssub.s32 %s9, 2
        // Predicated region
        $region87: #{_lambda_.12} parent=85 // pred_check
          %p624 = pneg %p125
        $region88: #{_lambda_.12} parent=85 // pred_check_branch
          %626 = sbr.rel (%p624) target = $region90
        $region89: #{_lambda_.12} parent=85 // pred_region
          %s627 = smul.u32 16, %s20
          %p628 = scmp.lt.s32.totalorder %s627, 31
          %s629 = scalar_select %p628, %s627, 31
          %s630 = smul.addr %s629, 8
          %s631 = scalar_lea.vmem %s3, %s630
        $region90: #{_lambda_.12} parent=85 // pred_fallthru
          _
      $region86: #{_lambda_.12} parent=5 // pred_fallthru
        _
    $region6: #{_lambda_.12} parent=1 // loop_footer
      %s13 = sadd.s32 1, %s9
    $region7: #{_lambda_.12} parent=1 // loop_footer_branch
      %8 = sbr.rel target = $region3
    $region8: #{_lambda_.12} parent=1 // loop_exit
      _

</llo_original>
